<compile_context>
chip_gen: v6e
topology: v6e:2x2x1
jax: 0.10.0
libtpu: 0.0.40
codegen_flags: <defaults>
</compile_context>

<pallas_src>
import math

import jax
import jax.numpy as jnp
from jax.experimental import pallas as pl
from jax.experimental.pallas import tpu as pltpu

# ----------------------------- model hyper-parameters (small) -----------------------------
D_MODEL = 32
N_LAYER = 2
VOCAB = 100
BATCH = 2
SEQ = 8

EXPAND = 2
D_INNER = EXPAND * D_MODEL            # 64
D_STATE = 16
D_CONV = 4
DT_RANK = math.ceil(D_MODEL / 16)     # 2
EPS = 1e-5

_HP = jax.lax.Precision.HIGHEST       # used only in the pure-JAX reference / param prep


# ------------------------------------ in-kernel helpers -----------------------------------
def _stable_softplus(x):
    # log(1 + exp(x)) without overflow for large x
    return jnp.maximum(x, 0.0) + jnp.log(1.0 + jnp.exp(-jnp.abs(x)))


def _layernorm(x, w, b, eps=EPS):
    mu = jnp.mean(x, axis=-1, keepdims=True)
    var = jnp.mean(jnp.square(x - mu), axis=-1, keepdims=True)
    return (x - mu) * jax.lax.rsqrt(var + eps) * w + b


# ----------------------------------- fused forward kernel ---------------------------------
def _mixer_kernel(ids_ref, emb_ref, lnw_ref, lnb_ref, win_ref, convw_ref,
                  convb_ref, wxt_ref, wdelta_ref, dtb_ref, at_ref, dvec_ref,
                  wout_ref, smat_ref, nfw_ref, nfb_ref, o_ref):
    seqlen = ids_ref.shape[0]
    vocab = emb_ref.shape[0]

    # ---- embedding lookup (one-hot matmul; exact gather would be a scalar-prefetch gather) ----
    onehot = (ids_ref[...] ==
              jax.lax.broadcasted_iota(jnp.int32, (seqlen, vocab), 1)).astype(jnp.float32)
    hidden = jnp.dot(onehot, emb_ref[...], preferred_element_type=jnp.float32)   # (L, D)

    row_iota = jax.lax.broadcasted_iota(jnp.int32, (seqlen, 1), 0)                # (L, 1)

    residual = None
    for layer in range(N_LAYER):                       # static unroll over layers
        residual = hidden if residual is None else hidden + residual
        xn = _layernorm(residual, lnw_ref[layer], lnb_ref[layer])                 # (L, D)

        # ------------------------------- Mamba mixer --------------------------------------
        xz = jnp.dot(xn, win_ref[layer], preferred_element_type=jnp.float32)      # (L, 2*d_inner)
        x_part = xz[:, :D_INNER]                                                  # (L, d_inner)
        z = xz[:, D_INNER:]                                                       # (L, d_inner)

        # causal depthwise conv1d + SiLU; the left zero-padding is expressed with constant
        # shift matrices so no padded HBM copy is ever materialized.
        wc = convw_ref[layer]                          # (K, d_inner)
        acc = convb_ref[layer]                         # (1, d_inner)
        for j in range(D_CONV):                        # static unroll over conv taps
            x_shift = jnp.dot(smat_ref[j], x_part, preferred_element_type=jnp.float32)
            acc = acc + wc[j:j + 1, :] * x_shift
        xc = acc * jax.nn.sigmoid(acc)                 # SiLU, (L, d_inner)

        # x_proj: B/C emitted transposed (state dim on sublanes) -> no in-kernel transpose,
        # dt_proj already folded into W_delta.
        dbl_t = jax.lax.dot_general(
            wxt_ref[layer], xc, (((1,), (1,)), ((), ())),
            preferred_element_type=jnp.float32)                                   # (2*d_state, L)
        dt = _stable_softplus(
            jnp.dot(xc, wdelta_ref[layer], preferred_element_type=jnp.float32)
            + dtb_ref[layer])                                                     # (L, d_inner)

        a_t = at_ref[layer]                            # (d_state, d_inner) == (-exp(A_log)).T
        d_vec = dvec_ref[layer]                        # (1, d_inner)

        # ------------------- selective scan: state carried in vregs -----------------------
        h = jnp.zeros((D_STATE, D_INNER), jnp.float32)
        y_all = jnp.zeros((seqlen, D_INNER), jnp.float32)
        for t in range(seqlen):                        # static unroll over time
            dt_r = dt[t:t + 1, :]                      # (1, d_inner)
            u_r = xc[t:t + 1, :]
            z_r = z[t:t + 1, :]
            b_c = dbl_t[0:D_STATE, t:t + 1]            # (d_state, 1)
            c_c = dbl_t[D_STATE:2 * D_STATE, t:t + 1]  # (d_state, 1)

            h = jnp.exp(dt_r * a_t) * h + b_c * (dt_r * u_r)                      # (d_state, d_inner)
            y_r = jnp.sum(c_c * h, axis=0, keepdims=True) + d_vec * u_r           # (1, d_inner)
            y_r = y_r * (z_r * jax.nn.sigmoid(z_r))                               # gate with SiLU(z)
            y_all = y_all + (row_iota == t).astype(jnp.float32) * y_r             # place row t

        hidden = jnp.dot(y_all, wout_ref[layer], preferred_element_type=jnp.float32)   # (L, D)

    residual = hidden + residual
    o_ref[...] = _layernorm(residual, nfw_ref[...], nfb_ref[...])


# --------------------------------- wrapper (single pallas_call) ---------------------------
def mixer_forward(input_ids, params):
    bsz, seqlen = input_ids.shape
    d = params["embedding"].shape[1]
    layers = params["layers"]

    stack = lambda fn: jnp.stack([fn(lp) for lp in layers])
    ln_w = stack(lambda lp: lp["ln_w"].reshape(1, d))
    ln_b = stack(lambda lp: lp["ln_b"].reshape(1, d))
    w_in = stack(lambda lp: lp["W_in"])
    conv_w = stack(lambda lp: lp["conv_w"])
    conv_b = stack(lambda lp: lp["conv_b"].reshape(1, D_INNER))
    # fold dt_proj into x_proj (associativity): W_delta = W_x[:, :rank] @ W_dt
    w_delta = stack(lambda lp: jnp.dot(lp["W_x"][:, :DT_RANK], lp["W_dt"], precision=_HP))
    # B/C projection stored transposed so the scan sees the state dim on sublanes
    w_x_bc_t = stack(lambda lp: lp["W_x"][:, DT_RANK:].T)
    dt_bias = stack(lambda lp: lp["dt_bias"].reshape(1, D_INNER))
    a_t = stack(lambda lp: (-jnp.exp(lp["A_log"])).T)
    d_vec = stack(lambda lp: lp["D"].reshape(1, D_INNER))
    w_out = stack(lambda lp: lp["W_out"])
    nf_w = params["norm_f_w"].reshape(1, d)
    nf_b = params["norm_f_b"].reshape(1, d)

    # constant causal-shift matrices (one per conv tap) -> in-kernel causal padding via MXU
    tt = jnp.arange(seqlen)
    smat = jnp.stack([((tt[:, None] - tt[None, :]) == (D_CONV - 1 - j)).astype(jnp.float32)
                      for j in range(D_CONV)])                                    # (K, L, L)

    ids = input_ids.reshape(bsz * seqlen, 1).astype(jnp.int32)

    def replicated(arr):
        nd = arr.ndim
        return pl.BlockSpec(arr.shape, lambda b: (0,) * nd)

    in_specs = [
        pl.BlockSpec((seqlen, 1), lambda b: (b, 0)),    # ids: one batch per grid program
        replicated(params["embedding"]),
        replicated(ln_w), replicated(ln_b), replicated(w_in),
        replicated(conv_w), replicated(conv_b),
        replicated(w_x_bc_t), replicated(w_delta), replicated(dt_bias),
        replicated(a_t), replicated(d_vec), replicated(w_out),
        replicated(smat), replicated(nf_w), replicated(nf_b),
    ]

    out = pl.pallas_call(
        _mixer_kernel,
        grid=(bsz,),
        in_specs=in_specs,
        out_specs=pl.BlockSpec((seqlen, d), lambda b: (b, 0)),
        out_shape=jax.ShapeDtypeStruct((bsz * seqlen, d), jnp.float32),
        compiler_params=pltpu.CompilerParams(dimension_semantics=("parallel",)),
    )(ids, params["embedding"], ln_w, ln_b, w_in, conv_w, conv_b,
      w_x_bc_t, w_delta, dt_bias, a_t, d_vec, w_out, smat, nf_w, nf_b)

    return out.reshape(bsz, seqlen, d)


# ---------------------------- pure-JAX reference (for checking) ---------------------------
def _silu(x):
    return x * jax.nn.sigmoid(x)


def _ref_layernorm(x, w, b, eps=EPS):
    mu = jnp.mean(x, axis=-1, keepdims=True)
    var = jnp.mean(jnp.square(x - mu), axis=-1, keepdims=True)
    return (x - mu) * jax.lax.rsqrt(var + eps) * w + b


def ref_mamba(x, lp):
    bsz, l, _ = x.shape
    xz = jnp.dot(x, lp["W_in"], precision=_HP)
    x_part, z = xz[..., :D_INNER], xz[..., D_INNER:]
    k = lp["conv_w"].shape[0]
    xp = jnp.pad(x_part, ((0, 0), (k - 1, 0), (0, 0)))
    xc = lp["conv_b"] + sum(xp[:, j:j + l, :] * lp["conv_w"][j] for j in range(k))
    xc = _silu(xc)
    x_dbl = jnp.dot(xc, lp["W_x"], precision=_HP)
    dt = x_dbl[..., :DT_RANK]
    bmat = x_dbl[..., DT_RANK:DT_RANK + D_STATE]
    cmat = x_dbl[..., DT_RANK + D_STATE:]
    delta = _stable_softplus(jnp.dot(dt, lp["W_dt"], precision=_HP) + lp["dt_bias"])
    a = -jnp.exp(lp["A_log"])                                 # (d_inner, d_state)

    def step(h, inp):
        d_t, b_t, c_t, u_t, z_t = inp
        da = jnp.exp(d_t[:, :, None] * a[None, :, :])         # (B, d_inner, d_state)
        dbu = (d_t * u_t)[:, :, None] * b_t[:, None, :]
        h = da * h + dbu
        y = jnp.sum(h * c_t[:, None, :], axis=-1) + lp["D"] * u_t
        return h, y * _silu(z_t)

    mv = lambda arr: jnp.moveaxis(arr, 1, 0)
    h0 = jnp.zeros((bsz, D_INNER, D_STATE), jnp.float32)
    _, ys = jax.lax.scan(step, h0, (mv(delta), mv(bmat), mv(cmat), mv(xc), mv(z)))
    y = jnp.moveaxis(ys, 0, 1)
    return jnp.dot(y, lp["W_out"], precision=_HP)


def ref_forward(input_ids, params):
    hidden = params["embedding"][input_ids]
    residual = None
    for lp in params["layers"]:
        residual = hidden if residual is None else hidden + residual
        hidden = ref_mamba(_ref_layernorm(residual, lp["ln_w"], lp["ln_b"]), lp)
    residual = hidden + residual
    return _ref_layernorm(residual, params["norm_f_w"], params["norm_f_b"])


# ---------------------------------- parameter init ----------------------------------------
def init_params(key):
    keys = jax.random.split(key, 2 + N_LAYER)
    params = {
        "embedding": 0.02 * jax.random.normal(keys[0], (VOCAB, D_MODEL), jnp.float32),
        "norm_f_w": jnp.ones((D_MODEL,), jnp.float32),
        "norm_f_b": jnp.zeros((D_MODEL,), jnp.float32),
        "layers": [],
    }
    for i in range(N_LAYER):
        k = jax.random.split(keys[2 + i], 8)
        layer = {
            "ln_w": jnp.ones((D_MODEL,), jnp.float32),
            "ln_b": jnp.zeros((D_MODEL,), jnp.float32),
            # linear weights are stored pre-transposed for an `x @ W` layout
            "W_in": jax.random.normal(k[0], (D_MODEL, 2 * D_INNER), jnp.float32) / math.sqrt(D_MODEL),
            "conv_w": jax.random.normal(k[1], (D_CONV, D_INNER), jnp.float32) / math.sqrt(D_CONV),
            "conv_b": 0.1 * jax.random.normal(k[2], (D_INNER,), jnp.float32),
            "W_x": jax.random.normal(k[3], (D_INNER, DT_RANK + 2 * D_STATE), jnp.float32) / math.sqrt(D_INNER),
            "W_dt": jax.random.normal(k[4], (DT_RANK, D_INNER), jnp.float32) / math.sqrt(DT_RANK),
            "dt_bias": jax.random.uniform(k[5], (D_INNER,), jnp.float32, minval=-4.0, maxval=-1.0),
            "A_log": jnp.log(jnp.broadcast_to(
                jnp.arange(1, D_STATE + 1, dtype=jnp.float32), (D_INNER, D_STATE))),
            "D": jnp.ones((D_INNER,), jnp.float32),
            # out_proj rescaled by 1/sqrt(n_layer) as in _init_weights
            "W_out": jax.random.normal(k[6], (D_INNER, D_MODEL), jnp.float32)
                     / (math.sqrt(D_INNER) * math.sqrt(N_LAYER)),
        }
        params["layers"].append(layer)
    return params


# --------------------------------------- main ---------------------------------------------
if __name__ == "__main__":
    key = jax.random.PRNGKey(0)
    pkey, ikey = jax.random.split(key)
    params = init_params(pkey)
    input_ids = jax.random.randint(ikey, (BATCH, SEQ), 0, VOCAB, dtype=jnp.int32)

    out = jax.jit(mixer_forward)(input_ids, params)
    out = jax.block_until_ready(out)
    assert out.shape == (BATCH, SEQ, D_MODEL)

    ref = jax.block_until_ready(ref_forward(input_ids, params))
    # Tolerance sized for default (single-pass bf16) MXU matmul precision in the kernel vs the
    # fp32 HIGHEST-precision reference (HIGHEST was dropped per performance feedback).
    max_err = float(jnp.max(jnp.abs(out - ref)))
    if not max_err < 5e-2:
        raise AssertionError(f"Pallas output mismatch vs reference, max abs err={max_err}")
    print("KERNEL_OK")
</pallas_src>

<mosaic_0001>
module attributes {stable_mosaic.version = 11 : i64} {
  func.func @_mixer_kernel(%arg0: i32, %arg1: memref<8x1xi32, #tpu.memory_space<vmem>>, %arg2: memref<100x32xf32, #tpu.memory_space<vmem>>, %arg3: memref<2x1x32xf32, #tpu.memory_space<vmem>>, %arg4: memref<2x1x32xf32, #tpu.memory_space<vmem>>, %arg5: memref<2x32x128xf32, #tpu.memory_space<vmem>>, %arg6: memref<2x4x64xf32, #tpu.memory_space<vmem>>, %arg7: memref<2x1x64xf32, #tpu.memory_space<vmem>>, %arg8: memref<2x32x64xf32, #tpu.memory_space<vmem>>, %arg9: memref<2x64x64xf32, #tpu.memory_space<vmem>>, %arg10: memref<2x1x64xf32, #tpu.memory_space<vmem>>, %arg11: memref<2x16x64xf32, #tpu.memory_space<vmem>>, %arg12: memref<2x1x64xf32, #tpu.memory_space<vmem>>, %arg13: memref<2x64x32xf32, #tpu.memory_space<vmem>>, %arg14: memref<4x8x8xf32, #tpu.memory_space<vmem>>, %arg15: memref<1x32xf32, #tpu.memory_space<vmem>>, %arg16: memref<1x32xf32, #tpu.memory_space<vmem>>, %arg17: memref<8x32xf32, #tpu.memory_space<vmem>>) attributes {dimension_semantics = [#tpu.dimension_semantics<parallel>], iteration_bounds = array<i64: 2>, scalar_prefetch = 0 : i64, scratch_operands = 0 : i64, tpu.core_type = #tpu.core_type<tc>, window_params = [{transform_indices = @transform_0, window_bounds = array<i64: 8, 1>}, {pipeline_mode = #tpu.pipeline_mode<synchronous>, transform_indices = @transform_1, window_bounds = array<i64: 100, 32>}, {pipeline_mode = #tpu.pipeline_mode<synchronous>, transform_indices = @transform_2, window_bounds = array<i64: 2, 1, 32>}, {pipeline_mode = #tpu.pipeline_mode<synchronous>, transform_indices = @transform_3, window_bounds = array<i64: 2, 1, 32>}, {pipeline_mode = #tpu.pipeline_mode<synchronous>, transform_indices = @transform_4, window_bounds = array<i64: 2, 32, 128>}, {pipeline_mode = #tpu.pipeline_mode<synchronous>, transform_indices = @transform_5, window_bounds = array<i64: 2, 4, 64>}, {pipeline_mode = #tpu.pipeline_mode<synchronous>, transform_indices = @transform_6, window_bounds = array<i64: 2, 1, 64>}, {pipeline_mode = #tpu.pipeline_mode<synchronous>, transform_indices = @transform_7, window_bounds = array<i64: 2, 32, 64>}, {pipeline_mode = #tpu.pipeline_mode<synchronous>, transform_indices = @transform_8, window_bounds = array<i64: 2, 64, 64>}, {pipeline_mode = #tpu.pipeline_mode<synchronous>, transform_indices = @transform_9, window_bounds = array<i64: 2, 1, 64>}, {pipeline_mode = #tpu.pipeline_mode<synchronous>, transform_indices = @transform_10, window_bounds = array<i64: 2, 16, 64>}, {pipeline_mode = #tpu.pipeline_mode<synchronous>, transform_indices = @transform_11, window_bounds = array<i64: 2, 1, 64>}, {pipeline_mode = #tpu.pipeline_mode<synchronous>, transform_indices = @transform_12, window_bounds = array<i64: 2, 64, 32>}, {pipeline_mode = #tpu.pipeline_mode<synchronous>, transform_indices = @transform_13, window_bounds = array<i64: 4, 8, 8>}, {pipeline_mode = #tpu.pipeline_mode<synchronous>, transform_indices = @transform_14, window_bounds = array<i64: 1, 32>}, {pipeline_mode = #tpu.pipeline_mode<synchronous>, transform_indices = @transform_15, window_bounds = array<i64: 1, 32>}, {transform_indices = @transform_16, window_bounds = array<i64: 8, 32>}]} {
    %c0 = arith.constant 0 : index
    %c0_0 = arith.constant 0 : index
    %0 = vector.load %arg1[%c0, %c0_0] : memref<8x1xi32, #tpu.memory_space<vmem>>, vector<8x1xi32>
    %1 = tpu.iota {dimensions = array<i32: 1>} : vector<8x100xi32>
    %2 = vector.broadcast %0 : vector<8x1xi32> to vector<8x100xi32>
    %3 = arith.cmpi eq, %2, %1 : vector<8x100xi32>
    %4 = arith.extui %3 : vector<8x100xi1> to vector<8x100xi32>
    %5 = arith.sitofp %4 : vector<8x100xi32> to vector<8x100xf32>
    %c0_1 = arith.constant 0 : index
    %c0_2 = arith.constant 0 : index
    %6 = vector.load %arg2[%c0_1, %c0_2] : memref<100x32xf32, #tpu.memory_space<vmem>>, vector<100x32xf32>
    %cst = arith.constant dense<0.000000e+00> : vector<8x32xf32>
    %7 = tpu.matmul %5, %6, %cst {dimension_numbers = #tpu.dot_dimension_numbers<[1], [0], [0], [1], [0, 0, 1, 1], [], []>} : vector<8x100xf32>, vector<100x32xf32>, vector<8x32xf32> -> vector<8x32xf32>
    %8 = tpu.iota {dimensions = array<i32: 0>} : vector<8x1xi32>
    %c0_3 = arith.constant 0 : index
    %c0_4 = arith.constant 0 : index
    %c0_5 = arith.constant 0 : index
    %9 = vector.load %arg3[%c0_3, %c0_4, %c0_5] : memref<2x1x32xf32, #tpu.memory_space<vmem>>, vector<1x1x32xf32>
    %10 = vector.shape_cast %9 : vector<1x1x32xf32> to vector<1x32xf32>
    %c0_6 = arith.constant 0 : index
    %c0_7 = arith.constant 0 : index
    %c0_8 = arith.constant 0 : index
    %11 = vector.load %arg4[%c0_6, %c0_7, %c0_8] : memref<2x1x32xf32, #tpu.memory_space<vmem>>, vector<1x1x32xf32>
    %12 = vector.shape_cast %11 : vector<1x1x32xf32> to vector<1x32xf32>
    %cst_9 = arith.constant dense<0.000000e+00> : vector<8xf32>
    %13 = vector.multi_reduction <add>, %7, %cst_9 [1] : vector<8x32xf32> to vector<8xf32>
    %14 = vector.shape_cast %13 : vector<8xf32> to vector<8x1xf32>
    %cst_10 = arith.constant 3.200000e+01 : f32
    %15 = vector.broadcast %cst_10 : f32 to vector<8x1xf32>
    %16 = arith.divf %14, %15 : vector<8x1xf32>
    %17 = vector.broadcast %16 : vector<8x1xf32> to vector<8x32xf32>
    %18 = arith.subf %7, %17 : vector<8x32xf32>
    %19 = arith.mulf %18, %18 : vector<8x32xf32>
    %cst_11 = arith.constant dense<0.000000e+00> : vector<8xf32>
    %20 = vector.multi_reduction <add>, %19, %cst_11 [1] : vector<8x32xf32> to vector<8xf32>
    %21 = vector.shape_cast %20 : vector<8xf32> to vector<8x1xf32>
    %cst_12 = arith.constant 3.200000e+01 : f32
    %22 = vector.broadcast %cst_12 : f32 to vector<8x1xf32>
    %23 = arith.divf %21, %22 : vector<8x1xf32>
    %24 = vector.broadcast %16 : vector<8x1xf32> to vector<8x32xf32>
    %25 = arith.subf %7, %24 : vector<8x32xf32>
    %cst_13 = arith.constant 9.99999974E-6 : f32
    %26 = vector.broadcast %cst_13 : f32 to vector<8x1xf32>
    %27 = arith.addf %23, %26 : vector<8x1xf32>
    %28 = math.rsqrt %27 : vector<8x1xf32>
    %29 = vector.broadcast %28 : vector<8x1xf32> to vector<8x32xf32>
    %30 = arith.mulf %25, %29 : vector<8x32xf32>
    %31 = vector.broadcast %10 : vector<1x32xf32> to vector<8x32xf32>
    %32 = arith.mulf %30, %31 : vector<8x32xf32>
    %33 = vector.broadcast %12 : vector<1x32xf32> to vector<8x32xf32>
    %34 = arith.addf %32, %33 : vector<8x32xf32>
    %c0_14 = arith.constant 0 : index
    %c0_15 = arith.constant 0 : index
    %c0_16 = arith.constant 0 : index
    %35 = vector.load %arg5[%c0_14, %c0_15, %c0_16] : memref<2x32x128xf32, #tpu.memory_space<vmem>>, vector<1x32x128xf32>
    %36 = vector.shape_cast %35 : vector<1x32x128xf32> to vector<32x128xf32>
    %cst_17 = arith.constant dense<0.000000e+00> : vector<8x128xf32>
    %37 = tpu.matmul %34, %36, %cst_17 {dimension_numbers = #tpu.dot_dimension_numbers<[1], [0], [0], [1], [0, 0, 1, 1], [], []>} : vector<8x32xf32>, vector<32x128xf32>, vector<8x128xf32> -> vector<8x128xf32>
    %38 = vector.extract_strided_slice %37 {offsets = [0, 0], sizes = [8, 64], strides = [1, 1]} : vector<8x128xf32> to vector<8x64xf32>
    %39 = vector.extract_strided_slice %37 {offsets = [0, 64], sizes = [8, 64], strides = [1, 1]} : vector<8x128xf32> to vector<8x64xf32>
    %c0_18 = arith.constant 0 : index
    %c0_19 = arith.constant 0 : index
    %c0_20 = arith.constant 0 : index
    %40 = vector.load %arg6[%c0_18, %c0_19, %c0_20] : memref<2x4x64xf32, #tpu.memory_space<vmem>>, vector<1x4x64xf32>
    %41 = vector.shape_cast %40 : vector<1x4x64xf32> to vector<4x64xf32>
    %c0_21 = arith.constant 0 : index
    %c0_22 = arith.constant 0 : index
    %c0_23 = arith.constant 0 : index
    %42 = vector.load %arg7[%c0_21, %c0_22, %c0_23] : memref<2x1x64xf32, #tpu.memory_space<vmem>>, vector<1x1x64xf32>
    %43 = vector.shape_cast %42 : vector<1x1x64xf32> to vector<1x64xf32>
    %c0_24 = arith.constant 0 : index
    %c0_25 = arith.constant 0 : index
    %c0_26 = arith.constant 0 : index
    %44 = vector.load %arg14[%c0_24, %c0_25, %c0_26] : memref<4x8x8xf32, #tpu.memory_space<vmem>>, vector<1x8x8xf32>
    %45 = vector.shape_cast %44 : vector<1x8x8xf32> to vector<8x8xf32>
    %cst_27 = arith.constant dense<0.000000e+00> : vector<8x64xf32>
    %46 = tpu.matmul %45, %38, %cst_27 {dimension_numbers = #tpu.dot_dimension_numbers<[1], [0], [0], [1], [0, 0, 1, 1], [], []>} : vector<8x8xf32>, vector<8x64xf32>, vector<8x64xf32> -> vector<8x64xf32>
    %47 = vector.extract_strided_slice %41 {offsets = [0, 0], sizes = [1, 64], strides = [1, 1]} : vector<4x64xf32> to vector<1x64xf32>
    %48 = vector.broadcast %47 : vector<1x64xf32> to vector<8x64xf32>
    %49 = arith.mulf %48, %46 : vector<8x64xf32>
    %50 = vector.broadcast %43 : vector<1x64xf32> to vector<8x64xf32>
    %51 = arith.addf %50, %49 : vector<8x64xf32>
    %c1 = arith.constant 1 : index
    %c0_28 = arith.constant 0 : index
    %c0_29 = arith.constant 0 : index
    %52 = vector.load %arg14[%c1, %c0_28, %c0_29] : memref<4x8x8xf32, #tpu.memory_space<vmem>>, vector<1x8x8xf32>
    %53 = vector.shape_cast %52 : vector<1x8x8xf32> to vector<8x8xf32>
    %cst_30 = arith.constant dense<0.000000e+00> : vector<8x64xf32>
    %54 = tpu.matmul %53, %38, %cst_30 {dimension_numbers = #tpu.dot_dimension_numbers<[1], [0], [0], [1], [0, 0, 1, 1], [], []>} : vector<8x8xf32>, vector<8x64xf32>, vector<8x64xf32> -> vector<8x64xf32>
    %55 = vector.extract_strided_slice %41 {offsets = [1, 0], sizes = [1, 64], strides = [1, 1]} : vector<4x64xf32> to vector<1x64xf32>
    %56 = vector.broadcast %55 : vector<1x64xf32> to vector<8x64xf32>
    %57 = arith.mulf %56, %54 : vector<8x64xf32>
    %58 = arith.addf %51, %57 : vector<8x64xf32>
    %c2 = arith.constant 2 : index
    %c0_31 = arith.constant 0 : index
    %c0_32 = arith.constant 0 : index
    %59 = vector.load %arg14[%c2, %c0_31, %c0_32] : memref<4x8x8xf32, #tpu.memory_space<vmem>>, vector<1x8x8xf32>
    %60 = vector.shape_cast %59 : vector<1x8x8xf32> to vector<8x8xf32>
    %cst_33 = arith.constant dense<0.000000e+00> : vector<8x64xf32>
    %61 = tpu.matmul %60, %38, %cst_33 {dimension_numbers = #tpu.dot_dimension_numbers<[1], [0], [0], [1], [0, 0, 1, 1], [], []>} : vector<8x8xf32>, vector<8x64xf32>, vector<8x64xf32> -> vector<8x64xf32>
    %62 = vector.extract_strided_slice %41 {offsets = [2, 0], sizes = [1, 64], strides = [1, 1]} : vector<4x64xf32> to vector<1x64xf32>
    %63 = vector.broadcast %62 : vector<1x64xf32> to vector<8x64xf32>
    %64 = arith.mulf %63, %61 : vector<8x64xf32>
    %65 = arith.addf %58, %64 : vector<8x64xf32>
    %c3 = arith.constant 3 : index
    %c0_34 = arith.constant 0 : index
    %c0_35 = arith.constant 0 : index
    %66 = vector.load %arg14[%c3, %c0_34, %c0_35] : memref<4x8x8xf32, #tpu.memory_space<vmem>>, vector<1x8x8xf32>
    %67 = vector.shape_cast %66 : vector<1x8x8xf32> to vector<8x8xf32>
    %cst_36 = arith.constant dense<0.000000e+00> : vector<8x64xf32>
    %68 = tpu.matmul %67, %38, %cst_36 {dimension_numbers = #tpu.dot_dimension_numbers<[1], [0], [0], [1], [0, 0, 1, 1], [], []>} : vector<8x8xf32>, vector<8x64xf32>, vector<8x64xf32> -> vector<8x64xf32>
    %69 = vector.extract_strided_slice %41 {offsets = [3, 0], sizes = [1, 64], strides = [1, 1]} : vector<4x64xf32> to vector<1x64xf32>
    %70 = vector.broadcast %69 : vector<1x64xf32> to vector<8x64xf32>
    %71 = arith.mulf %70, %68 : vector<8x64xf32>
    %72 = arith.addf %65, %71 : vector<8x64xf32>
    %73 = arith.negf %72 : vector<8x64xf32>
    %74 = math.exp %73 : vector<8x64xf32>
    %cst_37 = arith.constant 1.000000e+00 : f32
    %75 = vector.broadcast %cst_37 : f32 to vector<8x64xf32>
    %76 = arith.addf %75, %74 : vector<8x64xf32>
    %77 = arith.divf %75, %76 : vector<8x64xf32>
    %78 = arith.mulf %72, %77 : vector<8x64xf32>
    %c0_38 = arith.constant 0 : index
    %c0_39 = arith.constant 0 : index
    %c0_40 = arith.constant 0 : index
    %79 = vector.load %arg8[%c0_38, %c0_39, %c0_40] : memref<2x32x64xf32, #tpu.memory_space<vmem>>, vector<1x32x64xf32>
    %80 = vector.shape_cast %79 : vector<1x32x64xf32> to vector<32x64xf32>
    %cst_41 = arith.constant dense<0.000000e+00> : vector<32x8xf32>
    %81 = tpu.matmul %80, %78, %cst_41 {dimension_numbers = #tpu.dot_dimension_numbers<[1], [1], [0], [0], [0, 0, 1, 0], [], []>} : vector<32x64xf32>, vector<8x64xf32>, vector<32x8xf32> -> vector<32x8xf32>
    %c0_42 = arith.constant 0 : index
    %c0_43 = arith.constant 0 : index
    %c0_44 = arith.constant 0 : index
    %82 = vector.load %arg9[%c0_42, %c0_43, %c0_44] : memref<2x64x64xf32, #tpu.memory_space<vmem>>, vector<1x64x64xf32>
    %83 = vector.shape_cast %82 : vector<1x64x64xf32> to vector<64x64xf32>
    %cst_45 = arith.constant dense<0.000000e+00> : vector<8x64xf32>
    %84 = tpu.matmul %78, %83, %cst_45 {dimension_numbers = #tpu.dot_dimension_numbers<[1], [0], [0], [1], [0, 0, 1, 1], [], []>} : vector<8x64xf32>, vector<64x64xf32>, vector<8x64xf32> -> vector<8x64xf32>
    %c0_46 = arith.constant 0 : index
    %c0_47 = arith.constant 0 : index
    %c0_48 = arith.constant 0 : index
    %85 = vector.load %arg10[%c0_46, %c0_47, %c0_48] : memref<2x1x64xf32, #tpu.memory_space<vmem>>, vector<1x1x64xf32>
    %86 = vector.shape_cast %85 : vector<1x1x64xf32> to vector<1x64xf32>
    %87 = vector.broadcast %86 : vector<1x64xf32> to vector<8x64xf32>
    %88 = arith.addf %84, %87 : vector<8x64xf32>
    %cst_49 = arith.constant 0.000000e+00 : f32
    %89 = vector.broadcast %cst_49 : f32 to vector<8x64xf32>
    %90 = arith.maximumf %88, %89 : vector<8x64xf32>
    %91 = math.absf %88 : vector<8x64xf32>
    %cst_50 = arith.constant 0.000000e+00 : f32
    %92 = vector.broadcast %cst_50 : f32 to vector<8x64xf32>
    %93 = arith.subf %92, %91 : vector<8x64xf32>
    %94 = math.exp %93 : vector<8x64xf32>
    %cst_51 = arith.constant 1.000000e+00 : f32
    %95 = vector.broadcast %cst_51 : f32 to vector<8x64xf32>
    %96 = arith.addf %95, %94 : vector<8x64xf32>
    %97 = math.log %96 : vector<8x64xf32>
    %98 = arith.addf %90, %97 : vector<8x64xf32>
    %c0_52 = arith.constant 0 : index
    %c0_53 = arith.constant 0 : index
    %c0_54 = arith.constant 0 : index
    %99 = vector.load %arg11[%c0_52, %c0_53, %c0_54] : memref<2x16x64xf32, #tpu.memory_space<vmem>>, vector<1x16x64xf32>
    %100 = vector.shape_cast %99 : vector<1x16x64xf32> to vector<16x64xf32>
    %c0_55 = arith.constant 0 : index
    %c0_56 = arith.constant 0 : index
    %c0_57 = arith.constant 0 : index
    %101 = vector.load %arg12[%c0_55, %c0_56, %c0_57] : memref<2x1x64xf32, #tpu.memory_space<vmem>>, vector<1x1x64xf32>
    %102 = vector.shape_cast %101 : vector<1x1x64xf32> to vector<1x64xf32>
    %cst_58 = arith.constant 0.000000e+00 : f32
    %103 = vector.broadcast %cst_58 : f32 to vector<16x64xf32>
    %cst_59 = arith.constant 0.000000e+00 : f32
    %104 = vector.broadcast %cst_59 : f32 to vector<8x64xf32>
    %105 = vector.extract_strided_slice %98 {offsets = [0, 0], sizes = [1, 64], strides = [1, 1]} : vector<8x64xf32> to vector<1x64xf32>
    %106 = vector.extract_strided_slice %78 {offsets = [0, 0], sizes = [1, 64], strides = [1, 1]} : vector<8x64xf32> to vector<1x64xf32>
    %107 = vector.extract_strided_slice %39 {offsets = [0, 0], sizes = [1, 64], strides = [1, 1]} : vector<8x64xf32> to vector<1x64xf32>
    %108 = vector.extract_strided_slice %81 {offsets = [0, 0], sizes = [16, 1], strides = [1, 1]} : vector<32x8xf32> to vector<16x1xf32>
    %109 = vector.extract_strided_slice %81 {offsets = [16, 0], sizes = [16, 1], strides = [1, 1]} : vector<32x8xf32> to vector<16x1xf32>
    %110 = vector.broadcast %105 : vector<1x64xf32> to vector<16x64xf32>
    %111 = arith.mulf %110, %100 : vector<16x64xf32>
    %112 = math.exp %111 : vector<16x64xf32>
    %113 = arith.mulf %112, %103 : vector<16x64xf32>
    %114 = arith.mulf %105, %106 : vector<1x64xf32>
    %115 = vector.broadcast %108 : vector<16x1xf32> to vector<16x64xf32>
    %116 = vector.broadcast %114 : vector<1x64xf32> to vector<16x64xf32>
    %117 = arith.mulf %115, %116 : vector<16x64xf32>
    %118 = arith.addf %113, %117 : vector<16x64xf32>
    %119 = vector.broadcast %109 : vector<16x1xf32> to vector<16x64xf32>
    %120 = arith.mulf %119, %118 : vector<16x64xf32>
    %cst_60 = arith.constant dense<0.000000e+00> : vector<64xf32>
    %121 = vector.multi_reduction <add>, %120, %cst_60 [0] : vector<16x64xf32> to vector<64xf32>
    %122 = vector.shape_cast %121 : vector<64xf32> to vector<1x64xf32>
    %123 = arith.mulf %102, %106 : vector<1x64xf32>
    %124 = arith.addf %122, %123 : vector<1x64xf32>
    %125 = arith.negf %107 : vector<1x64xf32>
    %126 = math.exp %125 : vector<1x64xf32>
    %cst_61 = arith.constant 1.000000e+00 : f32
    %127 = vector.broadcast %cst_61 : f32 to vector<1x64xf32>
    %128 = arith.addf %127, %126 : vector<1x64xf32>
    %129 = arith.divf %127, %128 : vector<1x64xf32>
    %130 = arith.mulf %107, %129 : vector<1x64xf32>
    %131 = arith.mulf %124, %130 : vector<1x64xf32>
    %c0_i32 = arith.constant 0 : i32
    %132 = vector.broadcast %c0_i32 : i32 to vector<8x1xi32>
    %133 = arith.cmpi eq, %8, %132 : vector<8x1xi32>
    %134 = arith.extui %133 : vector<8x1xi1> to vector<8x1xi32>
    %135 = arith.sitofp %134 : vector<8x1xi32> to vector<8x1xf32>
    %136 = vector.broadcast %135 : vector<8x1xf32> to vector<8x64xf32>
    %137 = vector.broadcast %131 : vector<1x64xf32> to vector<8x64xf32>
    %138 = arith.mulf %136, %137 : vector<8x64xf32>
    %139 = arith.addf %104, %138 : vector<8x64xf32>
    %140 = vector.extract_strided_slice %98 {offsets = [1, 0], sizes = [1, 64], strides = [1, 1]} : vector<8x64xf32> to vector<1x64xf32>
    %141 = vector.extract_strided_slice %78 {offsets = [1, 0], sizes = [1, 64], strides = [1, 1]} : vector<8x64xf32> to vector<1x64xf32>
    %142 = vector.extract_strided_slice %39 {offsets = [1, 0], sizes = [1, 64], strides = [1, 1]} : vector<8x64xf32> to vector<1x64xf32>
    %143 = vector.extract_strided_slice %81 {offsets = [0, 1], sizes = [16, 1], strides = [1, 1]} : vector<32x8xf32> to vector<16x1xf32>
    %144 = vector.extract_strided_slice %81 {offsets = [16, 1], sizes = [16, 1], strides = [1, 1]} : vector<32x8xf32> to vector<16x1xf32>
    %145 = vector.broadcast %140 : vector<1x64xf32> to vector<16x64xf32>
    %146 = arith.mulf %145, %100 : vector<16x64xf32>
    %147 = math.exp %146 : vector<16x64xf32>
    %148 = arith.mulf %147, %118 : vector<16x64xf32>
    %149 = arith.mulf %140, %141 : vector<1x64xf32>
    %150 = vector.broadcast %143 : vector<16x1xf32> to vector<16x64xf32>
    %151 = vector.broadcast %149 : vector<1x64xf32> to vector<16x64xf32>
    %152 = arith.mulf %150, %151 : vector<16x64xf32>
    %153 = arith.addf %148, %152 : vector<16x64xf32>
    %154 = vector.broadcast %144 : vector<16x1xf32> to vector<16x64xf32>
    %155 = arith.mulf %154, %153 : vector<16x64xf32>
    %cst_62 = arith.constant dense<0.000000e+00> : vector<64xf32>
    %156 = vector.multi_reduction <add>, %155, %cst_62 [0] : vector<16x64xf32> to vector<64xf32>
    %157 = vector.shape_cast %156 : vector<64xf32> to vector<1x64xf32>
    %158 = arith.mulf %102, %141 : vector<1x64xf32>
    %159 = arith.addf %157, %158 : vector<1x64xf32>
    %160 = arith.negf %142 : vector<1x64xf32>
    %161 = math.exp %160 : vector<1x64xf32>
    %cst_63 = arith.constant 1.000000e+00 : f32
    %162 = vector.broadcast %cst_63 : f32 to vector<1x64xf32>
    %163 = arith.addf %162, %161 : vector<1x64xf32>
    %164 = arith.divf %162, %163 : vector<1x64xf32>
    %165 = arith.mulf %142, %164 : vector<1x64xf32>
    %166 = arith.mulf %159, %165 : vector<1x64xf32>
    %c1_i32 = arith.constant 1 : i32
    %167 = vector.broadcast %c1_i32 : i32 to vector<8x1xi32>
    %168 = arith.cmpi eq, %8, %167 : vector<8x1xi32>
    %169 = arith.extui %168 : vector<8x1xi1> to vector<8x1xi32>
    %170 = arith.sitofp %169 : vector<8x1xi32> to vector<8x1xf32>
    %171 = vector.broadcast %170 : vector<8x1xf32> to vector<8x64xf32>
    %172 = vector.broadcast %166 : vector<1x64xf32> to vector<8x64xf32>
    %173 = arith.mulf %171, %172 : vector<8x64xf32>
    %174 = arith.addf %139, %173 : vector<8x64xf32>
    %175 = vector.extract_strided_slice %98 {offsets = [2, 0], sizes = [1, 64], strides = [1, 1]} : vector<8x64xf32> to vector<1x64xf32>
    %176 = vector.extract_strided_slice %78 {offsets = [2, 0], sizes = [1, 64], strides = [1, 1]} : vector<8x64xf32> to vector<1x64xf32>
    %177 = vector.extract_strided_slice %39 {offsets = [2, 0], sizes = [1, 64], strides = [1, 1]} : vector<8x64xf32> to vector<1x64xf32>
    %178 = vector.extract_strided_slice %81 {offsets = [0, 2], sizes = [16, 1], strides = [1, 1]} : vector<32x8xf32> to vector<16x1xf32>
    %179 = vector.extract_strided_slice %81 {offsets = [16, 2], sizes = [16, 1], strides = [1, 1]} : vector<32x8xf32> to vector<16x1xf32>
    %180 = vector.broadcast %175 : vector<1x64xf32> to vector<16x64xf32>
    %181 = arith.mulf %180, %100 : vector<16x64xf32>
    %182 = math.exp %181 : vector<16x64xf32>
    %183 = arith.mulf %182, %153 : vector<16x64xf32>
    %184 = arith.mulf %175, %176 : vector<1x64xf32>
    %185 = vector.broadcast %178 : vector<16x1xf32> to vector<16x64xf32>
    %186 = vector.broadcast %184 : vector<1x64xf32> to vector<16x64xf32>
    %187 = arith.mulf %185, %186 : vector<16x64xf32>
    %188 = arith.addf %183, %187 : vector<16x64xf32>
    %189 = vector.broadcast %179 : vector<16x1xf32> to vector<16x64xf32>
    %190 = arith.mulf %189, %188 : vector<16x64xf32>
    %cst_64 = arith.constant dense<0.000000e+00> : vector<64xf32>
    %191 = vector.multi_reduction <add>, %190, %cst_64 [0] : vector<16x64xf32> to vector<64xf32>
    %192 = vector.shape_cast %191 : vector<64xf32> to vector<1x64xf32>
    %193 = arith.mulf %102, %176 : vector<1x64xf32>
    %194 = arith.addf %192, %193 : vector<1x64xf32>
    %195 = arith.negf %177 : vector<1x64xf32>
    %196 = math.exp %195 : vector<1x64xf32>
    %cst_65 = arith.constant 1.000000e+00 : f32
    %197 = vector.broadcast %cst_65 : f32 to vector<1x64xf32>
    %198 = arith.addf %197, %196 : vector<1x64xf32>
    %199 = arith.divf %197, %198 : vector<1x64xf32>
    %200 = arith.mulf %177, %199 : vector<1x64xf32>
    %201 = arith.mulf %194, %200 : vector<1x64xf32>
    %c2_i32 = arith.constant 2 : i32
    %202 = vector.broadcast %c2_i32 : i32 to vector<8x1xi32>
    %203 = arith.cmpi eq, %8, %202 : vector<8x1xi32>
    %204 = arith.extui %203 : vector<8x1xi1> to vector<8x1xi32>
    %205 = arith.sitofp %204 : vector<8x1xi32> to vector<8x1xf32>
    %206 = vector.broadcast %205 : vector<8x1xf32> to vector<8x64xf32>
    %207 = vector.broadcast %201 : vector<1x64xf32> to vector<8x64xf32>
    %208 = arith.mulf %206, %207 : vector<8x64xf32>
    %209 = arith.addf %174, %208 : vector<8x64xf32>
    %210 = vector.extract_strided_slice %98 {offsets = [3, 0], sizes = [1, 64], strides = [1, 1]} : vector<8x64xf32> to vector<1x64xf32>
    %211 = vector.extract_strided_slice %78 {offsets = [3, 0], sizes = [1, 64], strides = [1, 1]} : vector<8x64xf32> to vector<1x64xf32>
    %212 = vector.extract_strided_slice %39 {offsets = [3, 0], sizes = [1, 64], strides = [1, 1]} : vector<8x64xf32> to vector<1x64xf32>
    %213 = vector.extract_strided_slice %81 {offsets = [0, 3], sizes = [16, 1], strides = [1, 1]} : vector<32x8xf32> to vector<16x1xf32>
    %214 = vector.extract_strided_slice %81 {offsets = [16, 3], sizes = [16, 1], strides = [1, 1]} : vector<32x8xf32> to vector<16x1xf32>
    %215 = vector.broadcast %210 : vector<1x64xf32> to vector<16x64xf32>
    %216 = arith.mulf %215, %100 : vector<16x64xf32>
    %217 = math.exp %216 : vector<16x64xf32>
    %218 = arith.mulf %217, %188 : vector<16x64xf32>
    %219 = arith.mulf %210, %211 : vector<1x64xf32>
    %220 = vector.broadcast %213 : vector<16x1xf32> to vector<16x64xf32>
    %221 = vector.broadcast %219 : vector<1x64xf32> to vector<16x64xf32>
    %222 = arith.mulf %220, %221 : vector<16x64xf32>
    %223 = arith.addf %218, %222 : vector<16x64xf32>
    %224 = vector.broadcast %214 : vector<16x1xf32> to vector<16x64xf32>
    %225 = arith.mulf %224, %223 : vector<16x64xf32>
    %cst_66 = arith.constant dense<0.000000e+00> : vector<64xf32>
    %226 = vector.multi_reduction <add>, %225, %cst_66 [0] : vector<16x64xf32> to vector<64xf32>
    %227 = vector.shape_cast %226 : vector<64xf32> to vector<1x64xf32>
    %228 = arith.mulf %102, %211 : vector<1x64xf32>
    %229 = arith.addf %227, %228 : vector<1x64xf32>
    %230 = arith.negf %212 : vector<1x64xf32>
    %231 = math.exp %230 : vector<1x64xf32>
    %cst_67 = arith.constant 1.000000e+00 : f32
    %232 = vector.broadcast %cst_67 : f32 to vector<1x64xf32>
    %233 = arith.addf %232, %231 : vector<1x64xf32>
    %234 = arith.divf %232, %233 : vector<1x64xf32>
    %235 = arith.mulf %212, %234 : vector<1x64xf32>
    %236 = arith.mulf %229, %235 : vector<1x64xf32>
    %c3_i32 = arith.constant 3 : i32
    %237 = vector.broadcast %c3_i32 : i32 to vector<8x1xi32>
    %238 = arith.cmpi eq, %8, %237 : vector<8x1xi32>
    %239 = arith.extui %238 : vector<8x1xi1> to vector<8x1xi32>
    %240 = arith.sitofp %239 : vector<8x1xi32> to vector<8x1xf32>
    %241 = vector.broadcast %240 : vector<8x1xf32> to vector<8x64xf32>
    %242 = vector.broadcast %236 : vector<1x64xf32> to vector<8x64xf32>
    %243 = arith.mulf %241, %242 : vector<8x64xf32>
    %244 = arith.addf %209, %243 : vector<8x64xf32>
    %245 = vector.extract_strided_slice %98 {offsets = [4, 0], sizes = [1, 64], strides = [1, 1]} : vector<8x64xf32> to vector<1x64xf32>
    %246 = vector.extract_strided_slice %78 {offsets = [4, 0], sizes = [1, 64], strides = [1, 1]} : vector<8x64xf32> to vector<1x64xf32>
    %247 = vector.extract_strided_slice %39 {offsets = [4, 0], sizes = [1, 64], strides = [1, 1]} : vector<8x64xf32> to vector<1x64xf32>
    %248 = vector.extract_strided_slice %81 {offsets = [0, 4], sizes = [16, 1], strides = [1, 1]} : vector<32x8xf32> to vector<16x1xf32>
    %249 = vector.extract_strided_slice %81 {offsets = [16, 4], sizes = [16, 1], strides = [1, 1]} : vector<32x8xf32> to vector<16x1xf32>
    %250 = vector.broadcast %245 : vector<1x64xf32> to vector<16x64xf32>
    %251 = arith.mulf %250, %100 : vector<16x64xf32>
    %252 = math.exp %251 : vector<16x64xf32>
    %253 = arith.mulf %252, %223 : vector<16x64xf32>
    %254 = arith.mulf %245, %246 : vector<1x64xf32>
    %255 = vector.broadcast %248 : vector<16x1xf32> to vector<16x64xf32>
    %256 = vector.broadcast %254 : vector<1x64xf32> to vector<16x64xf32>
    %257 = arith.mulf %255, %256 : vector<16x64xf32>
    %258 = arith.addf %253, %257 : vector<16x64xf32>
    %259 = vector.broadcast %249 : vector<16x1xf32> to vector<16x64xf32>
    %260 = arith.mulf %259, %258 : vector<16x64xf32>
    %cst_68 = arith.constant dense<0.000000e+00> : vector<64xf32>
    %261 = vector.multi_reduction <add>, %260, %cst_68 [0] : vector<16x64xf32> to vector<64xf32>
    %262 = vector.shape_cast %261 : vector<64xf32> to vector<1x64xf32>
    %263 = arith.mulf %102, %246 : vector<1x64xf32>
    %264 = arith.addf %262, %263 : vector<1x64xf32>
    %265 = arith.negf %247 : vector<1x64xf32>
    %266 = math.exp %265 : vector<1x64xf32>
    %cst_69 = arith.constant 1.000000e+00 : f32
    %267 = vector.broadcast %cst_69 : f32 to vector<1x64xf32>
    %268 = arith.addf %267, %266 : vector<1x64xf32>
    %269 = arith.divf %267, %268 : vector<1x64xf32>
    %270 = arith.mulf %247, %269 : vector<1x64xf32>
    %271 = arith.mulf %264, %270 : vector<1x64xf32>
    %c4_i32 = arith.constant 4 : i32
    %272 = vector.broadcast %c4_i32 : i32 to vector<8x1xi32>
    %273 = arith.cmpi eq, %8, %272 : vector<8x1xi32>
    %274 = arith.extui %273 : vector<8x1xi1> to vector<8x1xi32>
    %275 = arith.sitofp %274 : vector<8x1xi32> to vector<8x1xf32>
    %276 = vector.broadcast %275 : vector<8x1xf32> to vector<8x64xf32>
    %277 = vector.broadcast %271 : vector<1x64xf32> to vector<8x64xf32>
    %278 = arith.mulf %276, %277 : vector<8x64xf32>
    %279 = arith.addf %244, %278 : vector<8x64xf32>
    %280 = vector.extract_strided_slice %98 {offsets = [5, 0], sizes = [1, 64], strides = [1, 1]} : vector<8x64xf32> to vector<1x64xf32>
    %281 = vector.extract_strided_slice %78 {offsets = [5, 0], sizes = [1, 64], strides = [1, 1]} : vector<8x64xf32> to vector<1x64xf32>
    %282 = vector.extract_strided_slice %39 {offsets = [5, 0], sizes = [1, 64], strides = [1, 1]} : vector<8x64xf32> to vector<1x64xf32>
    %283 = vector.extract_strided_slice %81 {offsets = [0, 5], sizes = [16, 1], strides = [1, 1]} : vector<32x8xf32> to vector<16x1xf32>
    %284 = vector.extract_strided_slice %81 {offsets = [16, 5], sizes = [16, 1], strides = [1, 1]} : vector<32x8xf32> to vector<16x1xf32>
    %285 = vector.broadcast %280 : vector<1x64xf32> to vector<16x64xf32>
    %286 = arith.mulf %285, %100 : vector<16x64xf32>
    %287 = math.exp %286 : vector<16x64xf32>
    %288 = arith.mulf %287, %258 : vector<16x64xf32>
    %289 = arith.mulf %280, %281 : vector<1x64xf32>
    %290 = vector.broadcast %283 : vector<16x1xf32> to vector<16x64xf32>
    %291 = vector.broadcast %289 : vector<1x64xf32> to vector<16x64xf32>
    %292 = arith.mulf %290, %291 : vector<16x64xf32>
    %293 = arith.addf %288, %292 : vector<16x64xf32>
    %294 = vector.broadcast %284 : vector<16x1xf32> to vector<16x64xf32>
    %295 = arith.mulf %294, %293 : vector<16x64xf32>
    %cst_70 = arith.constant dense<0.000000e+00> : vector<64xf32>
    %296 = vector.multi_reduction <add>, %295, %cst_70 [0] : vector<16x64xf32> to vector<64xf32>
    %297 = vector.shape_cast %296 : vector<64xf32> to vector<1x64xf32>
    %298 = arith.mulf %102, %281 : vector<1x64xf32>
    %299 = arith.addf %297, %298 : vector<1x64xf32>
    %300 = arith.negf %282 : vector<1x64xf32>
    %301 = math.exp %300 : vector<1x64xf32>
    %cst_71 = arith.constant 1.000000e+00 : f32
    %302 = vector.broadcast %cst_71 : f32 to vector<1x64xf32>
    %303 = arith.addf %302, %301 : vector<1x64xf32>
    %304 = arith.divf %302, %303 : vector<1x64xf32>
    %305 = arith.mulf %282, %304 : vector<1x64xf32>
    %306 = arith.mulf %299, %305 : vector<1x64xf32>
    %c5_i32 = arith.constant 5 : i32
    %307 = vector.broadcast %c5_i32 : i32 to vector<8x1xi32>
    %308 = arith.cmpi eq, %8, %307 : vector<8x1xi32>
    %309 = arith.extui %308 : vector<8x1xi1> to vector<8x1xi32>
    %310 = arith.sitofp %309 : vector<8x1xi32> to vector<8x1xf32>
    %311 = vector.broadcast %310 : vector<8x1xf32> to vector<8x64xf32>
    %312 = vector.broadcast %306 : vector<1x64xf32> to vector<8x64xf32>
    %313 = arith.mulf %311, %312 : vector<8x64xf32>
    %314 = arith.addf %279, %313 : vector<8x64xf32>
    %315 = vector.extract_strided_slice %98 {offsets = [6, 0], sizes = [1, 64], strides = [1, 1]} : vector<8x64xf32> to vector<1x64xf32>
    %316 = vector.extract_strided_slice %78 {offsets = [6, 0], sizes = [1, 64], strides = [1, 1]} : vector<8x64xf32> to vector<1x64xf32>
    %317 = vector.extract_strided_slice %39 {offsets = [6, 0], sizes = [1, 64], strides = [1, 1]} : vector<8x64xf32> to vector<1x64xf32>
    %318 = vector.extract_strided_slice %81 {offsets = [0, 6], sizes = [16, 1], strides = [1, 1]} : vector<32x8xf32> to vector<16x1xf32>
    %319 = vector.extract_strided_slice %81 {offsets = [16, 6], sizes = [16, 1], strides = [1, 1]} : vector<32x8xf32> to vector<16x1xf32>
    %320 = vector.broadcast %315 : vector<1x64xf32> to vector<16x64xf32>
    %321 = arith.mulf %320, %100 : vector<16x64xf32>
    %322 = math.exp %321 : vector<16x64xf32>
    %323 = arith.mulf %322, %293 : vector<16x64xf32>
    %324 = arith.mulf %315, %316 : vector<1x64xf32>
    %325 = vector.broadcast %318 : vector<16x1xf32> to vector<16x64xf32>
    %326 = vector.broadcast %324 : vector<1x64xf32> to vector<16x64xf32>
    %327 = arith.mulf %325, %326 : vector<16x64xf32>
    %328 = arith.addf %323, %327 : vector<16x64xf32>
    %329 = vector.broadcast %319 : vector<16x1xf32> to vector<16x64xf32>
    %330 = arith.mulf %329, %328 : vector<16x64xf32>
    %cst_72 = arith.constant dense<0.000000e+00> : vector<64xf32>
    %331 = vector.multi_reduction <add>, %330, %cst_72 [0] : vector<16x64xf32> to vector<64xf32>
    %332 = vector.shape_cast %331 : vector<64xf32> to vector<1x64xf32>
    %333 = arith.mulf %102, %316 : vector<1x64xf32>
    %334 = arith.addf %332, %333 : vector<1x64xf32>
    %335 = arith.negf %317 : vector<1x64xf32>
    %336 = math.exp %335 : vector<1x64xf32>
    %cst_73 = arith.constant 1.000000e+00 : f32
    %337 = vector.broadcast %cst_73 : f32 to vector<1x64xf32>
    %338 = arith.addf %337, %336 : vector<1x64xf32>
    %339 = arith.divf %337, %338 : vector<1x64xf32>
    %340 = arith.mulf %317, %339 : vector<1x64xf32>
    %341 = arith.mulf %334, %340 : vector<1x64xf32>
    %c6_i32 = arith.constant 6 : i32
    %342 = vector.broadcast %c6_i32 : i32 to vector<8x1xi32>
    %343 = arith.cmpi eq, %8, %342 : vector<8x1xi32>
    %344 = arith.extui %343 : vector<8x1xi1> to vector<8x1xi32>
    %345 = arith.sitofp %344 : vector<8x1xi32> to vector<8x1xf32>
    %346 = vector.broadcast %345 : vector<8x1xf32> to vector<8x64xf32>
    %347 = vector.broadcast %341 : vector<1x64xf32> to vector<8x64xf32>
    %348 = arith.mulf %346, %347 : vector<8x64xf32>
    %349 = arith.addf %314, %348 : vector<8x64xf32>
    %350 = vector.extract_strided_slice %98 {offsets = [7, 0], sizes = [1, 64], strides = [1, 1]} : vector<8x64xf32> to vector<1x64xf32>
    %351 = vector.extract_strided_slice %78 {offsets = [7, 0], sizes = [1, 64], strides = [1, 1]} : vector<8x64xf32> to vector<1x64xf32>
    %352 = vector.extract_strided_slice %39 {offsets = [7, 0], sizes = [1, 64], strides = [1, 1]} : vector<8x64xf32> to vector<1x64xf32>
    %353 = vector.extract_strided_slice %81 {offsets = [0, 7], sizes = [16, 1], strides = [1, 1]} : vector<32x8xf32> to vector<16x1xf32>
    %354 = vector.extract_strided_slice %81 {offsets = [16, 7], sizes = [16, 1], strides = [1, 1]} : vector<32x8xf32> to vector<16x1xf32>
    %355 = vector.broadcast %350 : vector<1x64xf32> to vector<16x64xf32>
    %356 = arith.mulf %355, %100 : vector<16x64xf32>
    %357 = math.exp %356 : vector<16x64xf32>
    %358 = arith.mulf %357, %328 : vector<16x64xf32>
    %359 = arith.mulf %350, %351 : vector<1x64xf32>
    %360 = vector.broadcast %353 : vector<16x1xf32> to vector<16x64xf32>
    %361 = vector.broadcast %359 : vector<1x64xf32> to vector<16x64xf32>
    %362 = arith.mulf %360, %361 : vector<16x64xf32>
    %363 = arith.addf %358, %362 : vector<16x64xf32>
    %364 = vector.broadcast %354 : vector<16x1xf32> to vector<16x64xf32>
    %365 = arith.mulf %364, %363 : vector<16x64xf32>
    %cst_74 = arith.constant dense<0.000000e+00> : vector<64xf32>
    %366 = vector.multi_reduction <add>, %365, %cst_74 [0] : vector<16x64xf32> to vector<64xf32>
    %367 = vector.shape_cast %366 : vector<64xf32> to vector<1x64xf32>
    %368 = arith.mulf %102, %351 : vector<1x64xf32>
    %369 = arith.addf %367, %368 : vector<1x64xf32>
    %370 = arith.negf %352 : vector<1x64xf32>
    %371 = math.exp %370 : vector<1x64xf32>
    %cst_75 = arith.constant 1.000000e+00 : f32
    %372 = vector.broadcast %cst_75 : f32 to vector<1x64xf32>
    %373 = arith.addf %372, %371 : vector<1x64xf32>
    %374 = arith.divf %372, %373 : vector<1x64xf32>
    %375 = arith.mulf %352, %374 : vector<1x64xf32>
    %376 = arith.mulf %369, %375 : vector<1x64xf32>
    %c7_i32 = arith.constant 7 : i32
    %377 = vector.broadcast %c7_i32 : i32 to vector<8x1xi32>
    %378 = arith.cmpi eq, %8, %377 : vector<8x1xi32>
    %379 = arith.extui %378 : vector<8x1xi1> to vector<8x1xi32>
    %380 = arith.sitofp %379 : vector<8x1xi32> to vector<8x1xf32>
    %381 = vector.broadcast %380 : vector<8x1xf32> to vector<8x64xf32>
    %382 = vector.broadcast %376 : vector<1x64xf32> to vector<8x64xf32>
    %383 = arith.mulf %381, %382 : vector<8x64xf32>
    %384 = arith.addf %349, %383 : vector<8x64xf32>
    %c0_76 = arith.constant 0 : index
    %c0_77 = arith.constant 0 : index
    %c0_78 = arith.constant 0 : index
    %385 = vector.load %arg13[%c0_76, %c0_77, %c0_78] : memref<2x64x32xf32, #tpu.memory_space<vmem>>, vector<1x64x32xf32>
    %386 = vector.shape_cast %385 : vector<1x64x32xf32> to vector<64x32xf32>
    %cst_79 = arith.constant dense<0.000000e+00> : vector<8x32xf32>
    %387 = tpu.matmul %384, %386, %cst_79 {dimension_numbers = #tpu.dot_dimension_numbers<[1], [0], [0], [1], [0, 0, 1, 1], [], []>} : vector<8x64xf32>, vector<64x32xf32>, vector<8x32xf32> -> vector<8x32xf32>
    %388 = arith.addf %387, %7 : vector<8x32xf32>
    %c1_80 = arith.constant 1 : index
    %c0_81 = arith.constant 0 : index
    %c0_82 = arith.constant 0 : index
    %389 = vector.load %arg3[%c1_80, %c0_81, %c0_82] : memref<2x1x32xf32, #tpu.memory_space<vmem>>, vector<1x1x32xf32>
    %390 = vector.shape_cast %389 : vector<1x1x32xf32> to vector<1x32xf32>
    %c1_83 = arith.constant 1 : index
    %c0_84 = arith.constant 0 : index
    %c0_85 = arith.constant 0 : index
    %391 = vector.load %arg4[%c1_83, %c0_84, %c0_85] : memref<2x1x32xf32, #tpu.memory_space<vmem>>, vector<1x1x32xf32>
    %392 = vector.shape_cast %391 : vector<1x1x32xf32> to vector<1x32xf32>
    %cst_86 = arith.constant dense<0.000000e+00> : vector<8xf32>
    %393 = vector.multi_reduction <add>, %388, %cst_86 [1] : vector<8x32xf32> to vector<8xf32>
    %394 = vector.shape_cast %393 : vector<8xf32> to vector<8x1xf32>
    %cst_87 = arith.constant 3.200000e+01 : f32
    %395 = vector.broadcast %cst_87 : f32 to vector<8x1xf32>
    %396 = arith.divf %394, %395 : vector<8x1xf32>
    %397 = vector.broadcast %396 : vector<8x1xf32> to vector<8x32xf32>
    %398 = arith.subf %388, %397 : vector<8x32xf32>
    %399 = arith.mulf %398, %398 : vector<8x32xf32>
    %cst_88 = arith.constant dense<0.000000e+00> : vector<8xf32>
    %400 = vector.multi_reduction <add>, %399, %cst_88 [1] : vector<8x32xf32> to vector<8xf32>
    %401 = vector.shape_cast %400 : vector<8xf32> to vector<8x1xf32>
    %cst_89 = arith.constant 3.200000e+01 : f32
    %402 = vector.broadcast %cst_89 : f32 to vector<8x1xf32>
    %403 = arith.divf %401, %402 : vector<8x1xf32>
    %404 = vector.broadcast %396 : vector<8x1xf32> to vector<8x32xf32>
    %405 = arith.subf %388, %404 : vector<8x32xf32>
    %cst_90 = arith.constant 9.99999974E-6 : f32
    %406 = vector.broadcast %cst_90 : f32 to vector<8x1xf32>
    %407 = arith.addf %403, %406 : vector<8x1xf32>
    %408 = math.rsqrt %407 : vector<8x1xf32>
    %409 = vector.broadcast %408 : vector<8x1xf32> to vector<8x32xf32>
    %410 = arith.mulf %405, %409 : vector<8x32xf32>
    %411 = vector.broadcast %390 : vector<1x32xf32> to vector<8x32xf32>
    %412 = arith.mulf %410, %411 : vector<8x32xf32>
    %413 = vector.broadcast %392 : vector<1x32xf32> to vector<8x32xf32>
    %414 = arith.addf %412, %413 : vector<8x32xf32>
    %c1_91 = arith.constant 1 : index
    %c0_92 = arith.constant 0 : index
    %c0_93 = arith.constant 0 : index
    %415 = vector.load %arg5[%c1_91, %c0_92, %c0_93] : memref<2x32x128xf32, #tpu.memory_space<vmem>>, vector<1x32x128xf32>
    %416 = vector.shape_cast %415 : vector<1x32x128xf32> to vector<32x128xf32>
    %cst_94 = arith.constant dense<0.000000e+00> : vector<8x128xf32>
    %417 = tpu.matmul %414, %416, %cst_94 {dimension_numbers = #tpu.dot_dimension_numbers<[1], [0], [0], [1], [0, 0, 1, 1], [], []>} : vector<8x32xf32>, vector<32x128xf32>, vector<8x128xf32> -> vector<8x128xf32>
    %418 = vector.extract_strided_slice %417 {offsets = [0, 0], sizes = [8, 64], strides = [1, 1]} : vector<8x128xf32> to vector<8x64xf32>
    %419 = vector.extract_strided_slice %417 {offsets = [0, 64], sizes = [8, 64], strides = [1, 1]} : vector<8x128xf32> to vector<8x64xf32>
    %c1_95 = arith.constant 1 : index
    %c0_96 = arith.constant 0 : index
    %c0_97 = arith.constant 0 : index
    %420 = vector.load %arg6[%c1_95, %c0_96, %c0_97] : memref<2x4x64xf32, #tpu.memory_space<vmem>>, vector<1x4x64xf32>
    %421 = vector.shape_cast %420 : vector<1x4x64xf32> to vector<4x64xf32>
    %c1_98 = arith.constant 1 : index
    %c0_99 = arith.constant 0 : index
    %c0_100 = arith.constant 0 : index
    %422 = vector.load %arg7[%c1_98, %c0_99, %c0_100] : memref<2x1x64xf32, #tpu.memory_space<vmem>>, vector<1x1x64xf32>
    %423 = vector.shape_cast %422 : vector<1x1x64xf32> to vector<1x64xf32>
    %c0_101 = arith.constant 0 : index
    %c0_102 = arith.constant 0 : index
    %c0_103 = arith.constant 0 : index
    %424 = vector.load %arg14[%c0_101, %c0_102, %c0_103] : memref<4x8x8xf32, #tpu.memory_space<vmem>>, vector<1x8x8xf32>
    %425 = vector.shape_cast %424 : vector<1x8x8xf32> to vector<8x8xf32>
    %cst_104 = arith.constant dense<0.000000e+00> : vector<8x64xf32>
    %426 = tpu.matmul %425, %418, %cst_104 {dimension_numbers = #tpu.dot_dimension_numbers<[1], [0], [0], [1], [0, 0, 1, 1], [], []>} : vector<8x8xf32>, vector<8x64xf32>, vector<8x64xf32> -> vector<8x64xf32>
    %427 = vector.extract_strided_slice %421 {offsets = [0, 0], sizes = [1, 64], strides = [1, 1]} : vector<4x64xf32> to vector<1x64xf32>
    %428 = vector.broadcast %427 : vector<1x64xf32> to vector<8x64xf32>
    %429 = arith.mulf %428, %426 : vector<8x64xf32>
    %430 = vector.broadcast %423 : vector<1x64xf32> to vector<8x64xf32>
    %431 = arith.addf %430, %429 : vector<8x64xf32>
    %c1_105 = arith.constant 1 : index
    %c0_106 = arith.constant 0 : index
    %c0_107 = arith.constant 0 : index
    %432 = vector.load %arg14[%c1_105, %c0_106, %c0_107] : memref<4x8x8xf32, #tpu.memory_space<vmem>>, vector<1x8x8xf32>
    %433 = vector.shape_cast %432 : vector<1x8x8xf32> to vector<8x8xf32>
    %cst_108 = arith.constant dense<0.000000e+00> : vector<8x64xf32>
    %434 = tpu.matmul %433, %418, %cst_108 {dimension_numbers = #tpu.dot_dimension_numbers<[1], [0], [0], [1], [0, 0, 1, 1], [], []>} : vector<8x8xf32>, vector<8x64xf32>, vector<8x64xf32> -> vector<8x64xf32>
    %435 = vector.extract_strided_slice %421 {offsets = [1, 0], sizes = [1, 64], strides = [1, 1]} : vector<4x64xf32> to vector<1x64xf32>
    %436 = vector.broadcast %435 : vector<1x64xf32> to vector<8x64xf32>
    %437 = arith.mulf %436, %434 : vector<8x64xf32>
    %438 = arith.addf %431, %437 : vector<8x64xf32>
    %c2_109 = arith.constant 2 : index
    %c0_110 = arith.constant 0 : index
    %c0_111 = arith.constant 0 : index
    %439 = vector.load %arg14[%c2_109, %c0_110, %c0_111] : memref<4x8x8xf32, #tpu.memory_space<vmem>>, vector<1x8x8xf32>
    %440 = vector.shape_cast %439 : vector<1x8x8xf32> to vector<8x8xf32>
    %cst_112 = arith.constant dense<0.000000e+00> : vector<8x64xf32>
    %441 = tpu.matmul %440, %418, %cst_112 {dimension_numbers = #tpu.dot_dimension_numbers<[1], [0], [0], [1], [0, 0, 1, 1], [], []>} : vector<8x8xf32>, vector<8x64xf32>, vector<8x64xf32> -> vector<8x64xf32>
    %442 = vector.extract_strided_slice %421 {offsets = [2, 0], sizes = [1, 64], strides = [1, 1]} : vector<4x64xf32> to vector<1x64xf32>
    %443 = vector.broadcast %442 : vector<1x64xf32> to vector<8x64xf32>
    %444 = arith.mulf %443, %441 : vector<8x64xf32>
    %445 = arith.addf %438, %444 : vector<8x64xf32>
    %c3_113 = arith.constant 3 : index
    %c0_114 = arith.constant 0 : index
    %c0_115 = arith.constant 0 : index
    %446 = vector.load %arg14[%c3_113, %c0_114, %c0_115] : memref<4x8x8xf32, #tpu.memory_space<vmem>>, vector<1x8x8xf32>
    %447 = vector.shape_cast %446 : vector<1x8x8xf32> to vector<8x8xf32>
    %cst_116 = arith.constant dense<0.000000e+00> : vector<8x64xf32>
    %448 = tpu.matmul %447, %418, %cst_116 {dimension_numbers = #tpu.dot_dimension_numbers<[1], [0], [0], [1], [0, 0, 1, 1], [], []>} : vector<8x8xf32>, vector<8x64xf32>, vector<8x64xf32> -> vector<8x64xf32>
    %449 = vector.extract_strided_slice %421 {offsets = [3, 0], sizes = [1, 64], strides = [1, 1]} : vector<4x64xf32> to vector<1x64xf32>
    %450 = vector.broadcast %449 : vector<1x64xf32> to vector<8x64xf32>
    %451 = arith.mulf %450, %448 : vector<8x64xf32>
    %452 = arith.addf %445, %451 : vector<8x64xf32>
    %453 = arith.negf %452 : vector<8x64xf32>
    %454 = math.exp %453 : vector<8x64xf32>
    %cst_117 = arith.constant 1.000000e+00 : f32
    %455 = vector.broadcast %cst_117 : f32 to vector<8x64xf32>
    %456 = arith.addf %455, %454 : vector<8x64xf32>
    %457 = arith.divf %455, %456 : vector<8x64xf32>
    %458 = arith.mulf %452, %457 : vector<8x64xf32>
    %c1_118 = arith.constant 1 : index
    %c0_119 = arith.constant 0 : index
    %c0_120 = arith.constant 0 : index
    %459 = vector.load %arg8[%c1_118, %c0_119, %c0_120] : memref<2x32x64xf32, #tpu.memory_space<vmem>>, vector<1x32x64xf32>
    %460 = vector.shape_cast %459 : vector<1x32x64xf32> to vector<32x64xf32>
    %cst_121 = arith.constant dense<0.000000e+00> : vector<32x8xf32>
    %461 = tpu.matmul %460, %458, %cst_121 {dimension_numbers = #tpu.dot_dimension_numbers<[1], [1], [0], [0], [0, 0, 1, 0], [], []>} : vector<32x64xf32>, vector<8x64xf32>, vector<32x8xf32> -> vector<32x8xf32>
    %c1_122 = arith.constant 1 : index
    %c0_123 = arith.constant 0 : index
    %c0_124 = arith.constant 0 : index
    %462 = vector.load %arg9[%c1_122, %c0_123, %c0_124] : memref<2x64x64xf32, #tpu.memory_space<vmem>>, vector<1x64x64xf32>
    %463 = vector.shape_cast %462 : vector<1x64x64xf32> to vector<64x64xf32>
    %cst_125 = arith.constant dense<0.000000e+00> : vector<8x64xf32>
    %464 = tpu.matmul %458, %463, %cst_125 {dimension_numbers = #tpu.dot_dimension_numbers<[1], [0], [0], [1], [0, 0, 1, 1], [], []>} : vector<8x64xf32>, vector<64x64xf32>, vector<8x64xf32> -> vector<8x64xf32>
    %c1_126 = arith.constant 1 : index
    %c0_127 = arith.constant 0 : index
    %c0_128 = arith.constant 0 : index
    %465 = vector.load %arg10[%c1_126, %c0_127, %c0_128] : memref<2x1x64xf32, #tpu.memory_space<vmem>>, vector<1x1x64xf32>
    %466 = vector.shape_cast %465 : vector<1x1x64xf32> to vector<1x64xf32>
    %467 = vector.broadcast %466 : vector<1x64xf32> to vector<8x64xf32>
    %468 = arith.addf %464, %467 : vector<8x64xf32>
    %cst_129 = arith.constant 0.000000e+00 : f32
    %469 = vector.broadcast %cst_129 : f32 to vector<8x64xf32>
    %470 = arith.maximumf %468, %469 : vector<8x64xf32>
    %471 = math.absf %468 : vector<8x64xf32>
    %cst_130 = arith.constant 0.000000e+00 : f32
    %472 = vector.broadcast %cst_130 : f32 to vector<8x64xf32>
    %473 = arith.subf %472, %471 : vector<8x64xf32>
    %474 = math.exp %473 : vector<8x64xf32>
    %cst_131 = arith.constant 1.000000e+00 : f32
    %475 = vector.broadcast %cst_131 : f32 to vector<8x64xf32>
    %476 = arith.addf %475, %474 : vector<8x64xf32>
    %477 = math.log %476 : vector<8x64xf32>
    %478 = arith.addf %470, %477 : vector<8x64xf32>
    %c1_132 = arith.constant 1 : index
    %c0_133 = arith.constant 0 : index
    %c0_134 = arith.constant 0 : index
    %479 = vector.load %arg11[%c1_132, %c0_133, %c0_134] : memref<2x16x64xf32, #tpu.memory_space<vmem>>, vector<1x16x64xf32>
    %480 = vector.shape_cast %479 : vector<1x16x64xf32> to vector<16x64xf32>
    %c1_135 = arith.constant 1 : index
    %c0_136 = arith.constant 0 : index
    %c0_137 = arith.constant 0 : index
    %481 = vector.load %arg12[%c1_135, %c0_136, %c0_137] : memref<2x1x64xf32, #tpu.memory_space<vmem>>, vector<1x1x64xf32>
    %482 = vector.shape_cast %481 : vector<1x1x64xf32> to vector<1x64xf32>
    %cst_138 = arith.constant 0.000000e+00 : f32
    %483 = vector.broadcast %cst_138 : f32 to vector<16x64xf32>
    %cst_139 = arith.constant 0.000000e+00 : f32
    %484 = vector.broadcast %cst_139 : f32 to vector<8x64xf32>
    %485 = vector.extract_strided_slice %478 {offsets = [0, 0], sizes = [1, 64], strides = [1, 1]} : vector<8x64xf32> to vector<1x64xf32>
    %486 = vector.extract_strided_slice %458 {offsets = [0, 0], sizes = [1, 64], strides = [1, 1]} : vector<8x64xf32> to vector<1x64xf32>
    %487 = vector.extract_strided_slice %419 {offsets = [0, 0], sizes = [1, 64], strides = [1, 1]} : vector<8x64xf32> to vector<1x64xf32>
    %488 = vector.extract_strided_slice %461 {offsets = [0, 0], sizes = [16, 1], strides = [1, 1]} : vector<32x8xf32> to vector<16x1xf32>
    %489 = vector.extract_strided_slice %461 {offsets = [16, 0], sizes = [16, 1], strides = [1, 1]} : vector<32x8xf32> to vector<16x1xf32>
    %490 = vector.broadcast %485 : vector<1x64xf32> to vector<16x64xf32>
    %491 = arith.mulf %490, %480 : vector<16x64xf32>
    %492 = math.exp %491 : vector<16x64xf32>
    %493 = arith.mulf %492, %483 : vector<16x64xf32>
    %494 = arith.mulf %485, %486 : vector<1x64xf32>
    %495 = vector.broadcast %488 : vector<16x1xf32> to vector<16x64xf32>
    %496 = vector.broadcast %494 : vector<1x64xf32> to vector<16x64xf32>
    %497 = arith.mulf %495, %496 : vector<16x64xf32>
    %498 = arith.addf %493, %497 : vector<16x64xf32>
    %499 = vector.broadcast %489 : vector<16x1xf32> to vector<16x64xf32>
    %500 = arith.mulf %499, %498 : vector<16x64xf32>
    %cst_140 = arith.constant dense<0.000000e+00> : vector<64xf32>
    %501 = vector.multi_reduction <add>, %500, %cst_140 [0] : vector<16x64xf32> to vector<64xf32>
    %502 = vector.shape_cast %501 : vector<64xf32> to vector<1x64xf32>
    %503 = arith.mulf %482, %486 : vector<1x64xf32>
    %504 = arith.addf %502, %503 : vector<1x64xf32>
    %505 = arith.negf %487 : vector<1x64xf32>
    %506 = math.exp %505 : vector<1x64xf32>
    %cst_141 = arith.constant 1.000000e+00 : f32
    %507 = vector.broadcast %cst_141 : f32 to vector<1x64xf32>
    %508 = arith.addf %507, %506 : vector<1x64xf32>
    %509 = arith.divf %507, %508 : vector<1x64xf32>
    %510 = arith.mulf %487, %509 : vector<1x64xf32>
    %511 = arith.mulf %504, %510 : vector<1x64xf32>
    %c0_i32_142 = arith.constant 0 : i32
    %512 = vector.broadcast %c0_i32_142 : i32 to vector<8x1xi32>
    %513 = arith.cmpi eq, %8, %512 : vector<8x1xi32>
    %514 = arith.extui %513 : vector<8x1xi1> to vector<8x1xi32>
    %515 = arith.sitofp %514 : vector<8x1xi32> to vector<8x1xf32>
    %516 = vector.broadcast %515 : vector<8x1xf32> to vector<8x64xf32>
    %517 = vector.broadcast %511 : vector<1x64xf32> to vector<8x64xf32>
    %518 = arith.mulf %516, %517 : vector<8x64xf32>
    %519 = arith.addf %484, %518 : vector<8x64xf32>
    %520 = vector.extract_strided_slice %478 {offsets = [1, 0], sizes = [1, 64], strides = [1, 1]} : vector<8x64xf32> to vector<1x64xf32>
    %521 = vector.extract_strided_slice %458 {offsets = [1, 0], sizes = [1, 64], strides = [1, 1]} : vector<8x64xf32> to vector<1x64xf32>
    %522 = vector.extract_strided_slice %419 {offsets = [1, 0], sizes = [1, 64], strides = [1, 1]} : vector<8x64xf32> to vector<1x64xf32>
    %523 = vector.extract_strided_slice %461 {offsets = [0, 1], sizes = [16, 1], strides = [1, 1]} : vector<32x8xf32> to vector<16x1xf32>
    %524 = vector.extract_strided_slice %461 {offsets = [16, 1], sizes = [16, 1], strides = [1, 1]} : vector<32x8xf32> to vector<16x1xf32>
    %525 = vector.broadcast %520 : vector<1x64xf32> to vector<16x64xf32>
    %526 = arith.mulf %525, %480 : vector<16x64xf32>
    %527 = math.exp %526 : vector<16x64xf32>
    %528 = arith.mulf %527, %498 : vector<16x64xf32>
    %529 = arith.mulf %520, %521 : vector<1x64xf32>
    %530 = vector.broadcast %523 : vector<16x1xf32> to vector<16x64xf32>
    %531 = vector.broadcast %529 : vector<1x64xf32> to vector<16x64xf32>
    %532 = arith.mulf %530, %531 : vector<16x64xf32>
    %533 = arith.addf %528, %532 : vector<16x64xf32>
    %534 = vector.broadcast %524 : vector<16x1xf32> to vector<16x64xf32>
    %535 = arith.mulf %534, %533 : vector<16x64xf32>
    %cst_143 = arith.constant dense<0.000000e+00> : vector<64xf32>
    %536 = vector.multi_reduction <add>, %535, %cst_143 [0] : vector<16x64xf32> to vector<64xf32>
    %537 = vector.shape_cast %536 : vector<64xf32> to vector<1x64xf32>
    %538 = arith.mulf %482, %521 : vector<1x64xf32>
    %539 = arith.addf %537, %538 : vector<1x64xf32>
    %540 = arith.negf %522 : vector<1x64xf32>
    %541 = math.exp %540 : vector<1x64xf32>
    %cst_144 = arith.constant 1.000000e+00 : f32
    %542 = vector.broadcast %cst_144 : f32 to vector<1x64xf32>
    %543 = arith.addf %542, %541 : vector<1x64xf32>
    %544 = arith.divf %542, %543 : vector<1x64xf32>
    %545 = arith.mulf %522, %544 : vector<1x64xf32>
    %546 = arith.mulf %539, %545 : vector<1x64xf32>
    %c1_i32_145 = arith.constant 1 : i32
    %547 = vector.broadcast %c1_i32_145 : i32 to vector<8x1xi32>
    %548 = arith.cmpi eq, %8, %547 : vector<8x1xi32>
    %549 = arith.extui %548 : vector<8x1xi1> to vector<8x1xi32>
    %550 = arith.sitofp %549 : vector<8x1xi32> to vector<8x1xf32>
    %551 = vector.broadcast %550 : vector<8x1xf32> to vector<8x64xf32>
    %552 = vector.broadcast %546 : vector<1x64xf32> to vector<8x64xf32>
    %553 = arith.mulf %551, %552 : vector<8x64xf32>
    %554 = arith.addf %519, %553 : vector<8x64xf32>
    %555 = vector.extract_strided_slice %478 {offsets = [2, 0], sizes = [1, 64], strides = [1, 1]} : vector<8x64xf32> to vector<1x64xf32>
    %556 = vector.extract_strided_slice %458 {offsets = [2, 0], sizes = [1, 64], strides = [1, 1]} : vector<8x64xf32> to vector<1x64xf32>
    %557 = vector.extract_strided_slice %419 {offsets = [2, 0], sizes = [1, 64], strides = [1, 1]} : vector<8x64xf32> to vector<1x64xf32>
    %558 = vector.extract_strided_slice %461 {offsets = [0, 2], sizes = [16, 1], strides = [1, 1]} : vector<32x8xf32> to vector<16x1xf32>
    %559 = vector.extract_strided_slice %461 {offsets = [16, 2], sizes = [16, 1], strides = [1, 1]} : vector<32x8xf32> to vector<16x1xf32>
    %560 = vector.broadcast %555 : vector<1x64xf32> to vector<16x64xf32>
    %561 = arith.mulf %560, %480 : vector<16x64xf32>
    %562 = math.exp %561 : vector<16x64xf32>
    %563 = arith.mulf %562, %533 : vector<16x64xf32>
    %564 = arith.mulf %555, %556 : vector<1x64xf32>
    %565 = vector.broadcast %558 : vector<16x1xf32> to vector<16x64xf32>
    %566 = vector.broadcast %564 : vector<1x64xf32> to vector<16x64xf32>
    %567 = arith.mulf %565, %566 : vector<16x64xf32>
    %568 = arith.addf %563, %567 : vector<16x64xf32>
    %569 = vector.broadcast %559 : vector<16x1xf32> to vector<16x64xf32>
    %570 = arith.mulf %569, %568 : vector<16x64xf32>
    %cst_146 = arith.constant dense<0.000000e+00> : vector<64xf32>
    %571 = vector.multi_reduction <add>, %570, %cst_146 [0] : vector<16x64xf32> to vector<64xf32>
    %572 = vector.shape_cast %571 : vector<64xf32> to vector<1x64xf32>
    %573 = arith.mulf %482, %556 : vector<1x64xf32>
    %574 = arith.addf %572, %573 : vector<1x64xf32>
    %575 = arith.negf %557 : vector<1x64xf32>
    %576 = math.exp %575 : vector<1x64xf32>
    %cst_147 = arith.constant 1.000000e+00 : f32
    %577 = vector.broadcast %cst_147 : f32 to vector<1x64xf32>
    %578 = arith.addf %577, %576 : vector<1x64xf32>
    %579 = arith.divf %577, %578 : vector<1x64xf32>
    %580 = arith.mulf %557, %579 : vector<1x64xf32>
    %581 = arith.mulf %574, %580 : vector<1x64xf32>
    %c2_i32_148 = arith.constant 2 : i32
    %582 = vector.broadcast %c2_i32_148 : i32 to vector<8x1xi32>
    %583 = arith.cmpi eq, %8, %582 : vector<8x1xi32>
    %584 = arith.extui %583 : vector<8x1xi1> to vector<8x1xi32>
    %585 = arith.sitofp %584 : vector<8x1xi32> to vector<8x1xf32>
    %586 = vector.broadcast %585 : vector<8x1xf32> to vector<8x64xf32>
    %587 = vector.broadcast %581 : vector<1x64xf32> to vector<8x64xf32>
    %588 = arith.mulf %586, %587 : vector<8x64xf32>
    %589 = arith.addf %554, %588 : vector<8x64xf32>
    %590 = vector.extract_strided_slice %478 {offsets = [3, 0], sizes = [1, 64], strides = [1, 1]} : vector<8x64xf32> to vector<1x64xf32>
    %591 = vector.extract_strided_slice %458 {offsets = [3, 0], sizes = [1, 64], strides = [1, 1]} : vector<8x64xf32> to vector<1x64xf32>
    %592 = vector.extract_strided_slice %419 {offsets = [3, 0], sizes = [1, 64], strides = [1, 1]} : vector<8x64xf32> to vector<1x64xf32>
    %593 = vector.extract_strided_slice %461 {offsets = [0, 3], sizes = [16, 1], strides = [1, 1]} : vector<32x8xf32> to vector<16x1xf32>
    %594 = vector.extract_strided_slice %461 {offsets = [16, 3], sizes = [16, 1], strides = [1, 1]} : vector<32x8xf32> to vector<16x1xf32>
    %595 = vector.broadcast %590 : vector<1x64xf32> to vector<16x64xf32>
    %596 = arith.mulf %595, %480 : vector<16x64xf32>
    %597 = math.exp %596 : vector<16x64xf32>
    %598 = arith.mulf %597, %568 : vector<16x64xf32>
    %599 = arith.mulf %590, %591 : vector<1x64xf32>
    %600 = vector.broadcast %593 : vector<16x1xf32> to vector<16x64xf32>
    %601 = vector.broadcast %599 : vector<1x64xf32> to vector<16x64xf32>
    %602 = arith.mulf %600, %601 : vector<16x64xf32>
    %603 = arith.addf %598, %602 : vector<16x64xf32>
    %604 = vector.broadcast %594 : vector<16x1xf32> to vector<16x64xf32>
    %605 = arith.mulf %604, %603 : vector<16x64xf32>
    %cst_149 = arith.constant dense<0.000000e+00> : vector<64xf32>
    %606 = vector.multi_reduction <add>, %605, %cst_149 [0] : vector<16x64xf32> to vector<64xf32>
    %607 = vector.shape_cast %606 : vector<64xf32> to vector<1x64xf32>
    %608 = arith.mulf %482, %591 : vector<1x64xf32>
    %609 = arith.addf %607, %608 : vector<1x64xf32>
    %610 = arith.negf %592 : vector<1x64xf32>
    %611 = math.exp %610 : vector<1x64xf32>
    %cst_150 = arith.constant 1.000000e+00 : f32
    %612 = vector.broadcast %cst_150 : f32 to vector<1x64xf32>
    %613 = arith.addf %612, %611 : vector<1x64xf32>
    %614 = arith.divf %612, %613 : vector<1x64xf32>
    %615 = arith.mulf %592, %614 : vector<1x64xf32>
    %616 = arith.mulf %609, %615 : vector<1x64xf32>
    %c3_i32_151 = arith.constant 3 : i32
    %617 = vector.broadcast %c3_i32_151 : i32 to vector<8x1xi32>
    %618 = arith.cmpi eq, %8, %617 : vector<8x1xi32>
    %619 = arith.extui %618 : vector<8x1xi1> to vector<8x1xi32>
    %620 = arith.sitofp %619 : vector<8x1xi32> to vector<8x1xf32>
    %621 = vector.broadcast %620 : vector<8x1xf32> to vector<8x64xf32>
    %622 = vector.broadcast %616 : vector<1x64xf32> to vector<8x64xf32>
    %623 = arith.mulf %621, %622 : vector<8x64xf32>
    %624 = arith.addf %589, %623 : vector<8x64xf32>
    %625 = vector.extract_strided_slice %478 {offsets = [4, 0], sizes = [1, 64], strides = [1, 1]} : vector<8x64xf32> to vector<1x64xf32>
    %626 = vector.extract_strided_slice %458 {offsets = [4, 0], sizes = [1, 64], strides = [1, 1]} : vector<8x64xf32> to vector<1x64xf32>
    %627 = vector.extract_strided_slice %419 {offsets = [4, 0], sizes = [1, 64], strides = [1, 1]} : vector<8x64xf32> to vector<1x64xf32>
    %628 = vector.extract_strided_slice %461 {offsets = [0, 4], sizes = [16, 1], strides = [1, 1]} : vector<32x8xf32> to vector<16x1xf32>
    %629 = vector.extract_strided_slice %461 {offsets = [16, 4], sizes = [16, 1], strides = [1, 1]} : vector<32x8xf32> to vector<16x1xf32>
    %630 = vector.broadcast %625 : vector<1x64xf32> to vector<16x64xf32>
    %631 = arith.mulf %630, %480 : vector<16x64xf32>
    %632 = math.exp %631 : vector<16x64xf32>
    %633 = arith.mulf %632, %603 : vector<16x64xf32>
    %634 = arith.mulf %625, %626 : vector<1x64xf32>
    %635 = vector.broadcast %628 : vector<16x1xf32> to vector<16x64xf32>
    %636 = vector.broadcast %634 : vector<1x64xf32> to vector<16x64xf32>
    %637 = arith.mulf %635, %636 : vector<16x64xf32>
    %638 = arith.addf %633, %637 : vector<16x64xf32>
    %639 = vector.broadcast %629 : vector<16x1xf32> to vector<16x64xf32>
    %640 = arith.mulf %639, %638 : vector<16x64xf32>
    %cst_152 = arith.constant dense<0.000000e+00> : vector<64xf32>
    %641 = vector.multi_reduction <add>, %640, %cst_152 [0] : vector<16x64xf32> to vector<64xf32>
    %642 = vector.shape_cast %641 : vector<64xf32> to vector<1x64xf32>
    %643 = arith.mulf %482, %626 : vector<1x64xf32>
    %644 = arith.addf %642, %643 : vector<1x64xf32>
    %645 = arith.negf %627 : vector<1x64xf32>
    %646 = math.exp %645 : vector<1x64xf32>
    %cst_153 = arith.constant 1.000000e+00 : f32
    %647 = vector.broadcast %cst_153 : f32 to vector<1x64xf32>
    %648 = arith.addf %647, %646 : vector<1x64xf32>
    %649 = arith.divf %647, %648 : vector<1x64xf32>
    %650 = arith.mulf %627, %649 : vector<1x64xf32>
    %651 = arith.mulf %644, %650 : vector<1x64xf32>
    %c4_i32_154 = arith.constant 4 : i32
    %652 = vector.broadcast %c4_i32_154 : i32 to vector<8x1xi32>
    %653 = arith.cmpi eq, %8, %652 : vector<8x1xi32>
    %654 = arith.extui %653 : vector<8x1xi1> to vector<8x1xi32>
    %655 = arith.sitofp %654 : vector<8x1xi32> to vector<8x1xf32>
    %656 = vector.broadcast %655 : vector<8x1xf32> to vector<8x64xf32>
    %657 = vector.broadcast %651 : vector<1x64xf32> to vector<8x64xf32>
    %658 = arith.mulf %656, %657 : vector<8x64xf32>
    %659 = arith.addf %624, %658 : vector<8x64xf32>
    %660 = vector.extract_strided_slice %478 {offsets = [5, 0], sizes = [1, 64], strides = [1, 1]} : vector<8x64xf32> to vector<1x64xf32>
    %661 = vector.extract_strided_slice %458 {offsets = [5, 0], sizes = [1, 64], strides = [1, 1]} : vector<8x64xf32> to vector<1x64xf32>
    %662 = vector.extract_strided_slice %419 {offsets = [5, 0], sizes = [1, 64], strides = [1, 1]} : vector<8x64xf32> to vector<1x64xf32>
    %663 = vector.extract_strided_slice %461 {offsets = [0, 5], sizes = [16, 1], strides = [1, 1]} : vector<32x8xf32> to vector<16x1xf32>
    %664 = vector.extract_strided_slice %461 {offsets = [16, 5], sizes = [16, 1], strides = [1, 1]} : vector<32x8xf32> to vector<16x1xf32>
    %665 = vector.broadcast %660 : vector<1x64xf32> to vector<16x64xf32>
    %666 = arith.mulf %665, %480 : vector<16x64xf32>
    %667 = math.exp %666 : vector<16x64xf32>
    %668 = arith.mulf %667, %638 : vector<16x64xf32>
    %669 = arith.mulf %660, %661 : vector<1x64xf32>
    %670 = vector.broadcast %663 : vector<16x1xf32> to vector<16x64xf32>
    %671 = vector.broadcast %669 : vector<1x64xf32> to vector<16x64xf32>
    %672 = arith.mulf %670, %671 : vector<16x64xf32>
    %673 = arith.addf %668, %672 : vector<16x64xf32>
    %674 = vector.broadcast %664 : vector<16x1xf32> to vector<16x64xf32>
    %675 = arith.mulf %674, %673 : vector<16x64xf32>
    %cst_155 = arith.constant dense<0.000000e+00> : vector<64xf32>
    %676 = vector.multi_reduction <add>, %675, %cst_155 [0] : vector<16x64xf32> to vector<64xf32>
    %677 = vector.shape_cast %676 : vector<64xf32> to vector<1x64xf32>
    %678 = arith.mulf %482, %661 : vector<1x64xf32>
    %679 = arith.addf %677, %678 : vector<1x64xf32>
    %680 = arith.negf %662 : vector<1x64xf32>
    %681 = math.exp %680 : vector<1x64xf32>
    %cst_156 = arith.constant 1.000000e+00 : f32
    %682 = vector.broadcast %cst_156 : f32 to vector<1x64xf32>
    %683 = arith.addf %682, %681 : vector<1x64xf32>
    %684 = arith.divf %682, %683 : vector<1x64xf32>
    %685 = arith.mulf %662, %684 : vector<1x64xf32>
    %686 = arith.mulf %679, %685 : vector<1x64xf32>
    %c5_i32_157 = arith.constant 5 : i32
    %687 = vector.broadcast %c5_i32_157 : i32 to vector<8x1xi32>
    %688 = arith.cmpi eq, %8, %687 : vector<8x1xi32>
    %689 = arith.extui %688 : vector<8x1xi1> to vector<8x1xi32>
    %690 = arith.sitofp %689 : vector<8x1xi32> to vector<8x1xf32>
    %691 = vector.broadcast %690 : vector<8x1xf32> to vector<8x64xf32>
    %692 = vector.broadcast %686 : vector<1x64xf32> to vector<8x64xf32>
    %693 = arith.mulf %691, %692 : vector<8x64xf32>
    %694 = arith.addf %659, %693 : vector<8x64xf32>
    %695 = vector.extract_strided_slice %478 {offsets = [6, 0], sizes = [1, 64], strides = [1, 1]} : vector<8x64xf32> to vector<1x64xf32>
    %696 = vector.extract_strided_slice %458 {offsets = [6, 0], sizes = [1, 64], strides = [1, 1]} : vector<8x64xf32> to vector<1x64xf32>
    %697 = vector.extract_strided_slice %419 {offsets = [6, 0], sizes = [1, 64], strides = [1, 1]} : vector<8x64xf32> to vector<1x64xf32>
    %698 = vector.extract_strided_slice %461 {offsets = [0, 6], sizes = [16, 1], strides = [1, 1]} : vector<32x8xf32> to vector<16x1xf32>
    %699 = vector.extract_strided_slice %461 {offsets = [16, 6], sizes = [16, 1], strides = [1, 1]} : vector<32x8xf32> to vector<16x1xf32>
    %700 = vector.broadcast %695 : vector<1x64xf32> to vector<16x64xf32>
    %701 = arith.mulf %700, %480 : vector<16x64xf32>
    %702 = math.exp %701 : vector<16x64xf32>
    %703 = arith.mulf %702, %673 : vector<16x64xf32>
    %704 = arith.mulf %695, %696 : vector<1x64xf32>
    %705 = vector.broadcast %698 : vector<16x1xf32> to vector<16x64xf32>
    %706 = vector.broadcast %704 : vector<1x64xf32> to vector<16x64xf32>
    %707 = arith.mulf %705, %706 : vector<16x64xf32>
    %708 = arith.addf %703, %707 : vector<16x64xf32>
    %709 = vector.broadcast %699 : vector<16x1xf32> to vector<16x64xf32>
    %710 = arith.mulf %709, %708 : vector<16x64xf32>
    %cst_158 = arith.constant dense<0.000000e+00> : vector<64xf32>
    %711 = vector.multi_reduction <add>, %710, %cst_158 [0] : vector<16x64xf32> to vector<64xf32>
    %712 = vector.shape_cast %711 : vector<64xf32> to vector<1x64xf32>
    %713 = arith.mulf %482, %696 : vector<1x64xf32>
    %714 = arith.addf %712, %713 : vector<1x64xf32>
    %715 = arith.negf %697 : vector<1x64xf32>
    %716 = math.exp %715 : vector<1x64xf32>
    %cst_159 = arith.constant 1.000000e+00 : f32
    %717 = vector.broadcast %cst_159 : f32 to vector<1x64xf32>
    %718 = arith.addf %717, %716 : vector<1x64xf32>
    %719 = arith.divf %717, %718 : vector<1x64xf32>
    %720 = arith.mulf %697, %719 : vector<1x64xf32>
    %721 = arith.mulf %714, %720 : vector<1x64xf32>
    %c6_i32_160 = arith.constant 6 : i32
    %722 = vector.broadcast %c6_i32_160 : i32 to vector<8x1xi32>
    %723 = arith.cmpi eq, %8, %722 : vector<8x1xi32>
    %724 = arith.extui %723 : vector<8x1xi1> to vector<8x1xi32>
    %725 = arith.sitofp %724 : vector<8x1xi32> to vector<8x1xf32>
    %726 = vector.broadcast %725 : vector<8x1xf32> to vector<8x64xf32>
    %727 = vector.broadcast %721 : vector<1x64xf32> to vector<8x64xf32>
    %728 = arith.mulf %726, %727 : vector<8x64xf32>
    %729 = arith.addf %694, %728 : vector<8x64xf32>
    %730 = vector.extract_strided_slice %478 {offsets = [7, 0], sizes = [1, 64], strides = [1, 1]} : vector<8x64xf32> to vector<1x64xf32>
    %731 = vector.extract_strided_slice %458 {offsets = [7, 0], sizes = [1, 64], strides = [1, 1]} : vector<8x64xf32> to vector<1x64xf32>
    %732 = vector.extract_strided_slice %419 {offsets = [7, 0], sizes = [1, 64], strides = [1, 1]} : vector<8x64xf32> to vector<1x64xf32>
    %733 = vector.extract_strided_slice %461 {offsets = [0, 7], sizes = [16, 1], strides = [1, 1]} : vector<32x8xf32> to vector<16x1xf32>
    %734 = vector.extract_strided_slice %461 {offsets = [16, 7], sizes = [16, 1], strides = [1, 1]} : vector<32x8xf32> to vector<16x1xf32>
    %735 = vector.broadcast %730 : vector<1x64xf32> to vector<16x64xf32>
    %736 = arith.mulf %735, %480 : vector<16x64xf32>
    %737 = math.exp %736 : vector<16x64xf32>
    %738 = arith.mulf %737, %708 : vector<16x64xf32>
    %739 = arith.mulf %730, %731 : vector<1x64xf32>
    %740 = vector.broadcast %733 : vector<16x1xf32> to vector<16x64xf32>
    %741 = vector.broadcast %739 : vector<1x64xf32> to vector<16x64xf32>
    %742 = arith.mulf %740, %741 : vector<16x64xf32>
    %743 = arith.addf %738, %742 : vector<16x64xf32>
    %744 = vector.broadcast %734 : vector<16x1xf32> to vector<16x64xf32>
    %745 = arith.mulf %744, %743 : vector<16x64xf32>
    %cst_161 = arith.constant dense<0.000000e+00> : vector<64xf32>
    %746 = vector.multi_reduction <add>, %745, %cst_161 [0] : vector<16x64xf32> to vector<64xf32>
    %747 = vector.shape_cast %746 : vector<64xf32> to vector<1x64xf32>
    %748 = arith.mulf %482, %731 : vector<1x64xf32>
    %749 = arith.addf %747, %748 : vector<1x64xf32>
    %750 = arith.negf %732 : vector<1x64xf32>
    %751 = math.exp %750 : vector<1x64xf32>
    %cst_162 = arith.constant 1.000000e+00 : f32
    %752 = vector.broadcast %cst_162 : f32 to vector<1x64xf32>
    %753 = arith.addf %752, %751 : vector<1x64xf32>
    %754 = arith.divf %752, %753 : vector<1x64xf32>
    %755 = arith.mulf %732, %754 : vector<1x64xf32>
    %756 = arith.mulf %749, %755 : vector<1x64xf32>
    %c7_i32_163 = arith.constant 7 : i32
    %757 = vector.broadcast %c7_i32_163 : i32 to vector<8x1xi32>
    %758 = arith.cmpi eq, %8, %757 : vector<8x1xi32>
    %759 = arith.extui %758 : vector<8x1xi1> to vector<8x1xi32>
    %760 = arith.sitofp %759 : vector<8x1xi32> to vector<8x1xf32>
    %761 = vector.broadcast %760 : vector<8x1xf32> to vector<8x64xf32>
    %762 = vector.broadcast %756 : vector<1x64xf32> to vector<8x64xf32>
    %763 = arith.mulf %761, %762 : vector<8x64xf32>
    %764 = arith.addf %729, %763 : vector<8x64xf32>
    %c1_164 = arith.constant 1 : index
    %c0_165 = arith.constant 0 : index
    %c0_166 = arith.constant 0 : index
    %765 = vector.load %arg13[%c1_164, %c0_165, %c0_166] : memref<2x64x32xf32, #tpu.memory_space<vmem>>, vector<1x64x32xf32>
    %766 = vector.shape_cast %765 : vector<1x64x32xf32> to vector<64x32xf32>
    %cst_167 = arith.constant dense<0.000000e+00> : vector<8x32xf32>
    %767 = tpu.matmul %764, %766, %cst_167 {dimension_numbers = #tpu.dot_dimension_numbers<[1], [0], [0], [1], [0, 0, 1, 1], [], []>} : vector<8x64xf32>, vector<64x32xf32>, vector<8x32xf32> -> vector<8x32xf32>
    %768 = arith.addf %767, %388 : vector<8x32xf32>
    %c0_168 = arith.constant 0 : index
    %c0_169 = arith.constant 0 : index
    %769 = vector.load %arg15[%c0_168, %c0_169] : memref<1x32xf32, #tpu.memory_space<vmem>>, vector<1x32xf32>
    %c0_170 = arith.constant 0 : index
    %c0_171 = arith.constant 0 : index
    %770 = vector.load %arg16[%c0_170, %c0_171] : memref<1x32xf32, #tpu.memory_space<vmem>>, vector<1x32xf32>
    %cst_172 = arith.constant dense<0.000000e+00> : vector<8xf32>
    %771 = vector.multi_reduction <add>, %768, %cst_172 [1] : vector<8x32xf32> to vector<8xf32>
    %772 = vector.shape_cast %771 : vector<8xf32> to vector<8x1xf32>
    %cst_173 = arith.constant 3.200000e+01 : f32
    %773 = vector.broadcast %cst_173 : f32 to vector<8x1xf32>
    %774 = arith.divf %772, %773 : vector<8x1xf32>
    %775 = vector.broadcast %774 : vector<8x1xf32> to vector<8x32xf32>
    %776 = arith.subf %768, %775 : vector<8x32xf32>
    %777 = arith.mulf %776, %776 : vector<8x32xf32>
    %cst_174 = arith.constant dense<0.000000e+00> : vector<8xf32>
    %778 = vector.multi_reduction <add>, %777, %cst_174 [1] : vector<8x32xf32> to vector<8xf32>
    %779 = vector.shape_cast %778 : vector<8xf32> to vector<8x1xf32>
    %cst_175 = arith.constant 3.200000e+01 : f32
    %780 = vector.broadcast %cst_175 : f32 to vector<8x1xf32>
    %781 = arith.divf %779, %780 : vector<8x1xf32>
    %782 = vector.broadcast %774 : vector<8x1xf32> to vector<8x32xf32>
    %783 = arith.subf %768, %782 : vector<8x32xf32>
    %cst_176 = arith.constant 9.99999974E-6 : f32
    %784 = vector.broadcast %cst_176 : f32 to vector<8x1xf32>
    %785 = arith.addf %781, %784 : vector<8x1xf32>
    %786 = math.rsqrt %785 : vector<8x1xf32>
    %787 = vector.broadcast %786 : vector<8x1xf32> to vector<8x32xf32>
    %788 = arith.mulf %783, %787 : vector<8x32xf32>
    %789 = vector.broadcast %769 : vector<1x32xf32> to vector<8x32xf32>
    %790 = arith.mulf %788, %789 : vector<8x32xf32>
    %791 = vector.broadcast %770 : vector<1x32xf32> to vector<8x32xf32>
    %792 = arith.addf %790, %791 : vector<8x32xf32>
    %c0_177 = arith.constant 0 : index
    %c0_178 = arith.constant 0 : index
    %793 = vector.load %arg17[%c0_177, %c0_178] : memref<8x32xf32, #tpu.memory_space<vmem>>, vector<8x32xf32>
    tpu.vector_store %arg17[%c0_177, %c0_178], %792 {strides = array<i32>} : memref<8x32xf32, #tpu.memory_space<vmem>>, vector<8x32xf32>,
    return
  }
  func.func @transform_0(%arg0: i32) -> (i32, i32) {
    %c0_i32 = arith.constant 0 : i32
    %c0_i32_0 = arith.constant 0 : i32
    return %arg0, %c0_i32 : i32, i32
  }
  func.func @transform_1(%arg0: i32) -> (i32, i32) {
    %c0_i32 = arith.constant 0 : i32
    %c0_i32_0 = arith.constant 0 : i32
    %c0_i32_1 = arith.constant 0 : i32
    return %c0_i32, %c0_i32_0 : i32, i32
  }
  func.func @transform_2(%arg0: i32) -> (i32, i32, i32) {
    %c0_i32 = arith.constant 0 : i32
    %c0_i32_0 = arith.constant 0 : i32
    %c0_i32_1 = arith.constant 0 : i32
    %c0_i32_2 = arith.constant 0 : i32
    return %c0_i32, %c0_i32_0, %c0_i32_1 : i32, i32, i32
  }
  func.func @transform_3(%arg0: i32) -> (i32, i32, i32) {
    %c0_i32 = arith.constant 0 : i32
    %c0_i32_0 = arith.constant 0 : i32
    %c0_i32_1 = arith.constant 0 : i32
    %c0_i32_2 = arith.constant 0 : i32
    return %c0_i32, %c0_i32_0, %c0_i32_1 : i32, i32, i32
  }
  func.func @transform_4(%arg0: i32) -> (i32, i32, i32) {
    %c0_i32 = arith.constant 0 : i32
    %c0_i32_0 = arith.constant 0 : i32
    %c0_i32_1 = arith.constant 0 : i32
    %c0_i32_2 = arith.constant 0 : i32
    return %c0_i32, %c0_i32_0, %c0_i32_1 : i32, i32, i32
  }
  func.func @transform_5(%arg0: i32) -> (i32, i32, i32) {
    %c0_i32 = arith.constant 0 : i32
    %c0_i32_0 = arith.constant 0 : i32
    %c0_i32_1 = arith.constant 0 : i32
    %c0_i32_2 = arith.constant 0 : i32
    return %c0_i32, %c0_i32_0, %c0_i32_1 : i32, i32, i32
  }
  func.func @transform_6(%arg0: i32) -> (i32, i32, i32) {
    %c0_i32 = arith.constant 0 : i32
    %c0_i32_0 = arith.constant 0 : i32
    %c0_i32_1 = arith.constant 0 : i32
    %c0_i32_2 = arith.constant 0 : i32
    return %c0_i32, %c0_i32_0, %c0_i32_1 : i32, i32, i32
  }
  func.func @transform_7(%arg0: i32) -> (i32, i32, i32) {
    %c0_i32 = arith.constant 0 : i32
    %c0_i32_0 = arith.constant 0 : i32
    %c0_i32_1 = arith.constant 0 : i32
    %c0_i32_2 = arith.constant 0 : i32
    return %c0_i32, %c0_i32_0, %c0_i32_1 : i32, i32, i32
  }
  func.func @transform_8(%arg0: i32) -> (i32, i32, i32) {
    %c0_i32 = arith.constant 0 : i32
    %c0_i32_0 = arith.constant 0 : i32
    %c0_i32_1 = arith.constant 0 : i32
    %c0_i32_2 = arith.constant 0 : i32
    return %c0_i32, %c0_i32_0, %c0_i32_1 : i32, i32, i32
  }
  func.func @transform_9(%arg0: i32) -> (i32, i32, i32) {
    %c0_i32 = arith.constant 0 : i32
    %c0_i32_0 = arith.constant 0 : i32
    %c0_i32_1 = arith.constant 0 : i32
    %c0_i32_2 = arith.constant 0 : i32
    return %c0_i32, %c0_i32_0, %c0_i32_1 : i32, i32, i32
  }
  func.func @transform_10(%arg0: i32) -> (i32, i32, i32) {
    %c0_i32 = arith.constant 0 : i32
    %c0_i32_0 = arith.constant 0 : i32
    %c0_i32_1 = arith.constant 0 : i32
    %c0_i32_2 = arith.constant 0 : i32
    return %c0_i32, %c0_i32_0, %c0_i32_1 : i32, i32, i32
  }
  func.func @transform_11(%arg0: i32) -> (i32, i32, i32) {
    %c0_i32 = arith.constant 0 : i32
    %c0_i32_0 = arith.constant 0 : i32
    %c0_i32_1 = arith.constant 0 : i32
    %c0_i32_2 = arith.constant 0 : i32
    return %c0_i32, %c0_i32_0, %c0_i32_1 : i32, i32, i32
  }
  func.func @transform_12(%arg0: i32) -> (i32, i32, i32) {
    %c0_i32 = arith.constant 0 : i32
    %c0_i32_0 = arith.constant 0 : i32
    %c0_i32_1 = arith.constant 0 : i32
    %c0_i32_2 = arith.constant 0 : i32
    return %c0_i32, %c0_i32_0, %c0_i32_1 : i32, i32, i32
  }
  func.func @transform_13(%arg0: i32) -> (i32, i32, i32) {
    %c0_i32 = arith.constant 0 : i32
    %c0_i32_0 = arith.constant 0 : i32
    %c0_i32_1 = arith.constant 0 : i32
    %c0_i32_2 = arith.constant 0 : i32
    return %c0_i32, %c0_i32_0, %c0_i32_1 : i32, i32, i32
  }
  func.func @transform_14(%arg0: i32) -> (i32, i32) {
    %c0_i32 = arith.constant 0 : i32
    %c0_i32_0 = arith.constant 0 : i32
    %c0_i32_1 = arith.constant 0 : i32
    return %c0_i32, %c0_i32_0 : i32, i32
  }
  func.func @transform_15(%arg0: i32) -> (i32, i32) {
    %c0_i32 = arith.constant 0 : i32
    %c0_i32_0 = arith.constant 0 : i32
    %c0_i32_1 = arith.constant 0 : i32
    return %c0_i32, %c0_i32_0 : i32, i32
  }
  func.func @transform_16(%arg0: i32) -> (i32, i32) {
    %c0_i32 = arith.constant 0 : i32
    %c0_i32_0 = arith.constant 0 : i32
    return %arg0, %c0_i32 : i32, i32
  }
}

</mosaic_0001>

<llo_original>
// kernel: mixer_forward.1
$region0: #{mixer_forward.1}
  #allocation0 [shape = 'u32[]', space=smem, size = 0x4, offset = 0x4, fixed_abs, tag = 'smem constant byte address 0x4 - core index']
  #allocation1 [shape = 'u32[144,128]{1,0:T(1,128)}', space=vmem, size = 0x12000, scoped, tag = 'internal scratch']
  %s0 = inlined_call_operand.vmem [shape: s32[16,1], index: 0, kind: input, shape index: {}]
  %s1 = inlined_call_operand.vmem [shape: f32[100,32], index: 1, kind: input, shape index: {}]
  %s2 = inlined_call_operand.vmem [shape: f32[2,1,32], index: 2, kind: input, shape index: {}]
  %s3 = inlined_call_operand.vmem [shape: f32[2,1,32], index: 3, kind: input, shape index: {}]
  %s4 = inlined_call_operand.vmem [shape: f32[2,32,128], index: 4, kind: input, shape index: {}]
  %s5 = inlined_call_operand.vmem [shape: f32[2,4,64], index: 5, kind: input, shape index: {}]
  %s6 = inlined_call_operand.vmem [shape: f32[2,1,64], index: 6, kind: input, shape index: {}]
  %s7 = inlined_call_operand.vmem [shape: f32[2,32,64], index: 7, kind: input, shape index: {}]
  %s8 = inlined_call_operand.vmem [shape: f32[2,64,64], index: 8, kind: input, shape index: {}]
  %s9 = inlined_call_operand.vmem [shape: f32[2,1,64], index: 9, kind: input, shape index: {}]
  %s10 = inlined_call_operand.vmem [shape: f32[2,16,64], index: 10, kind: input, shape index: {}]
  %s11 = inlined_call_operand.vmem [shape: f32[2,1,64], index: 11, kind: input, shape index: {}]
  %s12 = inlined_call_operand.vmem [shape: f32[2,64,32], index: 12, kind: input, shape index: {}]
  %s13 = inlined_call_operand.vmem [shape: f32[4,8,8], index: 13, kind: input, shape index: {}]
  %s14 = inlined_call_operand.vmem [shape: f32[1,32], index: 14, kind: input, shape index: {}]
  %s15 = inlined_call_operand.vmem [shape: f32[1,32], index: 15, kind: input, shape index: {}]
  %s16 = inlined_call_operand.hbm [shape: f32[16,32], index: 16, kind: output, shape index: {}]
  %s17 = sld [smem:[#allocation0]]
  $region97: #{mixer_forward.1} parent=0
    _
  %s19 = ssub.s32 1, %s17
  %s20 = scalar_select 0, %s19, %s17
  $region1: #{mixer_forward.1} parent=0
    #allocation2 [shape = 'u8[8192]{0}', space=vmem, size = 0x2000, scoped, tag = 'output window, operand 0']
    #allocation3 [shape = 's32[2]{0}', space=sflag, size = 0x8, scoped, tag = 'scoped memory for mixer_forward.1']
    %21 = vsyncpa [#allocation3], 0
    %s22 = scalar_lea.sflag [#allocation3], 1
    %23 = vsyncpa %s22, 0
    loop: start=0, step=1, limit=4
    $region2: #{mixer_forward.1} parent=1 // loop_pre_header
      _
    $region3: #{mixer_forward.1} parent=1 // loop_header
      %s25 = sphi 0, %s29
      %p26 = scmp.ge.s32.totalorder %s25, 4
      %s35 = sphi 0, %s37
      %s38 = sphi 0, %s35
      %s39 = sphi 0, %s38
      %s55 = sphi 0, %s39
      %s59 = sphi 0, %s59
      %s61 = sphi 0, %s59
      %s62 = sphi 0, %s61
      %s76 = sphi 0, %s62
      %s80 = sphi 0, %s80
      %s82 = sphi 0, %s80
      %s83 = sphi 0, %s82
      %s97 = sphi 0, %s83
      %s101 = sphi 0, %s101
      %s103 = sphi 0, %s101
      %s104 = sphi 0, %s103
      %s118 = sphi 0, %s104
      %s122 = sphi 0, %s122
      %s124 = sphi 0, %s122
      %s125 = sphi 0, %s124
      %s139 = sphi 0, %s125
      %s143 = sphi 0, %s143
      %s145 = sphi 0, %s143
      %s146 = sphi 0, %s145
      %s160 = sphi 0, %s146
      %s164 = sphi 0, %s164
      %s166 = sphi 0, %s164
      %s167 = sphi 0, %s166
      %s181 = sphi 0, %s167
      %s185 = sphi 0, %s185
      %s187 = sphi 0, %s185
      %s188 = sphi 0, %s187
      %s202 = sphi 0, %s188
      %s206 = sphi 0, %s206
      %s208 = sphi 0, %s206
      %s209 = sphi 0, %s208
      %s223 = sphi 0, %s209
      %s227 = sphi 0, %s227
      %s229 = sphi 0, %s227
      %s230 = sphi 0, %s229
      %s244 = sphi 0, %s230
      %s248 = sphi 0, %s248
      %s250 = sphi 0, %s248
      %s251 = sphi 0, %s250
      %s265 = sphi 0, %s251
      %s269 = sphi 0, %s269
      %s271 = sphi 0, %s269
      %s272 = sphi 0, %s271
      %s286 = sphi 0, %s272
      %s290 = sphi 0, %s290
      %s292 = sphi 0, %s290
      %s293 = sphi 0, %s292
      %s307 = sphi 0, %s293
      %s311 = sphi 0, %s311
      %s313 = sphi 0, %s311
      %s314 = sphi 0, %s313
      %s328 = sphi 0, %s314
      %s332 = sphi 0, %s332
      %s334 = sphi 0, %s332
      %s335 = sphi 0, %s334
      %s349 = sphi 0, %s335
      %s353 = sphi 0, %s353
      %s355 = sphi 0, %s353
      %s356 = sphi 0, %s355
      %s370 = sphi 0, %s356
      %s376 = sphi 0, %s378
      %s379 = sphi 0, %s376
      %s380 = sphi 0, %s379
      %s396 = sphi 0, %s380
    $region4: #{mixer_forward.1} parent=1 // loop_header_branch
      %28 = sbr.rel (%p26) target = $region8
    $region5: #{mixer_forward.1} parent=1 // loop_body
      %s30 = ssub.s32 %s25, 1
      %s31 = ssub.s32 %s25, 2
      %s32 = sadd.s32 %s25, 1
      %s33 = ssub.s32 %s25, %s32
      %p34 = scmp.eq.s32.totalorder %s33, 0
      %s36 = sadd.s32 %s35, 1
      %s37 = scalar_select %p34, %s35, %s36
      %p40 = pneg %p34
      %p41 = scmp.eq.s32.totalorder %s25, 1
      %p42 = por %p40, %p41
      %p43 = scmp.ne.s32.totalorder %s35, %s38
      %p44 = scmp.eq.s32.totalorder %s25, 0
      %p45 = por %p43, %p44
      %p46 = scmp.ne.s32.totalorder %s35, %s38
      %p47 = scmp.eq.s32.totalorder %s30, 1
      %p48 = por %p46, %p47
      %p49 = scmp.ne.s32.totalorder %s38, %s39
      %p50 = scmp.eq.s32.totalorder %s30, 0
      %p51 = por %p49, %p50
      %p52 = scmp.ne.s32.totalorder %s38, %s39
      %p53 = scmp.eq.s32.totalorder %s31, 1
      %p54 = por %p52, %p53
      %p56 = scmp.ne.s32.totalorder %s39, %s55
      %p57 = scmp.eq.s32.totalorder %s31, 0
      %p58 = por %p56, %p57
      %s60 = sadd.s32 %s59, 1
      %p63 = scmp.eq.s32.totalorder %s25, 1
      %p64 = scmp.ne.s32.totalorder %s59, %s61
      %p65 = scmp.eq.s32.totalorder %s25, 0
      %p66 = por %p64, %p65
      %p67 = scmp.ne.s32.totalorder %s59, %s61
      %p68 = scmp.eq.s32.totalorder %s30, 1
      %p69 = por %p67, %p68
      %p70 = scmp.ne.s32.totalorder %s61, %s62
      %p71 = scmp.eq.s32.totalorder %s30, 0
      %p72 = por %p70, %p71
      %p73 = scmp.ne.s32.totalorder %s61, %s62
      %p74 = scmp.eq.s32.totalorder %s31, 1
      %p75 = por %p73, %p74
      %p77 = scmp.ne.s32.totalorder %s62, %s76
      %p78 = scmp.eq.s32.totalorder %s31, 0
      %p79 = por %p77, %p78
      %s81 = sadd.s32 %s80, 1
      %p84 = scmp.eq.s32.totalorder %s25, 1
      %p85 = scmp.ne.s32.totalorder %s80, %s82
      %p86 = scmp.eq.s32.totalorder %s25, 0
      %p87 = por %p85, %p86
      %p88 = scmp.ne.s32.totalorder %s80, %s82
      %p89 = scmp.eq.s32.totalorder %s30, 1
      %p90 = por %p88, %p89
      %p91 = scmp.ne.s32.totalorder %s82, %s83
      %p92 = scmp.eq.s32.totalorder %s30, 0
      %p93 = por %p91, %p92
      %p94 = scmp.ne.s32.totalorder %s82, %s83
      %p95 = scmp.eq.s32.totalorder %s31, 1
      %p96 = por %p94, %p95
      %p98 = scmp.ne.s32.totalorder %s83, %s97
      %p99 = scmp.eq.s32.totalorder %s31, 0
      %p100 = por %p98, %p99
      %s102 = sadd.s32 %s101, 1
      %p105 = scmp.eq.s32.totalorder %s25, 1
      %p106 = scmp.ne.s32.totalorder %s101, %s103
      %p107 = scmp.eq.s32.totalorder %s25, 0
      %p108 = por %p106, %p107
      %p109 = scmp.ne.s32.totalorder %s101, %s103
      %p110 = scmp.eq.s32.totalorder %s30, 1
      %p111 = por %p109, %p110
      %p112 = scmp.ne.s32.totalorder %s103, %s104
      %p113 = scmp.eq.s32.totalorder %s30, 0
      %p114 = por %p112, %p113
      %p115 = scmp.ne.s32.totalorder %s103, %s104
      %p116 = scmp.eq.s32.totalorder %s31, 1
      %p117 = por %p115, %p116
      %p119 = scmp.ne.s32.totalorder %s104, %s118
      %p120 = scmp.eq.s32.totalorder %s31, 0
      %p121 = por %p119, %p120
      %s123 = sadd.s32 %s122, 1
      %p126 = scmp.eq.s32.totalorder %s25, 1
      %p127 = scmp.ne.s32.totalorder %s122, %s124
      %p128 = scmp.eq.s32.totalorder %s25, 0
      %p129 = por %p127, %p128
      %p130 = scmp.ne.s32.totalorder %s122, %s124
      %p131 = scmp.eq.s32.totalorder %s30, 1
      %p132 = por %p130, %p131
      %p133 = scmp.ne.s32.totalorder %s124, %s125
      %p134 = scmp.eq.s32.totalorder %s30, 0
      %p135 = por %p133, %p134
      %p136 = scmp.ne.s32.totalorder %s124, %s125
      %p137 = scmp.eq.s32.totalorder %s31, 1
      %p138 = por %p136, %p137
      %p140 = scmp.ne.s32.totalorder %s125, %s139
      %p141 = scmp.eq.s32.totalorder %s31, 0
      %p142 = por %p140, %p141
      %s144 = sadd.s32 %s143, 1
      %p147 = scmp.eq.s32.totalorder %s25, 1
      %p148 = scmp.ne.s32.totalorder %s143, %s145
      %p149 = scmp.eq.s32.totalorder %s25, 0
      %p150 = por %p148, %p149
      %p151 = scmp.ne.s32.totalorder %s143, %s145
      %p152 = scmp.eq.s32.totalorder %s30, 1
      %p153 = por %p151, %p152
      %p154 = scmp.ne.s32.totalorder %s145, %s146
      %p155 = scmp.eq.s32.totalorder %s30, 0
      %p156 = por %p154, %p155
      %p157 = scmp.ne.s32.totalorder %s145, %s146
      %p158 = scmp.eq.s32.totalorder %s31, 1
      %p159 = por %p157, %p158
      %p161 = scmp.ne.s32.totalorder %s146, %s160
      %p162 = scmp.eq.s32.totalorder %s31, 0
      %p163 = por %p161, %p162
      %s165 = sadd.s32 %s164, 1
      %p168 = scmp.eq.s32.totalorder %s25, 1
      %p169 = scmp.ne.s32.totalorder %s164, %s166
      %p170 = scmp.eq.s32.totalorder %s25, 0
      %p171 = por %p169, %p170
      %p172 = scmp.ne.s32.totalorder %s164, %s166
      %p173 = scmp.eq.s32.totalorder %s30, 1
      %p174 = por %p172, %p173
      %p175 = scmp.ne.s32.totalorder %s166, %s167
      %p176 = scmp.eq.s32.totalorder %s30, 0
      %p177 = por %p175, %p176
      %p178 = scmp.ne.s32.totalorder %s166, %s167
      %p179 = scmp.eq.s32.totalorder %s31, 1
      %p180 = por %p178, %p179
      %p182 = scmp.ne.s32.totalorder %s167, %s181
      %p183 = scmp.eq.s32.totalorder %s31, 0
      %p184 = por %p182, %p183
      %s186 = sadd.s32 %s185, 1
      %p189 = scmp.eq.s32.totalorder %s25, 1
      %p190 = scmp.ne.s32.totalorder %s185, %s187
      %p191 = scmp.eq.s32.totalorder %s25, 0
      %p192 = por %p190, %p191
      %p193 = scmp.ne.s32.totalorder %s185, %s187
      %p194 = scmp.eq.s32.totalorder %s30, 1
      %p195 = por %p193, %p194
      %p196 = scmp.ne.s32.totalorder %s187, %s188
      %p197 = scmp.eq.s32.totalorder %s30, 0
      %p198 = por %p196, %p197
      %p199 = scmp.ne.s32.totalorder %s187, %s188
      %p200 = scmp.eq.s32.totalorder %s31, 1
      %p201 = por %p199, %p200
      %p203 = scmp.ne.s32.totalorder %s188, %s202
      %p204 = scmp.eq.s32.totalorder %s31, 0
      %p205 = por %p203, %p204
      %s207 = sadd.s32 %s206, 1
      %p210 = scmp.eq.s32.totalorder %s25, 1
      %p211 = scmp.ne.s32.totalorder %s206, %s208
      %p212 = scmp.eq.s32.totalorder %s25, 0
      %p213 = por %p211, %p212
      %p214 = scmp.ne.s32.totalorder %s206, %s208
      %p215 = scmp.eq.s32.totalorder %s30, 1
      %p216 = por %p214, %p215
      %p217 = scmp.ne.s32.totalorder %s208, %s209
      %p218 = scmp.eq.s32.totalorder %s30, 0
      %p219 = por %p217, %p218
      %p220 = scmp.ne.s32.totalorder %s208, %s209
      %p221 = scmp.eq.s32.totalorder %s31, 1
      %p222 = por %p220, %p221
      %p224 = scmp.ne.s32.totalorder %s209, %s223
      %p225 = scmp.eq.s32.totalorder %s31, 0
      %p226 = por %p224, %p225
      %s228 = sadd.s32 %s227, 1
      %p231 = scmp.eq.s32.totalorder %s25, 1
      %p232 = scmp.ne.s32.totalorder %s227, %s229
      %p233 = scmp.eq.s32.totalorder %s25, 0
      %p234 = por %p232, %p233
      %p235 = scmp.ne.s32.totalorder %s227, %s229
      %p236 = scmp.eq.s32.totalorder %s30, 1
      %p237 = por %p235, %p236
      %p238 = scmp.ne.s32.totalorder %s229, %s230
      %p239 = scmp.eq.s32.totalorder %s30, 0
      %p240 = por %p238, %p239
      %p241 = scmp.ne.s32.totalorder %s229, %s230
      %p242 = scmp.eq.s32.totalorder %s31, 1
      %p243 = por %p241, %p242
      %p245 = scmp.ne.s32.totalorder %s230, %s244
      %p246 = scmp.eq.s32.totalorder %s31, 0
      %p247 = por %p245, %p246
      %s249 = sadd.s32 %s248, 1
      %p252 = scmp.eq.s32.totalorder %s25, 1
      %p253 = scmp.ne.s32.totalorder %s248, %s250
      %p254 = scmp.eq.s32.totalorder %s25, 0
      %p255 = por %p253, %p254
      %p256 = scmp.ne.s32.totalorder %s248, %s250
      %p257 = scmp.eq.s32.totalorder %s30, 1
      %p258 = por %p256, %p257
      %p259 = scmp.ne.s32.totalorder %s250, %s251
      %p260 = scmp.eq.s32.totalorder %s30, 0
      %p261 = por %p259, %p260
      %p262 = scmp.ne.s32.totalorder %s250, %s251
      %p263 = scmp.eq.s32.totalorder %s31, 1
      %p264 = por %p262, %p263
      %p266 = scmp.ne.s32.totalorder %s251, %s265
      %p267 = scmp.eq.s32.totalorder %s31, 0
      %p268 = por %p266, %p267
      %s270 = sadd.s32 %s269, 1
      %p273 = scmp.eq.s32.totalorder %s25, 1
      %p274 = scmp.ne.s32.totalorder %s269, %s271
      %p275 = scmp.eq.s32.totalorder %s25, 0
      %p276 = por %p274, %p275
      %p277 = scmp.ne.s32.totalorder %s269, %s271
      %p278 = scmp.eq.s32.totalorder %s30, 1
      %p279 = por %p277, %p278
      %p280 = scmp.ne.s32.totalorder %s271, %s272
      %p281 = scmp.eq.s32.totalorder %s30, 0
      %p282 = por %p280, %p281
      %p283 = scmp.ne.s32.totalorder %s271, %s272
      %p284 = scmp.eq.s32.totalorder %s31, 1
      %p285 = por %p283, %p284
      %p287 = scmp.ne.s32.totalorder %s272, %s286
      %p288 = scmp.eq.s32.totalorder %s31, 0
      %p289 = por %p287, %p288
      %s291 = sadd.s32 %s290, 1
      %p294 = scmp.eq.s32.totalorder %s25, 1
      %p295 = scmp.ne.s32.totalorder %s290, %s292
      %p296 = scmp.eq.s32.totalorder %s25, 0
      %p297 = por %p295, %p296
      %p298 = scmp.ne.s32.totalorder %s290, %s292
      %p299 = scmp.eq.s32.totalorder %s30, 1
      %p300 = por %p298, %p299
      %p301 = scmp.ne.s32.totalorder %s292, %s293
      %p302 = scmp.eq.s32.totalorder %s30, 0
      %p303 = por %p301, %p302
      %p304 = scmp.ne.s32.totalorder %s292, %s293
      %p305 = scmp.eq.s32.totalorder %s31, 1
      %p306 = por %p304, %p305
      %p308 = scmp.ne.s32.totalorder %s293, %s307
      %p309 = scmp.eq.s32.totalorder %s31, 0
      %p310 = por %p308, %p309
      %s312 = sadd.s32 %s311, 1
      %p315 = scmp.eq.s32.totalorder %s25, 1
      %p316 = scmp.ne.s32.totalorder %s311, %s313
      %p317 = scmp.eq.s32.totalorder %s25, 0
      %p318 = por %p316, %p317
      %p319 = scmp.ne.s32.totalorder %s311, %s313
      %p320 = scmp.eq.s32.totalorder %s30, 1
      %p321 = por %p319, %p320
      %p322 = scmp.ne.s32.totalorder %s313, %s314
      %p323 = scmp.eq.s32.totalorder %s30, 0
      %p324 = por %p322, %p323
      %p325 = scmp.ne.s32.totalorder %s313, %s314
      %p326 = scmp.eq.s32.totalorder %s31, 1
      %p327 = por %p325, %p326
      %p329 = scmp.ne.s32.totalorder %s314, %s328
      %p330 = scmp.eq.s32.totalorder %s31, 0
      %p331 = por %p329, %p330
      %s333 = sadd.s32 %s332, 1
      %p336 = scmp.eq.s32.totalorder %s25, 1
      %p337 = scmp.ne.s32.totalorder %s332, %s334
      %p338 = scmp.eq.s32.totalorder %s25, 0
      %p339 = por %p337, %p338
      %p340 = scmp.ne.s32.totalorder %s332, %s334
      %p341 = scmp.eq.s32.totalorder %s30, 1
      %p342 = por %p340, %p341
      %p343 = scmp.ne.s32.totalorder %s334, %s335
      %p344 = scmp.eq.s32.totalorder %s30, 0
      %p345 = por %p343, %p344
      %p346 = scmp.ne.s32.totalorder %s334, %s335
      %p347 = scmp.eq.s32.totalorder %s31, 1
      %p348 = por %p346, %p347
      %p350 = scmp.ne.s32.totalorder %s335, %s349
      %p351 = scmp.eq.s32.totalorder %s31, 0
      %p352 = por %p350, %p351
      %s354 = sadd.s32 %s353, 1
      %p357 = scmp.eq.s32.totalorder %s25, 1
      %p358 = scmp.ne.s32.totalorder %s353, %s355
      %p359 = scmp.eq.s32.totalorder %s25, 0
      %p360 = por %p358, %p359
      %p361 = scmp.ne.s32.totalorder %s353, %s355
      %p362 = scmp.eq.s32.totalorder %s30, 1
      %p363 = por %p361, %p362
      %p364 = scmp.ne.s32.totalorder %s355, %s356
      %p365 = scmp.eq.s32.totalorder %s30, 0
      %p366 = por %p364, %p365
      %p367 = scmp.ne.s32.totalorder %s355, %s356
      %p368 = scmp.eq.s32.totalorder %s31, 1
      %p369 = por %p367, %p368
      %p371 = scmp.ne.s32.totalorder %s356, %s370
      %p372 = scmp.eq.s32.totalorder %s31, 0
      %p373 = por %p371, %p372
      %s374 = ssub.s32 %s25, %s32
      %p375 = scmp.eq.s32.totalorder %s374, 0
      %s377 = sadd.s32 %s376, 1
      %s378 = scalar_select %p375, %s376, %s377
      %p381 = pneg %p375
      %p382 = scmp.eq.s32.totalorder %s25, 1
      %p383 = por %p381, %p382
      %p384 = scmp.ne.s32.totalorder %s376, %s379
      %p385 = scmp.eq.s32.totalorder %s25, 0
      %p386 = por %p384, %p385
      %p387 = scmp.ne.s32.totalorder %s376, %s379
      %p388 = scmp.eq.s32.totalorder %s30, 1
      %p389 = por %p387, %p388
      %p390 = scmp.ne.s32.totalorder %s379, %s380
      %p391 = scmp.eq.s32.totalorder %s30, 0
      %p392 = por %p390, %p391
      %p393 = scmp.ne.s32.totalorder %s379, %s380
      %p394 = scmp.eq.s32.totalorder %s31, 1
      %p395 = por %p393, %p394
      %p397 = scmp.ne.s32.totalorder %s380, %s396
      %p398 = scmp.eq.s32.totalorder %s31, 0
      %p399 = por %p397, %p398
      %p400 = scmp.le.s32.totalorder 1, %s25
      %p401 = scmp.lt.s32.totalorder %s25, 3
      %p402 = pnand %p400, %p401
      %p403 = pneg %p402
      // Predicated region
      $region9: #{mixer_forward.1} parent=5 // pred_check
        _
      $region10: #{mixer_forward.1} parent=5 // pred_check_branch
        %405 = sbr.rel (%p402) target = $region12
      $region11: #{mixer_forward.1} parent=5 // pred_region
        %s406 = ssub.s32 %s25, 1
        // Predicated region
        $region13: #{mixer_forward.1} parent=11 // pred_check
          %p407 = pneg %p72
        $region14: #{mixer_forward.1} parent=11 // pred_check_branch
          %409 = sbr.rel (%p407) target = $region16
        $region15: #{mixer_forward.1} parent=11 // pred_region
          _
        $region16: #{mixer_forward.1} parent=11 // pred_fallthru
          _
        // Predicated region
        $region17: #{mixer_forward.1} parent=11 // pred_check
          %p410 = pneg %p93
        $region18: #{mixer_forward.1} parent=11 // pred_check_branch
          %412 = sbr.rel (%p410) target = $region20
        $region19: #{mixer_forward.1} parent=11 // pred_region
          _
        $region20: #{mixer_forward.1} parent=11 // pred_fallthru
          _
        // Predicated region
        $region21: #{mixer_forward.1} parent=11 // pred_check
          %p413 = pneg %p114
        $region22: #{mixer_forward.1} parent=11 // pred_check_branch
          %415 = sbr.rel (%p413) target = $region24
        $region23: #{mixer_forward.1} parent=11 // pred_region
          _
        $region24: #{mixer_forward.1} parent=11 // pred_fallthru
          _
        // Predicated region
        $region25: #{mixer_forward.1} parent=11 // pred_check
          %p416 = pneg %p135
        $region26: #{mixer_forward.1} parent=11 // pred_check_branch
          %418 = sbr.rel (%p416) target = $region28
        $region27: #{mixer_forward.1} parent=11 // pred_region
          _
        $region28: #{mixer_forward.1} parent=11 // pred_fallthru
          _
        // Predicated region
        $region29: #{mixer_forward.1} parent=11 // pred_check
          %p419 = pneg %p156
        $region30: #{mixer_forward.1} parent=11 // pred_check_branch
          %421 = sbr.rel (%p419) target = $region32
        $region31: #{mixer_forward.1} parent=11 // pred_region
          _
        $region32: #{mixer_forward.1} parent=11 // pred_fallthru
          _
        // Predicated region
        $region33: #{mixer_forward.1} parent=11 // pred_check
          %p422 = pneg %p177
        $region34: #{mixer_forward.1} parent=11 // pred_check_branch
          %424 = sbr.rel (%p422) target = $region36
        $region35: #{mixer_forward.1} parent=11 // pred_region
          _
        $region36: #{mixer_forward.1} parent=11 // pred_fallthru
          _
        // Predicated region
        $region37: #{mixer_forward.1} parent=11 // pred_check
          %p425 = pneg %p198
        $region38: #{mixer_forward.1} parent=11 // pred_check_branch
          %427 = sbr.rel (%p425) target = $region40
        $region39: #{mixer_forward.1} parent=11 // pred_region
          _
        $region40: #{mixer_forward.1} parent=11 // pred_fallthru
          _
        // Predicated region
        $region41: #{mixer_forward.1} parent=11 // pred_check
          %p428 = pneg %p219
        $region42: #{mixer_forward.1} parent=11 // pred_check_branch
          %430 = sbr.rel (%p428) target = $region44
        $region43: #{mixer_forward.1} parent=11 // pred_region
          _
        $region44: #{mixer_forward.1} parent=11 // pred_fallthru
          _
        // Predicated region
        $region45: #{mixer_forward.1} parent=11 // pred_check
          %p431 = pneg %p240
        $region46: #{mixer_forward.1} parent=11 // pred_check_branch
          %433 = sbr.rel (%p431) target = $region48
        $region47: #{mixer_forward.1} parent=11 // pred_region
          _
        $region48: #{mixer_forward.1} parent=11 // pred_fallthru
          _
        // Predicated region
        $region49: #{mixer_forward.1} parent=11 // pred_check
          %p434 = pneg %p261
        $region50: #{mixer_forward.1} parent=11 // pred_check_branch
          %436 = sbr.rel (%p434) target = $region52
        $region51: #{mixer_forward.1} parent=11 // pred_region
          _
        $region52: #{mixer_forward.1} parent=11 // pred_fallthru
          _
        // Predicated region
        $region53: #{mixer_forward.1} parent=11 // pred_check
          %p437 = pneg %p282
        $region54: #{mixer_forward.1} parent=11 // pred_check_branch
          %439 = sbr.rel (%p437) target = $region56
        $region55: #{mixer_forward.1} parent=11 // pred_region
          _
        $region56: #{mixer_forward.1} parent=11 // pred_fallthru
          _
        // Predicated region
        $region57: #{mixer_forward.1} parent=11 // pred_check
          %p440 = pneg %p303
        $region58: #{mixer_forward.1} parent=11 // pred_check_branch
          %442 = sbr.rel (%p440) target = $region60
        $region59: #{mixer_forward.1} parent=11 // pred_region
          _
        $region60: #{mixer_forward.1} parent=11 // pred_fallthru
          _
        // Predicated region
        $region61: #{mixer_forward.1} parent=11 // pred_check
          %p443 = pneg %p324
        $region62: #{mixer_forward.1} parent=11 // pred_check_branch
          %445 = sbr.rel (%p443) target = $region64
        $region63: #{mixer_forward.1} parent=11 // pred_region
          _
        $region64: #{mixer_forward.1} parent=11 // pred_fallthru
          _
        // Predicated region
        $region65: #{mixer_forward.1} parent=11 // pred_check
          %p446 = pneg %p345
        $region66: #{mixer_forward.1} parent=11 // pred_check_branch
          %448 = sbr.rel (%p446) target = $region68
        $region67: #{mixer_forward.1} parent=11 // pred_region
          _
        $region68: #{mixer_forward.1} parent=11 // pred_fallthru
          _
        // Predicated region
        $region69: #{mixer_forward.1} parent=11 // pred_check
          %p449 = pneg %p366
        $region70: #{mixer_forward.1} parent=11 // pred_check_branch
          %451 = sbr.rel (%p449) target = $region72
        $region71: #{mixer_forward.1} parent=11 // pred_region
          _
        $region72: #{mixer_forward.1} parent=11 // pred_fallthru
          _
      $region12: #{mixer_forward.1} parent=5 // pred_fallthru
        _
      %p452 = scmp.lt.s32.totalorder %s25, 2
      // Predicated region
      $region73: #{mixer_forward.1} parent=5 // pred_check
        %p453 = pneg %p452
      $region74: #{mixer_forward.1} parent=5 // pred_check_branch
        %455 = sbr.rel (%p453) target = $region76
      $region75: #{mixer_forward.1} parent=5 // pred_region
        // Predicated region
        $region77: #{mixer_forward.1} parent=75 // pred_check
          %p456 = pneg %p45
        $region78: #{mixer_forward.1} parent=75 // pred_check_branch
          %458 = sbr.rel (%p456) target = $region80
        $region79: #{mixer_forward.1} parent=75 // pred_region
          %p459 = scmp.lt.s32.totalorder %s25, 1
          %s460 = scalar_select %p459, %s25, 1
          %s461 = smul.addr %s460, 8
          %s462 = scalar_lea.vmem %s0, %s461
        $region80: #{mixer_forward.1} parent=75 // pred_fallthru
          _
      $region76: #{mixer_forward.1} parent=5 // pred_fallthru
        _
      %p463 = scmp.le.s32.totalorder 1, %s25
      %p464 = scmp.lt.s32.totalorder %s25, 3
      %p465 = pnand %p463, %p464
      %p466 = pneg %p465
      // Predicated region
      $region81: #{mixer_forward.1} parent=5 // pred_check
        _
      $region82: #{mixer_forward.1} parent=5 // pred_check_branch
        %468 = sbr.rel (%p465) target = $region84
      $region83: #{mixer_forward.1} parent=5 // pred_region
        %s469 = ssub.s32 %s25, 1
        %p470 = scmp.lt.s32.totalorder %s30, 1
        %s471 = scalar_select %p470, %s30, 1
        %s472 = smul.addr %s471, 8
        %s473 = scalar_lea.vmem %s0, %s472
        %p474 = pneg %p51
        %p475 = pneg %p48
        %p476 = pneg %p72
        %p477 = pneg %p69
        %p478 = pneg %p93
        %p479 = pneg %p90
        %p480 = pneg %p114
        %p481 = pneg %p111
        %p482 = pneg %p135
        %p483 = pneg %p132
        %p484 = pneg %p156
        %p485 = pneg %p153
        %p486 = pneg %p177
        %p487 = pneg %p174
        %p488 = pneg %p198
        %p489 = pneg %p195
        %p490 = pneg %p219
        %p491 = pneg %p216
        %p492 = pneg %p240
        %p493 = pneg %p237
        %p494 = pneg %p261
        %p495 = pneg %p258
        %p496 = pneg %p282
        %p497 = pneg %p279
        %p498 = pneg %p303
        %p499 = pneg %p300
        %p500 = pneg %p324
        %p501 = pneg %p321
        %p502 = pneg %p345
        %p503 = pneg %p342
        %p504 = pneg %p366
        %p505 = pneg %p363
        %p506 = pneg %p392
        %p507 = pneg %p389
        %s508 = sand.u32 %s379, 1
        %s509 = scalar_lea.sflag [#allocation3], %s508
        %s510 = sand.u32 %s379, 1
        %s511 = smul.addr %s510, 8
        %s512 = scalar_lea.vmem [#allocation2], %s511
        %p513 = scmp.lt.s32.totalorder %s30, 1
        %s514 = scalar_select %p513, %s30, 1
        %s515 = smul.addr %s514, 8
        %s516 = scalar_lea.vmem %s0, %s515
        %v517 = vld [vmem:[%s516] sm:$0xff]
        %v518 = vlaneseq
        %v519 = vand.u32 %v518, 127
        %520 = vset.pattern.permute.xlu0 0
        %521 = vperm.xlu0 %520, %v517
        %v522 = vpop.permute.xlu0 %521
        %vm523 = vcmp.eq.s32.totalorder %v522, %v519
        %v524 = vsel %vm523, 1, 0
        %v525 = vcvt.s32.f32 %v524
        %v526 = vld [vmem:[%s1] sm:$0xff]
        %v527 = vld [vmem:[%s1 + $0x8] sm:$0xff]
        %v528 = vld [vmem:[%s1 + $0x10] sm:$0xff]
        %v529 = vld [vmem:[%s1 + $0x18] sm:$0xff]
        %v530 = vld [vmem:[%s1 + $0x20] sm:$0xff]
        %v531 = vld [vmem:[%s1 + $0x28] sm:$0xff]
        %v532 = vld [vmem:[%s1 + $0x30] sm:$0xff]
        %v533 = vld [vmem:[%s1 + $0x38] sm:$0xff]
        %v534 = vld [vmem:[%s1 + $0x40] sm:$0xff]
        %v535 = vld [vmem:[%s1 + $0x48] sm:$0xff]
        %v536 = vld [vmem:[%s1 + $0x50] sm:$0xff]
        %v537 = vld [vmem:[%s1 + $0x58] sm:$0xff]
        %v538 = vld [vmem:[%s1 + $0x60] sm:$0xf]
        %vm539 = vcmask 818176
        %v541 = vsel %vm539, %v525, 0
        %vm543 = vcmask 1043456
        %v545 = vsel %vm543, %v538, 0
        %547 = vmatprep.subr.mxu0 0.0
        %548 = vmatpush1.msra.mxu0 0.0
        %549 = vmatprep.subr.mxu0 0.0
        %550 = vmatpush1.msra.mxu0 0.0
        %551 = vmatprep.subr.mxu0 0.0
        %552 = vmatpush1.msra.mxu0 0.0
        %553 = vmatprep.subr.mxu0 0.0
        %554 = vmatpush1.msra.mxu0 %v545
        %555 = vmatprep.subr.mxu0 0.0
        %556 = vmatpush1.msra.mxu0 %v537
        %557 = vmatprep.subr.mxu0 0.0
        %558 = vmatpush1.msra.mxu0 %v536
        %559 = vmatprep.subr.mxu0 0.0
        %560 = vmatpush1.msra.mxu0 %v535
        %561 = vmatprep.subr.mxu0 0.0
        %562 = vmatpush1.msra.mxu0 %v534
        %563 = vmatprep.subr.mxu0 0.0
        %564 = vmatpush1.msra.mxu0 %v533
        %565 = vmatprep.subr.mxu0 0.0
        %566 = vmatpush1.msra.mxu0 %v532
        %567 = vmatprep.subr.mxu0 0.0
        %568 = vmatpush1.msra.mxu0 %v531
        %569 = vmatprep.subr.mxu0 0.0
        %570 = vmatpush1.msra.mxu0 %v530
        %571 = vmatprep.subr.mxu0 0.0
        %572 = vmatpush1.msra.mxu0 %v529
        %573 = vmatprep.subr.mxu0 0.0
        %574 = vmatpush1.msra.mxu0 %v528
        %575 = vmatprep.subr.mxu0 0.0
        %576 = vmatpush1.msra.mxu0 %v527
        %577 = vmatprep.subr.mxu0 0.0
        %578 = vmatpush1.msra.mxu0 %v526
        %579 = vmatprep.subr.mxu0 0.0
        %580 = vmatpush2.msra.mxu0 0.0
        %581 = vmatprep.subr.mxu0 0.0
        %582 = vmatpush2.msra.mxu0 0.0
        %583 = vmatprep.subr.mxu0 0.0
        %584 = vmatpush2.msra.mxu0 0.0
        %585 = vmatprep.subr.mxu0 0.0
        %586 = vmatpush2.msra.mxu0 0.0
        %587 = vmatprep.subr.mxu0 0.0
        %588 = vmatpush2.msra.mxu0 0.0
        %589 = vmatprep.subr.mxu0 0.0
        %590 = vmatpush2.msra.mxu0 0.0
        %591 = vmatprep.subr.mxu0 0.0
        %592 = vmatpush2.msra.mxu0 0.0
        %593 = vmatprep.subr.mxu0 0.0
        %594 = vmatpush2.msra.mxu0 0.0
        %595 = vmatprep.subr.mxu0 0.0
        %596 = vmatpush2.msra.mxu0 0.0
        %597 = vmatprep.subr.mxu0 0.0
        %598 = vmatpush2.msra.mxu0 0.0
        %599 = vmatprep.subr.mxu0 0.0
        %600 = vmatpush2.msra.mxu0 0.0
        %601 = vmatprep.subr.mxu0 0.0
        %602 = vmatpush2.msra.mxu0 0.0
        %603 = vmatprep.subr.mxu0 0.0
        %604 = vmatpush2.msra.mxu0 0.0
        %605 = vmatprep.subr.mxu0 0.0
        %606 = vmatpush2.msra.mxu0 0.0
        %607 = vmatprep.subr.mxu0 0.0
        %608 = vmatpush2.msra.mxu0 0.0
        %609 = vmatprep.subr.mxu0 0.0
        %610 = vmatpush2.msra.mxu0 0.0
        %611 = vmatprep.mubr.f32.mxu0 0.0
        %612 = vmatmul.mubr.f32.gmra.mxu0 %v541
        %v613 = vpop.f32.mrf.mxu0
        %v614 = vadd.f32 0.0, %v613
        %v615 = vpop.f32.mrf.mxu0
        %616 = vdwg.mxu0
        %v617 = vlaneseq
        %v618 = vshrl.u32 %v617, 7
        %v619 = vld [vmem:[%s2] sm:$0x1]
        %v620 = vld [vmem:[%s3] sm:$0x1]
        %vm621 = vcmask 261120
        %v622 = vsel %vm621, %v614, 0.0
        %623 = vadd.xlane.f32.xlu0 %v622
        %v624 = vpop.xlane.xlu0 %623
        %v625 = vrcp.pop 32.0
        %v626 = vmul.f32 %v624, %v625
        %v627 = vsub.f32 %v614, %v626
        %v628 = vmul.f32 %v627, %v627
        %v629 = vsel %vm621, %v628, 0.0
        %630 = vadd.xlane.f32.xlu0 %v629
        %v631 = vpop.xlane.xlu0 %630
        %v632 = vmul.f32 %v631, %v625
        %v633 = vadd.f32 %v632, 1e-05
        %v634 = vrsqrt.pop %v633
        %v635 = vmul.f32 %v627, %v634
        %v637 = vlaneseq
        %v638 = vshrl.u32 %v637, 7
        %v639 = vsub.s32 0, %v638
        %v640 = vrot.slane %v619, %v639
        %v642 = vmul.f32 %v635, %v640
        %v644 = vlaneseq
        %v645 = vshrl.u32 %v644, 7
        %v646 = vsub.s32 0, %v645
        %v647 = vrot.slane %v620, %v646
        %v649 = vadd.f32 %v642, %v647
        %v650 = vld [vmem:[%s4] sm:$0xff]
        %v651 = vld [vmem:[%s4 + $0x8] sm:$0xff]
        %v652 = vld [vmem:[%s4 + $0x10] sm:$0xff]
        %v653 = vld [vmem:[%s4 + $0x18] sm:$0xff]
        %v655 = vsel %vm621, %v649, 0
        %657 = vmatprep.subr.mxu0 0.0
        %658 = vmatpush1.msra.mxu0 0.0
        %659 = vmatprep.subr.mxu0 0.0
        %660 = vmatpush1.msra.mxu0 0.0
        %661 = vmatprep.subr.mxu0 0.0
        %662 = vmatpush1.msra.mxu0 0.0
        %663 = vmatprep.subr.mxu0 0.0
        %664 = vmatpush1.msra.mxu0 0.0
        %665 = vmatprep.subr.mxu0 0.0
        %666 = vmatpush1.msra.mxu0 0.0
        %667 = vmatprep.subr.mxu0 0.0
        %668 = vmatpush1.msra.mxu0 0.0
        %669 = vmatprep.subr.mxu0 0.0
        %670 = vmatpush1.msra.mxu0 0.0
        %671 = vmatprep.subr.mxu0 0.0
        %672 = vmatpush1.msra.mxu0 0.0
        %673 = vmatprep.subr.mxu0 0.0
        %674 = vmatpush1.msra.mxu0 0.0
        %675 = vmatprep.subr.mxu0 0.0
        %676 = vmatpush1.msra.mxu0 0.0
        %677 = vmatprep.subr.mxu0 0.0
        %678 = vmatpush1.msra.mxu0 0.0
        %679 = vmatprep.subr.mxu0 0.0
        %680 = vmatpush1.msra.mxu0 0.0
        %681 = vmatprep.subr.mxu0 0.0
        %682 = vmatpush1.msra.mxu0 %v653
        %683 = vmatprep.subr.mxu0 0.0
        %684 = vmatpush1.msra.mxu0 %v652
        %685 = vmatprep.subr.mxu0 0.0
        %686 = vmatpush1.msra.mxu0 %v651
        %687 = vmatprep.subr.mxu0 0.0
        %688 = vmatpush1.msra.mxu0 %v650
        %689 = vmatprep.subr.mxu0 0.0
        %690 = vmatpush2.msra.mxu0 0.0
        %691 = vmatprep.subr.mxu0 0.0
        %692 = vmatpush2.msra.mxu0 0.0
        %693 = vmatprep.subr.mxu0 0.0
        %694 = vmatpush2.msra.mxu0 0.0
        %695 = vmatprep.subr.mxu0 0.0
        %696 = vmatpush2.msra.mxu0 0.0
        %697 = vmatprep.subr.mxu0 0.0
        %698 = vmatpush2.msra.mxu0 0.0
        %699 = vmatprep.subr.mxu0 0.0
        %700 = vmatpush2.msra.mxu0 0.0
        %701 = vmatprep.subr.mxu0 0.0
        %702 = vmatpush2.msra.mxu0 0.0
        %703 = vmatprep.subr.mxu0 0.0
        %704 = vmatpush2.msra.mxu0 0.0
        %705 = vmatprep.subr.mxu0 0.0
        %706 = vmatpush2.msra.mxu0 0.0
        %707 = vmatprep.subr.mxu0 0.0
        %708 = vmatpush2.msra.mxu0 0.0
        %709 = vmatprep.subr.mxu0 0.0
        %710 = vmatpush2.msra.mxu0 0.0
        %711 = vmatprep.subr.mxu0 0.0
        %712 = vmatpush2.msra.mxu0 0.0
        %713 = vmatprep.subr.mxu0 0.0
        %714 = vmatpush2.msra.mxu0 0.0
        %715 = vmatprep.subr.mxu0 0.0
        %716 = vmatpush2.msra.mxu0 0.0
        %717 = vmatprep.subr.mxu0 0.0
        %718 = vmatpush2.msra.mxu0 0.0
        %719 = vmatprep.subr.mxu0 0.0
        %720 = vmatpush2.msra.mxu0 0.0
        %721 = vmatprep.mubr.f32.mxu0 0.0
        %722 = vmatmul.mubr.f32.gmra.mxu0 %v655
        %v723 = vpop.f32.mrf.mxu0
        %v724 = vadd.f32 0.0, %v723
        %v725 = vpop.f32.mrf.mxu0
        %726 = vdwg.mxu0
        %v727 = vld [vmem:[%s5] sm:$0xf]
        %v728 = vld [vmem:[%s6] sm:$0x1]
        %v729 = vld [vmem:[%s13] sm:$0xff]
        %vm730 = vcmask 64512
        %v732 = vsel %vm730, %v729, 0
        %734 = vmatprep.subr.mxu0 0.0
        %735 = vmatpush1.msra.mxu0 0.0
        %736 = vmatprep.subr.mxu0 0.0
        %737 = vmatpush1.msra.mxu0 0.0
        %738 = vmatprep.subr.mxu0 0.0
        %739 = vmatpush1.msra.mxu0 0.0
        %740 = vmatprep.subr.mxu0 0.0
        %741 = vmatpush1.msra.mxu0 0.0
        %742 = vmatprep.subr.mxu0 0.0
        %743 = vmatpush1.msra.mxu0 0.0
        %744 = vmatprep.subr.mxu0 0.0
        %745 = vmatpush1.msra.mxu0 0.0
        %746 = vmatprep.subr.mxu0 0.0
        %747 = vmatpush1.msra.mxu0 0.0
        %748 = vmatprep.subr.mxu0 0.0
        %749 = vmatpush1.msra.mxu0 0.0
        %750 = vmatprep.subr.mxu0 0.0
        %751 = vmatpush1.msra.mxu0 0.0
        %752 = vmatprep.subr.mxu0 0.0
        %753 = vmatpush1.msra.mxu0 0.0
        %754 = vmatprep.subr.mxu0 0.0
        %755 = vmatpush1.msra.mxu0 0.0
        %756 = vmatprep.subr.mxu0 0.0
        %757 = vmatpush1.msra.mxu0 0.0
        %758 = vmatprep.subr.mxu0 0.0
        %759 = vmatpush1.msra.mxu0 0.0
        %760 = vmatprep.subr.mxu0 0.0
        %761 = vmatpush1.msra.mxu0 0.0
        %762 = vmatprep.subr.mxu0 0.0
        %763 = vmatpush1.msra.mxu0 0.0
        %764 = vmatprep.subr.mxu0 0.0
        %765 = vmatpush1.msra.mxu0 %v724
        %766 = vmatprep.subr.mxu0 0.0
        %767 = vmatpush2.msra.mxu0 0.0
        %768 = vmatprep.subr.mxu0 0.0
        %769 = vmatpush2.msra.mxu0 0.0
        %770 = vmatprep.subr.mxu0 0.0
        %771 = vmatpush2.msra.mxu0 0.0
        %772 = vmatprep.subr.mxu0 0.0
        %773 = vmatpush2.msra.mxu0 0.0
        %774 = vmatprep.subr.mxu0 0.0
        %775 = vmatpush2.msra.mxu0 0.0
        %776 = vmatprep.subr.mxu0 0.0
        %777 = vmatpush2.msra.mxu0 0.0
        %778 = vmatprep.subr.mxu0 0.0
        %779 = vmatpush2.msra.mxu0 0.0
        %780 = vmatprep.subr.mxu0 0.0
        %781 = vmatpush2.msra.mxu0 0.0
        %782 = vmatprep.subr.mxu0 0.0
        %783 = vmatpush2.msra.mxu0 0.0
        %784 = vmatprep.subr.mxu0 0.0
        %785 = vmatpush2.msra.mxu0 0.0
        %786 = vmatprep.subr.mxu0 0.0
        %787 = vmatpush2.msra.mxu0 0.0
        %788 = vmatprep.subr.mxu0 0.0
        %789 = vmatpush2.msra.mxu0 0.0
        %790 = vmatprep.subr.mxu0 0.0
        %791 = vmatpush2.msra.mxu0 0.0
        %792 = vmatprep.subr.mxu0 0.0
        %793 = vmatpush2.msra.mxu0 0.0
        %794 = vmatprep.subr.mxu0 0.0
        %795 = vmatpush2.msra.mxu0 0.0
        %796 = vmatprep.subr.mxu0 0.0
        %797 = vmatpush2.msra.mxu0 0.0
        %798 = vmatprep.mubr.f32.mxu0 0.0
        %799 = vmatmul.mubr.f32.gmra.mxu0 %v732
        %v800 = vpop.f32.mrf.mxu0
        %v801 = vadd.f32 0.0, %v800
        %v802 = vpop.f32.mrf.mxu0
        %803 = vdwg.mxu0
        %v804 = vlaneseq
        %v805 = vshrl.u32 %v804, 7
        %v806 = vsub.s32 0, %v805
        %v807 = vrot.slane %v727, %v806
        %v808 = vmul.f32 %v807, %v801
        %v810 = vlaneseq
        %v811 = vshrl.u32 %v810, 7
        %v812 = vsub.s32 0, %v811
        %v813 = vrot.slane %v728, %v812
        %v815 = vadd.f32 %v813, %v808
        %s816 = scalar_lea.vmem %s13, 8
        %v817 = vld [vmem:[%s816] sm:$0xff]
        %v819 = vsel %vm730, %v817, 0
        %821 = vmatprep.subr.mxu0 0.0
        %822 = vmatpush1.msra.mxu0 0.0
        %823 = vmatprep.subr.mxu0 0.0
        %824 = vmatpush1.msra.mxu0 0.0
        %825 = vmatprep.subr.mxu0 0.0
        %826 = vmatpush1.msra.mxu0 0.0
        %827 = vmatprep.subr.mxu0 0.0
        %828 = vmatpush1.msra.mxu0 0.0
        %829 = vmatprep.subr.mxu0 0.0
        %830 = vmatpush1.msra.mxu0 0.0
        %831 = vmatprep.subr.mxu0 0.0
        %832 = vmatpush1.msra.mxu0 0.0
        %833 = vmatprep.subr.mxu0 0.0
        %834 = vmatpush1.msra.mxu0 0.0
        %835 = vmatprep.subr.mxu0 0.0
        %836 = vmatpush1.msra.mxu0 0.0
        %837 = vmatprep.subr.mxu0 0.0
        %838 = vmatpush1.msra.mxu0 0.0
        %839 = vmatprep.subr.mxu0 0.0
        %840 = vmatpush1.msra.mxu0 0.0
        %841 = vmatprep.subr.mxu0 0.0
        %842 = vmatpush1.msra.mxu0 0.0
        %843 = vmatprep.subr.mxu0 0.0
        %844 = vmatpush1.msra.mxu0 0.0
        %845 = vmatprep.subr.mxu0 0.0
        %846 = vmatpush1.msra.mxu0 0.0
        %847 = vmatprep.subr.mxu0 0.0
        %848 = vmatpush1.msra.mxu0 0.0
        %849 = vmatprep.subr.mxu0 0.0
        %850 = vmatpush1.msra.mxu0 0.0
        %851 = vmatprep.subr.mxu0 0.0
        %852 = vmatpush1.msra.mxu0 %v724
        %853 = vmatprep.subr.mxu0 0.0
        %854 = vmatpush2.msra.mxu0 0.0
        %855 = vmatprep.subr.mxu0 0.0
        %856 = vmatpush2.msra.mxu0 0.0
        %857 = vmatprep.subr.mxu0 0.0
        %858 = vmatpush2.msra.mxu0 0.0
        %859 = vmatprep.subr.mxu0 0.0
        %860 = vmatpush2.msra.mxu0 0.0
        %861 = vmatprep.subr.mxu0 0.0
        %862 = vmatpush2.msra.mxu0 0.0
        %863 = vmatprep.subr.mxu0 0.0
        %864 = vmatpush2.msra.mxu0 0.0
        %865 = vmatprep.subr.mxu0 0.0
        %866 = vmatpush2.msra.mxu0 0.0
        %867 = vmatprep.subr.mxu0 0.0
        %868 = vmatpush2.msra.mxu0 0.0
        %869 = vmatprep.subr.mxu0 0.0
        %870 = vmatpush2.msra.mxu0 0.0
        %871 = vmatprep.subr.mxu0 0.0
        %872 = vmatpush2.msra.mxu0 0.0
        %873 = vmatprep.subr.mxu0 0.0
        %874 = vmatpush2.msra.mxu0 0.0
        %875 = vmatprep.subr.mxu0 0.0
        %876 = vmatpush2.msra.mxu0 0.0
        %877 = vmatprep.subr.mxu0 0.0
        %878 = vmatpush2.msra.mxu0 0.0
        %879 = vmatprep.subr.mxu0 0.0
        %880 = vmatpush2.msra.mxu0 0.0
        %881 = vmatprep.subr.mxu0 0.0
        %882 = vmatpush2.msra.mxu0 0.0
        %883 = vmatprep.subr.mxu0 0.0
        %884 = vmatpush2.msra.mxu0 0.0
        %885 = vmatprep.mubr.f32.mxu0 0.0
        %886 = vmatmul.mubr.f32.gmra.mxu0 %v819
        %v887 = vpop.f32.mrf.mxu0
        %v888 = vadd.f32 0.0, %v887
        %v889 = vpop.f32.mrf.mxu0
        %890 = vdwg.mxu0
        %v891 = vlaneseq
        %v892 = vshrl.u32 %v891, 7
        %v893 = vsub.s32 1, %v892
        %v894 = vrot.slane %v727, %v893
        %v895 = vmul.f32 %v894, %v888
        %v896 = vadd.f32 %v815, %v895
        %s897 = scalar_lea.vmem %s13, 16
        %v898 = vld [vmem:[%s897] sm:$0xff]
        %v900 = vsel %vm730, %v898, 0
        %902 = vmatprep.subr.mxu0 0.0
        %903 = vmatpush1.msra.mxu0 0.0
        %904 = vmatprep.subr.mxu0 0.0
        %905 = vmatpush1.msra.mxu0 0.0
        %906 = vmatprep.subr.mxu0 0.0
        %907 = vmatpush1.msra.mxu0 0.0
        %908 = vmatprep.subr.mxu0 0.0
        %909 = vmatpush1.msra.mxu0 0.0
        %910 = vmatprep.subr.mxu0 0.0
        %911 = vmatpush1.msra.mxu0 0.0
        %912 = vmatprep.subr.mxu0 0.0
        %913 = vmatpush1.msra.mxu0 0.0
        %914 = vmatprep.subr.mxu0 0.0
        %915 = vmatpush1.msra.mxu0 0.0
        %916 = vmatprep.subr.mxu0 0.0
        %917 = vmatpush1.msra.mxu0 0.0
        %918 = vmatprep.subr.mxu0 0.0
        %919 = vmatpush1.msra.mxu0 0.0
        %920 = vmatprep.subr.mxu0 0.0
        %921 = vmatpush1.msra.mxu0 0.0
        %922 = vmatprep.subr.mxu0 0.0
        %923 = vmatpush1.msra.mxu0 0.0
        %924 = vmatprep.subr.mxu0 0.0
        %925 = vmatpush1.msra.mxu0 0.0
        %926 = vmatprep.subr.mxu0 0.0
        %927 = vmatpush1.msra.mxu0 0.0
        %928 = vmatprep.subr.mxu0 0.0
        %929 = vmatpush1.msra.mxu0 0.0
        %930 = vmatprep.subr.mxu0 0.0
        %931 = vmatpush1.msra.mxu0 0.0
        %932 = vmatprep.subr.mxu0 0.0
        %933 = vmatpush1.msra.mxu0 %v724
        %934 = vmatprep.subr.mxu0 0.0
        %935 = vmatpush2.msra.mxu0 0.0
        %936 = vmatprep.subr.mxu0 0.0
        %937 = vmatpush2.msra.mxu0 0.0
        %938 = vmatprep.subr.mxu0 0.0
        %939 = vmatpush2.msra.mxu0 0.0
        %940 = vmatprep.subr.mxu0 0.0
        %941 = vmatpush2.msra.mxu0 0.0
        %942 = vmatprep.subr.mxu0 0.0
        %943 = vmatpush2.msra.mxu0 0.0
        %944 = vmatprep.subr.mxu0 0.0
        %945 = vmatpush2.msra.mxu0 0.0
        %946 = vmatprep.subr.mxu0 0.0
        %947 = vmatpush2.msra.mxu0 0.0
        %948 = vmatprep.subr.mxu0 0.0
        %949 = vmatpush2.msra.mxu0 0.0
        %950 = vmatprep.subr.mxu0 0.0
        %951 = vmatpush2.msra.mxu0 0.0
        %952 = vmatprep.subr.mxu0 0.0
        %953 = vmatpush2.msra.mxu0 0.0
        %954 = vmatprep.subr.mxu0 0.0
        %955 = vmatpush2.msra.mxu0 0.0
        %956 = vmatprep.subr.mxu0 0.0
        %957 = vmatpush2.msra.mxu0 0.0
        %958 = vmatprep.subr.mxu0 0.0
        %959 = vmatpush2.msra.mxu0 0.0
        %960 = vmatprep.subr.mxu0 0.0
        %961 = vmatpush2.msra.mxu0 0.0
        %962 = vmatprep.subr.mxu0 0.0
        %963 = vmatpush2.msra.mxu0 0.0
        %964 = vmatprep.subr.mxu0 0.0
        %965 = vmatpush2.msra.mxu0 0.0
        %966 = vmatprep.mubr.f32.mxu0 0.0
        %967 = vmatmul.mubr.f32.gmra.mxu0 %v900
        %v968 = vpop.f32.mrf.mxu0
        %v969 = vadd.f32 0.0, %v968
        %v970 = vpop.f32.mrf.mxu0
        %971 = vdwg.mxu0
        %v972 = vlaneseq
        %v973 = vshrl.u32 %v972, 7
        %v974 = vsub.s32 2, %v973
        %v975 = vrot.slane %v727, %v974
        %v976 = vmul.f32 %v975, %v969
        %v977 = vadd.f32 %v896, %v976
        %s978 = scalar_lea.vmem %s13, 24
        %v979 = vld [vmem:[%s978] sm:$0xff]
        %v981 = vsel %vm730, %v979, 0
        %983 = vmatprep.subr.mxu0 0.0
        %984 = vmatpush1.msra.mxu0 0.0
        %985 = vmatprep.subr.mxu0 0.0
        %986 = vmatpush1.msra.mxu0 0.0
        %987 = vmatprep.subr.mxu0 0.0
        %988 = vmatpush1.msra.mxu0 0.0
        %989 = vmatprep.subr.mxu0 0.0
        %990 = vmatpush1.msra.mxu0 0.0
        %991 = vmatprep.subr.mxu0 0.0
        %992 = vmatpush1.msra.mxu0 0.0
        %993 = vmatprep.subr.mxu0 0.0
        %994 = vmatpush1.msra.mxu0 0.0
        %995 = vmatprep.subr.mxu0 0.0
        %996 = vmatpush1.msra.mxu0 0.0
        %997 = vmatprep.subr.mxu0 0.0
        %998 = vmatpush1.msra.mxu0 0.0
        %999 = vmatprep.subr.mxu0 0.0
        %1000 = vmatpush1.msra.mxu0 0.0
        %1001 = vmatprep.subr.mxu0 0.0
        %1002 = vmatpush1.msra.mxu0 0.0
        %1003 = vmatprep.subr.mxu0 0.0
        %1004 = vmatpush1.msra.mxu0 0.0
        %1005 = vmatprep.subr.mxu0 0.0
        %1006 = vmatpush1.msra.mxu0 0.0
        %1007 = vmatprep.subr.mxu0 0.0
        %1008 = vmatpush1.msra.mxu0 0.0
        %1009 = vmatprep.subr.mxu0 0.0
        %1010 = vmatpush1.msra.mxu0 0.0
        %1011 = vmatprep.subr.mxu0 0.0
        %1012 = vmatpush1.msra.mxu0 0.0
        %1013 = vmatprep.subr.mxu0 0.0
        %1014 = vmatpush1.msra.mxu0 %v724
        %1015 = vmatprep.subr.mxu0 0.0
        %1016 = vmatpush2.msra.mxu0 0.0
        %1017 = vmatprep.subr.mxu0 0.0
        %1018 = vmatpush2.msra.mxu0 0.0
        %1019 = vmatprep.subr.mxu0 0.0
        %1020 = vmatpush2.msra.mxu0 0.0
        %1021 = vmatprep.subr.mxu0 0.0
        %1022 = vmatpush2.msra.mxu0 0.0
        %1023 = vmatprep.subr.mxu0 0.0
        %1024 = vmatpush2.msra.mxu0 0.0
        %1025 = vmatprep.subr.mxu0 0.0
        %1026 = vmatpush2.msra.mxu0 0.0
        %1027 = vmatprep.subr.mxu0 0.0
        %1028 = vmatpush2.msra.mxu0 0.0
        %1029 = vmatprep.subr.mxu0 0.0
        %1030 = vmatpush2.msra.mxu0 0.0
        %1031 = vmatprep.subr.mxu0 0.0
        %1032 = vmatpush2.msra.mxu0 0.0
        %1033 = vmatprep.subr.mxu0 0.0
        %1034 = vmatpush2.msra.mxu0 0.0
        %1035 = vmatprep.subr.mxu0 0.0
        %1036 = vmatpush2.msra.mxu0 0.0
        %1037 = vmatprep.subr.mxu0 0.0
        %1038 = vmatpush2.msra.mxu0 0.0
        %1039 = vmatprep.subr.mxu0 0.0
        %1040 = vmatpush2.msra.mxu0 0.0
        %1041 = vmatprep.subr.mxu0 0.0
        %1042 = vmatpush2.msra.mxu0 0.0
        %1043 = vmatprep.subr.mxu0 0.0
        %1044 = vmatpush2.msra.mxu0 0.0
        %1045 = vmatprep.subr.mxu0 0.0
        %1046 = vmatpush2.msra.mxu0 0.0
        %1047 = vmatprep.mubr.f32.mxu0 0.0
        %1048 = vmatmul.mubr.f32.gmra.mxu0 %v981
        %v1049 = vpop.f32.mrf.mxu0
        %v1050 = vadd.f32 0.0, %v1049
        %v1051 = vpop.f32.mrf.mxu0
        %1052 = vdwg.mxu0
        %v1053 = vlaneseq
        %v1054 = vshrl.u32 %v1053, 7
        %v1055 = vsub.s32 3, %v1054
        %v1056 = vrot.slane %v727, %v1055
        %v1057 = vmul.f32 %v1056, %v1050
        %v1058 = vadd.f32 %v977, %v1057
        %v1059 = vxor.u32 %v1058, 2147483648
        %v1060 = vmul.f32 %v1059, 1.442695
        %v1061 = vpow.pop %v1060
        %v1062 = vadd.f32 %v1061, 1.0
        %v1063 = vrcp.pop %v1062
        %v1064 = vmul.f32 1.0, %v1063
        %v1065 = vmul.f32 %v1058, %v1064
        %v1066 = vld [vmem:[%s7] sm:$0xff]
        %v1067 = vld [vmem:[%s7 + $0x8] sm:$0xff]
        %v1068 = vld [vmem:[%s7 + $0x10] sm:$0xff]
        %v1069 = vld [vmem:[%s7 + $0x18] sm:$0xff]
        %vm1070 = vcmask 523264
        %v1072 = vsel %vm1070, %v1066, 0
        %v1075 = vsel %vm1070, %v1067, 0
        %v1078 = vsel %vm1070, %v1068, 0
        %v1081 = vsel %vm1070, %v1069, 0
        %v1084 = vsel %vm1070, %v1065, 0
        %1086 = vmatprep.subr.mxu0 0.0
        %1087 = vmatpush1.xpose.msra.mxu0 0.0
        %1088 = vmatprep.subr.mxu0 0.0
        %1089 = vmatpush1.xpose.msra.mxu0 0.0
        %1090 = vmatprep.subr.mxu0 0.0
        %1091 = vmatpush1.xpose.msra.mxu0 0.0
        %1092 = vmatprep.subr.mxu0 0.0
        %1093 = vmatpush1.xpose.msra.mxu0 0.0
        %1094 = vmatprep.subr.mxu0 0.0
        %1095 = vmatpush1.xpose.msra.mxu0 0.0
        %1096 = vmatprep.subr.mxu0 0.0
        %1097 = vmatpush1.xpose.msra.mxu0 0.0
        %1098 = vmatprep.subr.mxu0 0.0
        %1099 = vmatpush1.xpose.msra.mxu0 0.0
        %1100 = vmatprep.subr.mxu0 0.0
        %1101 = vmatpush1.xpose.msra.mxu0 0.0
        %1102 = vmatprep.subr.mxu0 0.0
        %1103 = vmatpush1.xpose.msra.mxu0 0.0
        %1104 = vmatprep.subr.mxu0 0.0
        %1105 = vmatpush1.xpose.msra.mxu0 0.0
        %1106 = vmatprep.subr.mxu0 0.0
        %1107 = vmatpush1.xpose.msra.mxu0 0.0
        %1108 = vmatprep.subr.mxu0 0.0
        %1109 = vmatpush1.xpose.msra.mxu0 0.0
        %1110 = vmatprep.subr.mxu0 0.0
        %1111 = vmatpush1.xpose.msra.mxu0 0.0
        %1112 = vmatprep.subr.mxu0 0.0
        %1113 = vmatpush1.xpose.msra.mxu0 0.0
        %1114 = vmatprep.subr.mxu0 0.0
        %1115 = vmatpush1.xpose.msra.mxu0 0.0
        %1116 = vmatprep.subr.mxu0 0.0
        %1117 = vmatpush1.xpose.msra.mxu0 %v1084
        %1118 = vmatprep.subr.mxu0 0.0
        %1119 = vmatpush2.xpose.msra.mxu0 0.0
        %1120 = vmatprep.subr.mxu0 0.0
        %1121 = vmatpush2.xpose.msra.mxu0 0.0
        %1122 = vmatprep.subr.mxu0 0.0
        %1123 = vmatpush2.xpose.msra.mxu0 0.0
        %1124 = vmatprep.subr.mxu0 0.0
        %1125 = vmatpush2.xpose.msra.mxu0 0.0
        %1126 = vmatprep.subr.mxu0 0.0
        %1127 = vmatpush2.xpose.msra.mxu0 0.0
        %1128 = vmatprep.subr.mxu0 0.0
        %1129 = vmatpush2.xpose.msra.mxu0 0.0
        %1130 = vmatprep.subr.mxu0 0.0
        %1131 = vmatpush2.xpose.msra.mxu0 0.0
        %1132 = vmatprep.subr.mxu0 0.0
        %1133 = vmatpush2.xpose.msra.mxu0 0.0
        %1134 = vmatprep.subr.mxu0 0.0
        %1135 = vmatpush2.xpose.msra.mxu0 0.0
        %1136 = vmatprep.subr.mxu0 0.0
        %1137 = vmatpush2.xpose.msra.mxu0 0.0
        %1138 = vmatprep.subr.mxu0 0.0
        %1139 = vmatpush2.xpose.msra.mxu0 0.0
        %1140 = vmatprep.subr.mxu0 0.0
        %1141 = vmatpush2.xpose.msra.mxu0 0.0
        %1142 = vmatprep.subr.mxu0 0.0
        %1143 = vmatpush2.xpose.msra.mxu0 0.0
        %1144 = vmatprep.subr.mxu0 0.0
        %1145 = vmatpush2.xpose.msra.mxu0 0.0
        %1146 = vmatprep.subr.mxu0 0.0
        %1147 = vmatpush2.xpose.msra.mxu0 0.0
        %1148 = vmatprep.subr.mxu0 0.0
        %1149 = vmatpush2.xpose.msra.mxu0 0.0
        %1150 = vmatprep.mubr.f32.mxu0 0.0
        %1151 = vmatmul.mubr.f32.gmra.mxu0 %v1072
        %v1152 = vpop.f32.mrf.mxu0
        %v1153 = vadd.f32 0.0, %v1152
        %v1154 = vpop.f32.mrf.mxu0
        %1155 = vmatprep.mubr.f32.mxu0 0.0
        %1156 = vmatmul.mubr.f32.gmra.mxu0 %v1075
        %v1157 = vpop.f32.mrf.mxu0
        %v1158 = vadd.f32 0.0, %v1157
        %v1159 = vpop.f32.mrf.mxu0
        %1160 = vmatprep.mubr.f32.mxu0 0.0
        %1161 = vmatmul.mubr.f32.gmra.mxu0 %v1078
        %v1162 = vpop.f32.mrf.mxu0
        %v1163 = vadd.f32 0.0, %v1162
        %v1164 = vpop.f32.mrf.mxu0
        %1165 = vmatprep.mubr.f32.mxu0 0.0
        %1166 = vmatmul.mubr.f32.gmra.mxu0 %v1081
        %v1167 = vpop.f32.mrf.mxu0
        %v1168 = vadd.f32 0.0, %v1167
        %v1169 = vpop.f32.mrf.mxu0
        %1170 = vdwg.mxu0
        %v1171 = vld [vmem:[%s8] sm:$0xff]
        %v1172 = vld [vmem:[%s8 + $0x8] sm:$0xff]
        %v1173 = vld [vmem:[%s8 + $0x10] sm:$0xff]
        %v1174 = vld [vmem:[%s8 + $0x18] sm:$0xff]
        %v1175 = vld [vmem:[%s8 + $0x20] sm:$0xff]
        %v1176 = vld [vmem:[%s8 + $0x28] sm:$0xff]
        %v1177 = vld [vmem:[%s8 + $0x30] sm:$0xff]
        %v1178 = vld [vmem:[%s8 + $0x38] sm:$0xff]
        %v1179 = vld [vmem:[%s9] sm:$0x1]
        %v1181 = vlaneseq
        %v1182 = vshrl.u32 %v1181, 7
        %v1183 = vsub.s32 0, %v1182
        %v1184 = vrot.slane %v1179, %v1183
        %1186 = vmatprep.subr.mxu0 0.0
        %1187 = vmatpush1.msra.mxu0 0.0
        %1188 = vmatprep.subr.mxu0 0.0
        %1189 = vmatpush1.msra.mxu0 0.0
        %1190 = vmatprep.subr.mxu0 0.0
        %1191 = vmatpush1.msra.mxu0 0.0
        %1192 = vmatprep.subr.mxu0 0.0
        %1193 = vmatpush1.msra.mxu0 0.0
        %1194 = vmatprep.subr.mxu0 0.0
        %1195 = vmatpush1.msra.mxu0 0.0
        %1196 = vmatprep.subr.mxu0 0.0
        %1197 = vmatpush1.msra.mxu0 0.0
        %1198 = vmatprep.subr.mxu0 0.0
        %1199 = vmatpush1.msra.mxu0 0.0
        %1200 = vmatprep.subr.mxu0 0.0
        %1201 = vmatpush1.msra.mxu0 0.0
        %1202 = vmatprep.subr.mxu0 0.0
        %1203 = vmatpush1.msra.mxu0 %v1178
        %1204 = vmatprep.subr.mxu0 0.0
        %1205 = vmatpush1.msra.mxu0 %v1177
        %1206 = vmatprep.subr.mxu0 0.0
        %1207 = vmatpush1.msra.mxu0 %v1176
        %1208 = vmatprep.subr.mxu0 0.0
        %1209 = vmatpush1.msra.mxu0 %v1175
        %1210 = vmatprep.subr.mxu0 0.0
        %1211 = vmatpush1.msra.mxu0 %v1174
        %1212 = vmatprep.subr.mxu0 0.0
        %1213 = vmatpush1.msra.mxu0 %v1173
        %1214 = vmatprep.subr.mxu0 0.0
        %1215 = vmatpush1.msra.mxu0 %v1172
        %1216 = vmatprep.subr.mxu0 0.0
        %1217 = vmatpush1.msra.mxu0 %v1171
        %1218 = vmatprep.subr.mxu0 0.0
        %1219 = vmatpush2.msra.mxu0 0.0
        %1220 = vmatprep.subr.mxu0 0.0
        %1221 = vmatpush2.msra.mxu0 0.0
        %1222 = vmatprep.subr.mxu0 0.0
        %1223 = vmatpush2.msra.mxu0 0.0
        %1224 = vmatprep.subr.mxu0 0.0
        %1225 = vmatpush2.msra.mxu0 0.0
        %1226 = vmatprep.subr.mxu0 0.0
        %1227 = vmatpush2.msra.mxu0 0.0
        %1228 = vmatprep.subr.mxu0 0.0
        %1229 = vmatpush2.msra.mxu0 0.0
        %1230 = vmatprep.subr.mxu0 0.0
        %1231 = vmatpush2.msra.mxu0 0.0
        %1232 = vmatprep.subr.mxu0 0.0
        %1233 = vmatpush2.msra.mxu0 0.0
        %1234 = vmatprep.subr.mxu0 0.0
        %1235 = vmatpush2.msra.mxu0 0.0
        %1236 = vmatprep.subr.mxu0 0.0
        %1237 = vmatpush2.msra.mxu0 0.0
        %1238 = vmatprep.subr.mxu0 0.0
        %1239 = vmatpush2.msra.mxu0 0.0
        %1240 = vmatprep.subr.mxu0 0.0
        %1241 = vmatpush2.msra.mxu0 0.0
        %1242 = vmatprep.subr.mxu0 0.0
        %1243 = vmatpush2.msra.mxu0 0.0
        %1244 = vmatprep.subr.mxu0 0.0
        %1245 = vmatpush2.msra.mxu0 0.0
        %1246 = vmatprep.subr.mxu0 0.0
        %1247 = vmatpush2.msra.mxu0 0.0
        %1248 = vmatprep.subr.mxu0 0.0
        %1249 = vmatpush2.msra.mxu0 0.0
        %1250 = vmatprep.mubr.f32.mxu0 0.0
        %1251 = vmatmul.mubr.f32.gmra.mxu0 %v1084
        %v1252 = vpop.f32.mrf.mxu0
        %v1253 = vadd.f32 %v1184, %v1252
        %v1254 = vpop.f32.mrf.mxu0
        %1255 = vdwg.mxu0
        %v1256 = vmax.f32 %v1253, 0.0
        %v1257 = vand.u32 2147483647, %v1253
        %v1258 = vsub.f32 0.0, %v1257
        %v1259 = vmul.f32 %v1258, 1.442695
        %v1260 = vpow.pop %v1259
        %v1261 = vadd.f32 %v1260, 1.0
        %v1262 = vlog2.pop %v1261
        %v1263 = vmul.f32 %v1262, 0.6931472
        %v1264 = vadd.f32 %v1256, %v1263
        %v1265 = vld [vmem:[%s10] sm:$0xff]
        %v1266 = vld [vmem:[%s10 + $0x8] sm:$0xff]
        %v1267 = vld [vmem:[%s11] sm:$0x1]
        %v1268 = vlaneseq
        %v1269 = vshrl.u32 %v1268, 7
        %v1270 = vsub.s32 0, %v1269
        %v1271 = vrot.slane %v1264, %v1270
        %v1272 = vmul.f32 %v1271, %v1265
        %v1273 = vmul.f32 %v1271, %v1266
        %v1274 = vmul.f32 %v1272, 1.442695
        %v1275 = vpow.pop %v1274
        %v1276 = vmul.f32 %v1273, 1.442695
        %v1277 = vpow.pop %v1276
        %v1278 = vmul.f32 %v1275, 0.0
        %v1279 = vmul.f32 %v1277, 0.0
        %v1280 = vmul.f32 %v1264, %v1065
        %1282 = vset.pattern.permute.xlu0 0
        %1283 = vperm.xlu0 %1282, %v1153
        %v1284 = vpop.permute.xlu0 %1283
        %1287 = vset.pattern.permute.xlu0 0
        %1288 = vperm.xlu0 %1287, %v1158
        %v1289 = vpop.permute.xlu0 %1288
        %v1291 = vlaneseq
        %v1292 = vshrl.u32 %v1291, 7
        %v1293 = vsub.s32 0, %v1292
        %v1294 = vrot.slane %v1280, %v1293
        %v1295 = vmul.f32 %v1284, %v1294
        %v1296 = vmul.f32 %v1289, %v1294
        %v1297 = vadd.f32 %v1278, %v1295
        %v1298 = vadd.f32 %v1279, %v1296
        %1300 = vset.pattern.permute.xlu0 0
        %1301 = vperm.xlu0 %1300, %v1163
        %v1302 = vpop.permute.xlu0 %1301
        %1305 = vset.pattern.permute.xlu0 0
        %1306 = vperm.xlu0 %1305, %v1168
        %v1307 = vpop.permute.xlu0 %1306
        %v1309 = vmul.f32 %v1302, %v1297
        %v1310 = vmul.f32 %v1307, %v1298
        %v1311 = vsel %vm1070, %v1309, 0.0
        %v1312 = vsel %vm1070, %v1310, 0.0
        %v1313 = vadd.f32 %v1311, %v1312
        %v1314 = vrot.slane %v1313, 4
        %v1315 = vadd.f32 %v1313, %v1314
        %v1316 = vrot.slane %v1315, 2
        %v1317 = vadd.f32 %v1315, %v1316
        %v1318 = vrot.slane %v1317, 1
        %v1319 = vadd.f32 %v1317, %v1318
        %v1320 = vmul.f32 %v1267, %v1065
        %v1321 = vadd.f32 %v1319, %v1320
        %v1322 = vxor.u32 %v724, 2147483648
        %v1323 = vmul.f32 %v1322, 1.442695
        %v1324 = vpow.pop %v1323
        %v1325 = vadd.f32 %v1324, 1.0
        %v1326 = vrcp.pop %v1325
        %v1327 = vmul.f32 1.0, %v1326
        %v1328 = vmul.f32 %v724, %v1327
        %1330 = vrot.lane.b32.xlu0 %v1328, 64
        %v1331 = vpop.permute.xlu0 %1330
        %v1333 = vmul.f32 %v1321, %v1331
        %vm1334 = vcmp.eq.s32.totalorder %v618, 0
        %v1335 = vsel %vm1334, 1, 0
        %v1336 = vcvt.s32.f32 %v1335
        %v1337 = vlaneseq
        %v1338 = vshrl.u32 %v1337, 7
        %v1339 = vsub.s32 0, %v1338
        %v1340 = vrot.slane %v1333, %v1339
        %v1341 = vmul.f32 %v1336, %v1340
        %v1342 = vadd.f32 %v1341, 0.0
        %v1343 = vlaneseq
        %v1344 = vshrl.u32 %v1343, 7
        %v1345 = vsub.s32 1, %v1344
        %v1346 = vrot.slane %v1264, %v1345
        %v1347 = vmul.f32 %v1346, %v1265
        %v1348 = vmul.f32 %v1346, %v1266
        %v1349 = vmul.f32 %v1347, 1.442695
        %v1350 = vpow.pop %v1349
        %v1351 = vmul.f32 %v1348, 1.442695
        %v1352 = vpow.pop %v1351
        %v1353 = vmul.f32 %v1350, %v1297
        %v1354 = vmul.f32 %v1352, %v1298
        %1355 = vset.pattern.permute.xlu0 1
        %1356 = vperm.xlu0 %1355, %v1153
        %v1357 = vpop.permute.xlu0 %1356
        %1359 = vset.pattern.permute.xlu0 1
        %1360 = vperm.xlu0 %1359, %v1158
        %v1361 = vpop.permute.xlu0 %1360
        %v1363 = vlaneseq
        %v1364 = vshrl.u32 %v1363, 7
        %v1365 = vsub.s32 1, %v1364
        %v1366 = vrot.slane %v1280, %v1365
        %v1367 = vmul.f32 %v1357, %v1366
        %v1368 = vmul.f32 %v1361, %v1366
        %v1369 = vadd.f32 %v1353, %v1367
        %v1370 = vadd.f32 %v1354, %v1368
        %1371 = vset.pattern.permute.xlu0 1
        %1372 = vperm.xlu0 %1371, %v1163
        %v1373 = vpop.permute.xlu0 %1372
        %1375 = vset.pattern.permute.xlu0 1
        %1376 = vperm.xlu0 %1375, %v1168
        %v1377 = vpop.permute.xlu0 %1376
        %v1379 = vmul.f32 %v1373, %v1369
        %v1380 = vmul.f32 %v1377, %v1370
        %v1381 = vsel %vm1070, %v1379, 0.0
        %v1382 = vsel %vm1070, %v1380, 0.0
        %v1383 = vadd.f32 %v1381, %v1382
        %v1384 = vrot.slane %v1383, 4
        %v1385 = vadd.f32 %v1383, %v1384
        %v1386 = vrot.slane %v1385, 2
        %v1387 = vadd.f32 %v1385, %v1386
        %v1388 = vrot.slane %v1387, 1
        %v1389 = vadd.f32 %v1387, %v1388
        %v1391 = vunpack.c.l.s4 1966171168
        %v1392 = vunpack.c.0.s8 %v1391
        %v1393 = vlaneseq
        %v1394 = vshrl.u32 %v1393, 7
        %v1395 = vsub.s32 %v1392, %v1394
        %v1396 = vrot.slane %v1065, %v1395
        %v1397 = vcombine.high %v1396, %v1396
        %v1399 = vunpack.c.l.s4 1966171168
        %v1400 = vunpack.c.0.s8 %v1399
        %v1401 = vlaneseq
        %v1402 = vshrl.u32 %v1401, 7
        %v1403 = vsub.s32 %v1400, %v1402
        %v1404 = vrot.slane %v1396, %v1403
        %v1406 = vunpack.c.l.s4 1966171168
        %v1407 = vunpack.c.0.s8 %v1406
        %v1408 = vlaneseq
        %v1409 = vshrl.u32 %v1408, 7
        %v1410 = vsub.s32 %v1407, %v1409
        %v1411 = vrot.slane %v1397, %v1410
        %v1413 = vmul.f32 %v1267, %v1411
        %v1414 = vadd.f32 %v1389, %v1413
        %v1415 = vrot.slane %v1328, 1
        %1416 = vrot.lane.b32.xlu0 %v1415, 64
        %v1417 = vpop.permute.xlu0 %1416
        %v1419 = vmul.f32 %v1414, %v1417
        %vm1420 = vcmp.eq.s32.totalorder %v618, 1
        %v1421 = vsel %vm1420, 1, 0
        %v1422 = vcvt.s32.f32 %v1421
        %v1423 = vlaneseq
        %v1424 = vshrl.u32 %v1423, 7
        %v1425 = vsub.s32 0, %v1424
        %v1426 = vrot.slane %v1419, %v1425
        %v1427 = vmul.f32 %v1422, %v1426
        %v1428 = vadd.f32 %v1342, %v1427
        %v1429 = vlaneseq
        %v1430 = vshrl.u32 %v1429, 7
        %v1431 = vsub.s32 2, %v1430
        %v1432 = vrot.slane %v1264, %v1431
        %v1433 = vmul.f32 %v1432, %v1265
        %v1434 = vmul.f32 %v1432, %v1266
        %v1435 = vmul.f32 %v1433, 1.442695
        %v1436 = vpow.pop %v1435
        %v1437 = vmul.f32 %v1434, 1.442695
        %v1438 = vpow.pop %v1437
        %v1439 = vmul.f32 %v1436, %v1369
        %v1440 = vmul.f32 %v1438, %v1370
        %1441 = vset.pattern.permute.xlu0 2
        %1442 = vperm.xlu0 %1441, %v1153
        %v1443 = vpop.permute.xlu0 %1442
        %1445 = vset.pattern.permute.xlu0 2
        %1446 = vperm.xlu0 %1445, %v1158
        %v1447 = vpop.permute.xlu0 %1446
        %v1449 = vlaneseq
        %v1450 = vshrl.u32 %v1449, 7
        %v1451 = vsub.s32 2, %v1450
        %v1452 = vrot.slane %v1280, %v1451
        %v1453 = vmul.f32 %v1443, %v1452
        %v1454 = vmul.f32 %v1447, %v1452
        %v1455 = vadd.f32 %v1439, %v1453
        %v1456 = vadd.f32 %v1440, %v1454
        %1457 = vset.pattern.permute.xlu0 2
        %1458 = vperm.xlu0 %1457, %v1163
        %v1459 = vpop.permute.xlu0 %1458
        %1461 = vset.pattern.permute.xlu0 2
        %1462 = vperm.xlu0 %1461, %v1168
        %v1463 = vpop.permute.xlu0 %1462
        %v1465 = vmul.f32 %v1459, %v1455
        %v1466 = vmul.f32 %v1463, %v1456
        %v1467 = vsel %vm1070, %v1465, 0.0
        %v1468 = vsel %vm1070, %v1466, 0.0
        %v1469 = vadd.f32 %v1467, %v1468
        %v1470 = vrot.slane %v1469, 4
        %v1471 = vadd.f32 %v1469, %v1470
        %v1472 = vrot.slane %v1471, 2
        %v1473 = vadd.f32 %v1471, %v1472
        %v1474 = vrot.slane %v1473, 1
        %v1475 = vadd.f32 %v1473, %v1474
        %v1476 = vcombine.high %v1404, %v1404
        %v1478 = vmul.f32 %v1267, %v1476
        %v1479 = vadd.f32 %v1475, %v1478
        %v1480 = vrot.slane %v1328, 2
        %1481 = vrot.lane.b32.xlu0 %v1480, 64
        %v1482 = vpop.permute.xlu0 %1481
        %v1484 = vmul.f32 %v1479, %v1482
        %vm1485 = vcmp.eq.s32.totalorder %v618, 2
        %v1486 = vsel %vm1485, 1, 0
        %v1487 = vcvt.s32.f32 %v1486
        %v1488 = vlaneseq
        %v1489 = vshrl.u32 %v1488, 7
        %v1490 = vsub.s32 0, %v1489
        %v1491 = vrot.slane %v1484, %v1490
        %v1492 = vmul.f32 %v1487, %v1491
        %v1493 = vadd.f32 %v1428, %v1492
        %v1494 = vlaneseq
        %v1495 = vshrl.u32 %v1494, 7
        %v1496 = vsub.s32 3, %v1495
        %v1497 = vrot.slane %v1264, %v1496
        %v1498 = vmul.f32 %v1497, %v1265
        %v1499 = vmul.f32 %v1497, %v1266
        %v1500 = vmul.f32 %v1498, 1.442695
        %v1501 = vpow.pop %v1500
        %v1502 = vmul.f32 %v1499, 1.442695
        %v1503 = vpow.pop %v1502
        %v1504 = vmul.f32 %v1501, %v1455
        %v1505 = vmul.f32 %v1503, %v1456
        %1506 = vset.pattern.permute.xlu0 3
        %1507 = vperm.xlu0 %1506, %v1153
        %v1508 = vpop.permute.xlu0 %1507
        %1510 = vset.pattern.permute.xlu0 3
        %1511 = vperm.xlu0 %1510, %v1158
        %v1512 = vpop.permute.xlu0 %1511
        %v1514 = vlaneseq
        %v1515 = vshrl.u32 %v1514, 7
        %v1516 = vsub.s32 3, %v1515
        %v1517 = vrot.slane %v1280, %v1516
        %v1518 = vmul.f32 %v1508, %v1517
        %v1519 = vmul.f32 %v1512, %v1517
        %v1520 = vadd.f32 %v1504, %v1518
        %v1521 = vadd.f32 %v1505, %v1519
        %1522 = vset.pattern.permute.xlu0 3
        %1523 = vperm.xlu0 %1522, %v1163
        %v1524 = vpop.permute.xlu0 %1523
        %1526 = vset.pattern.permute.xlu0 3
        %1527 = vperm.xlu0 %1526, %v1168
        %v1528 = vpop.permute.xlu0 %1527
        %v1530 = vmul.f32 %v1524, %v1520
        %v1531 = vmul.f32 %v1528, %v1521
        %v1532 = vsel %vm1070, %v1530, 0.0
        %v1533 = vsel %vm1070, %v1531, 0.0
        %v1534 = vadd.f32 %v1532, %v1533
        %v1535 = vrot.slane %v1534, 4
        %v1536 = vadd.f32 %v1534, %v1535
        %v1537 = vrot.slane %v1536, 2
        %v1538 = vadd.f32 %v1536, %v1537
        %v1539 = vrot.slane %v1538, 1
        %v1540 = vadd.f32 %v1538, %v1539
        %v1541 = vcombine.high %v1411, %v1411
        %v1543 = vmul.f32 %v1267, %v1541
        %v1544 = vadd.f32 %v1540, %v1543
        %v1545 = vrot.slane %v1328, 3
        %1546 = vrot.lane.b32.xlu0 %v1545, 64
        %v1547 = vpop.permute.xlu0 %1546
        %v1549 = vmul.f32 %v1544, %v1547
        %vm1550 = vcmp.eq.s32.totalorder %v618, 3
        %v1551 = vsel %vm1550, 1, 0
        %v1552 = vcvt.s32.f32 %v1551
        %v1553 = vlaneseq
        %v1554 = vshrl.u32 %v1553, 7
        %v1555 = vsub.s32 0, %v1554
        %v1556 = vrot.slane %v1549, %v1555
        %v1557 = vmul.f32 %v1552, %v1556
        %v1558 = vadd.f32 %v1493, %v1557
        %v1559 = vlaneseq
        %v1560 = vshrl.u32 %v1559, 7
        %v1561 = vsub.s32 4, %v1560
        %v1562 = vrot.slane %v1264, %v1561
        %v1563 = vmul.f32 %v1562, %v1265
        %v1564 = vmul.f32 %v1562, %v1266
        %v1565 = vmul.f32 %v1563, 1.442695
        %v1566 = vpow.pop %v1565
        %v1567 = vmul.f32 %v1564, 1.442695
        %v1568 = vpow.pop %v1567
        %v1569 = vmul.f32 %v1566, %v1520
        %v1570 = vmul.f32 %v1568, %v1521
        %1571 = vset.pattern.permute.xlu0 4
        %1572 = vperm.xlu0 %1571, %v1153
        %v1573 = vpop.permute.xlu0 %1572
        %1575 = vset.pattern.permute.xlu0 4
        %1576 = vperm.xlu0 %1575, %v1158
        %v1577 = vpop.permute.xlu0 %1576
        %v1579 = vlaneseq
        %v1580 = vshrl.u32 %v1579, 7
        %v1581 = vsub.s32 4, %v1580
        %v1582 = vrot.slane %v1280, %v1581
        %v1583 = vmul.f32 %v1573, %v1582
        %v1584 = vmul.f32 %v1577, %v1582
        %v1585 = vadd.f32 %v1569, %v1583
        %v1586 = vadd.f32 %v1570, %v1584
        %1587 = vset.pattern.permute.xlu0 4
        %1588 = vperm.xlu0 %1587, %v1163
        %v1589 = vpop.permute.xlu0 %1588
        %1591 = vset.pattern.permute.xlu0 4
        %1592 = vperm.xlu0 %1591, %v1168
        %v1593 = vpop.permute.xlu0 %1592
        %v1595 = vmul.f32 %v1589, %v1585
        %v1596 = vmul.f32 %v1593, %v1586
        %v1597 = vsel %vm1070, %v1595, 0.0
        %v1598 = vsel %vm1070, %v1596, 0.0
        %v1599 = vadd.f32 %v1597, %v1598
        %v1600 = vrot.slane %v1599, 4
        %v1601 = vadd.f32 %v1599, %v1600
        %v1602 = vrot.slane %v1601, 2
        %v1603 = vadd.f32 %v1601, %v1602
        %v1604 = vrot.slane %v1603, 1
        %v1605 = vadd.f32 %v1603, %v1604
        %v1606 = vcombine.high %v1065, %v1065
        %v1608 = vunpack.c.l.s4 1966171168
        %v1609 = vunpack.c.0.s8 %v1608
        %v1610 = vlaneseq
        %v1611 = vshrl.u32 %v1610, 7
        %v1612 = vsub.s32 %v1609, %v1611
        %v1613 = vrot.slane %v1606, %v1612
        %v1615 = vunpack.c.l.s4 1966171168
        %v1616 = vunpack.c.0.s8 %v1615
        %v1617 = vlaneseq
        %v1618 = vshrl.u32 %v1617, 7
        %v1619 = vsub.s32 %v1616, %v1618
        %v1620 = vrot.slane %v1613, %v1619
        %v1622 = vmul.f32 %v1267, %v1620
        %v1623 = vadd.f32 %v1605, %v1622
        %v1624 = vrot.slane %v1328, 4
        %1625 = vrot.lane.b32.xlu0 %v1624, 64
        %v1626 = vpop.permute.xlu0 %1625
        %v1628 = vmul.f32 %v1623, %v1626
        %vm1629 = vcmp.eq.s32.totalorder %v618, 4
        %v1630 = vsel %vm1629, 1, 0
        %v1631 = vcvt.s32.f32 %v1630
        %v1632 = vlaneseq
        %v1633 = vshrl.u32 %v1632, 7
        %v1634 = vsub.s32 0, %v1633
        %v1635 = vrot.slane %v1628, %v1634
        %v1636 = vmul.f32 %v1631, %v1635
        %v1637 = vadd.f32 %v1558, %v1636
        %v1638 = vlaneseq
        %v1639 = vshrl.u32 %v1638, 7
        %v1640 = vsub.s32 5, %v1639
        %v1641 = vrot.slane %v1264, %v1640
        %v1642 = vmul.f32 %v1641, %v1265
        %v1643 = vmul.f32 %v1641, %v1266
        %v1644 = vmul.f32 %v1642, 1.442695
        %v1645 = vpow.pop %v1644
        %v1646 = vmul.f32 %v1643, 1.442695
        %v1647 = vpow.pop %v1646
        %v1648 = vmul.f32 %v1645, %v1585
        %v1649 = vmul.f32 %v1647, %v1586
        %1650 = vset.pattern.permute.xlu0 5
        %1651 = vperm.xlu0 %1650, %v1153
        %v1652 = vpop.permute.xlu0 %1651
        %1654 = vset.pattern.permute.xlu0 5
        %1655 = vperm.xlu0 %1654, %v1158
        %v1656 = vpop.permute.xlu0 %1655
        %v1658 = vlaneseq
        %v1659 = vshrl.u32 %v1658, 7
        %v1660 = vsub.s32 5, %v1659
        %v1661 = vrot.slane %v1280, %v1660
        %v1662 = vmul.f32 %v1652, %v1661
        %v1663 = vmul.f32 %v1656, %v1661
        %v1664 = vadd.f32 %v1648, %v1662
        %v1665 = vadd.f32 %v1649, %v1663
        %1666 = vset.pattern.permute.xlu0 5
        %1667 = vperm.xlu0 %1666, %v1163
        %v1668 = vpop.permute.xlu0 %1667
        %1670 = vset.pattern.permute.xlu0 5
        %1671 = vperm.xlu0 %1670, %v1168
        %v1672 = vpop.permute.xlu0 %1671
        %v1674 = vmul.f32 %v1668, %v1664
        %v1675 = vmul.f32 %v1672, %v1665
        %v1676 = vsel %vm1070, %v1674, 0.0
        %v1677 = vsel %vm1070, %v1675, 0.0
        %v1678 = vadd.f32 %v1676, %v1677
        %v1679 = vrot.slane %v1678, 4
        %v1680 = vadd.f32 %v1678, %v1679
        %v1681 = vrot.slane %v1680, 2
        %v1682 = vadd.f32 %v1680, %v1681
        %v1683 = vrot.slane %v1682, 1
        %v1684 = vadd.f32 %v1682, %v1683
        %v1685 = vcombine.high %v1613, %v1613
        %v1687 = vunpack.c.l.s4 1966171168
        %v1688 = vunpack.c.0.s8 %v1687
        %v1689 = vlaneseq
        %v1690 = vshrl.u32 %v1689, 7
        %v1691 = vsub.s32 %v1688, %v1690
        %v1692 = vrot.slane %v1685, %v1691
        %v1694 = vmul.f32 %v1267, %v1692
        %v1695 = vadd.f32 %v1684, %v1694
        %v1696 = vrot.slane %v1328, 5
        %1697 = vrot.lane.b32.xlu0 %v1696, 64
        %v1698 = vpop.permute.xlu0 %1697
        %v1700 = vmul.f32 %v1695, %v1698
        %vm1701 = vcmp.eq.s32.totalorder %v618, 5
        %v1702 = vsel %vm1701, 1, 0
        %v1703 = vcvt.s32.f32 %v1702
        %v1704 = vlaneseq
        %v1705 = vshrl.u32 %v1704, 7
        %v1706 = vsub.s32 0, %v1705
        %v1707 = vrot.slane %v1700, %v1706
        %v1708 = vmul.f32 %v1703, %v1707
        %v1709 = vadd.f32 %v1637, %v1708
        %v1710 = vlaneseq
        %v1711 = vshrl.u32 %v1710, 7
        %v1712 = vsub.s32 6, %v1711
        %v1713 = vrot.slane %v1264, %v1712
        %v1714 = vmul.f32 %v1713, %v1265
        %v1715 = vmul.f32 %v1713, %v1266
        %v1716 = vmul.f32 %v1714, 1.442695
        %v1717 = vpow.pop %v1716
        %v1718 = vmul.f32 %v1715, 1.442695
        %v1719 = vpow.pop %v1718
        %v1720 = vmul.f32 %v1717, %v1664
        %v1721 = vmul.f32 %v1719, %v1665
        %1722 = vset.pattern.permute.xlu0 6
        %1723 = vperm.xlu0 %1722, %v1153
        %v1724 = vpop.permute.xlu0 %1723
        %1726 = vset.pattern.permute.xlu0 6
        %1727 = vperm.xlu0 %1726, %v1158
        %v1728 = vpop.permute.xlu0 %1727
        %v1730 = vlaneseq
        %v1731 = vshrl.u32 %v1730, 7
        %v1732 = vsub.s32 6, %v1731
        %v1733 = vrot.slane %v1280, %v1732
        %v1734 = vmul.f32 %v1724, %v1733
        %v1735 = vmul.f32 %v1728, %v1733
        %v1736 = vadd.f32 %v1720, %v1734
        %v1737 = vadd.f32 %v1721, %v1735
        %1738 = vset.pattern.permute.xlu0 6
        %1739 = vperm.xlu0 %1738, %v1163
        %v1740 = vpop.permute.xlu0 %1739
        %1742 = vset.pattern.permute.xlu0 6
        %1743 = vperm.xlu0 %1742, %v1168
        %v1744 = vpop.permute.xlu0 %1743
        %v1746 = vmul.f32 %v1740, %v1736
        %v1747 = vmul.f32 %v1744, %v1737
        %v1748 = vsel %vm1070, %v1746, 0.0
        %v1749 = vsel %vm1070, %v1747, 0.0
        %v1750 = vadd.f32 %v1748, %v1749
        %v1751 = vrot.slane %v1750, 4
        %v1752 = vadd.f32 %v1750, %v1751
        %v1753 = vrot.slane %v1752, 2
        %v1754 = vadd.f32 %v1752, %v1753
        %v1755 = vrot.slane %v1754, 1
        %v1756 = vadd.f32 %v1754, %v1755
        %v1757 = vcombine.high %v1620, %v1620
        %v1759 = vmul.f32 %v1267, %v1757
        %v1760 = vadd.f32 %v1756, %v1759
        %v1761 = vrot.slane %v1328, 6
        %1762 = vrot.lane.b32.xlu0 %v1761, 64
        %v1763 = vpop.permute.xlu0 %1762
        %v1765 = vmul.f32 %v1760, %v1763
        %vm1766 = vcmp.eq.s32.totalorder %v618, 6
        %v1767 = vsel %vm1766, 1, 0
        %v1768 = vcvt.s32.f32 %v1767
        %v1769 = vlaneseq
        %v1770 = vshrl.u32 %v1769, 7
        %v1771 = vsub.s32 0, %v1770
        %v1772 = vrot.slane %v1765, %v1771
        %v1773 = vmul.f32 %v1768, %v1772
        %v1774 = vadd.f32 %v1709, %v1773
        %v1775 = vlaneseq
        %v1776 = vshrl.u32 %v1775, 7
        %v1777 = vsub.s32 7, %v1776
        %v1778 = vrot.slane %v1264, %v1777
        %v1779 = vmul.f32 %v1778, %v1265
        %v1780 = vmul.f32 %v1778, %v1266
        %v1781 = vmul.f32 %v1779, 1.442695
        %v1782 = vpow.pop %v1781
        %v1783 = vmul.f32 %v1780, 1.442695
        %v1784 = vpow.pop %v1783
        %v1785 = vmul.f32 %v1782, %v1736
        %v1786 = vmul.f32 %v1784, %v1737
        %1787 = vset.pattern.permute.xlu0 7
        %1788 = vperm.xlu0 %1787, %v1153
        %v1789 = vpop.permute.xlu0 %1788
        %1791 = vset.pattern.permute.xlu0 7
        %1792 = vperm.xlu0 %1791, %v1158
        %v1793 = vpop.permute.xlu0 %1792
        %v1795 = vlaneseq
        %v1796 = vshrl.u32 %v1795, 7
        %v1797 = vsub.s32 7, %v1796
        %v1798 = vrot.slane %v1280, %v1797
        %v1799 = vmul.f32 %v1789, %v1798
        %v1800 = vmul.f32 %v1793, %v1798
        %v1801 = vadd.f32 %v1785, %v1799
        %v1802 = vadd.f32 %v1786, %v1800
        %1803 = vset.pattern.permute.xlu0 7
        %1804 = vperm.xlu0 %1803, %v1163
        %v1805 = vpop.permute.xlu0 %1804
        %1807 = vset.pattern.permute.xlu0 7
        %1808 = vperm.xlu0 %1807, %v1168
        %v1809 = vpop.permute.xlu0 %1808
        %v1811 = vmul.f32 %v1805, %v1801
        %v1812 = vmul.f32 %v1809, %v1802
        %v1813 = vsel %vm1070, %v1811, 0.0
        %v1814 = vsel %vm1070, %v1812, 0.0
        %v1815 = vadd.f32 %v1813, %v1814
        %v1816 = vrot.slane %v1815, 4
        %v1817 = vadd.f32 %v1815, %v1816
        %v1818 = vrot.slane %v1817, 2
        %v1819 = vadd.f32 %v1817, %v1818
        %v1820 = vrot.slane %v1819, 1
        %v1821 = vadd.f32 %v1819, %v1820
        %v1822 = vcombine.high %v1692, %v1692
        %v1824 = vmul.f32 %v1267, %v1822
        %v1825 = vadd.f32 %v1821, %v1824
        %v1826 = vrot.slane %v1328, 7
        %1827 = vrot.lane.b32.xlu0 %v1826, 64
        %v1828 = vpop.permute.xlu0 %1827
        %v1830 = vmul.f32 %v1825, %v1828
        %vm1831 = vcmp.eq.s32.totalorder %v618, 7
        %v1832 = vsel %vm1831, 1, 0
        %v1833 = vcvt.s32.f32 %v1832
        %v1834 = vlaneseq
        %v1835 = vshrl.u32 %v1834, 7
        %v1836 = vsub.s32 0, %v1835
        %v1837 = vrot.slane %v1830, %v1836
        %v1838 = vmul.f32 %v1833, %v1837
        %v1839 = vadd.f32 %v1774, %v1838
        %v1840 = vld [vmem:[%s12] sm:$0xff]
        %v1841 = vld [vmem:[%s12 + $0x8] sm:$0xff]
        %v1842 = vld [vmem:[%s12 + $0x10] sm:$0xff]
        %v1843 = vld [vmem:[%s12 + $0x18] sm:$0xff]
        %v1844 = vld [vmem:[%s12 + $0x20] sm:$0xff]
        %v1845 = vld [vmem:[%s12 + $0x28] sm:$0xff]
        %v1846 = vld [vmem:[%s12 + $0x30] sm:$0xff]
        %v1847 = vld [vmem:[%s12 + $0x38] sm:$0xff]
        %v1849 = vsel %vm1070, %v1839, 0
        %1851 = vmatprep.subr.mxu0 0.0
        %1852 = vmatpush1.msra.mxu0 0.0
        %1853 = vmatprep.subr.mxu0 0.0
        %1854 = vmatpush1.msra.mxu0 0.0
        %1855 = vmatprep.subr.mxu0 0.0
        %1856 = vmatpush1.msra.mxu0 0.0
        %1857 = vmatprep.subr.mxu0 0.0
        %1858 = vmatpush1.msra.mxu0 0.0
        %1859 = vmatprep.subr.mxu0 0.0
        %1860 = vmatpush1.msra.mxu0 0.0
        %1861 = vmatprep.subr.mxu0 0.0
        %1862 = vmatpush1.msra.mxu0 0.0
        %1863 = vmatprep.subr.mxu0 0.0
        %1864 = vmatpush1.msra.mxu0 0.0
        %1865 = vmatprep.subr.mxu0 0.0
        %1866 = vmatpush1.msra.mxu0 0.0
        %1867 = vmatprep.subr.mxu0 0.0
        %1868 = vmatpush1.msra.mxu0 %v1847
        %1869 = vmatprep.subr.mxu0 0.0
        %1870 = vmatpush1.msra.mxu0 %v1846
        %1871 = vmatprep.subr.mxu0 0.0
        %1872 = vmatpush1.msra.mxu0 %v1845
        %1873 = vmatprep.subr.mxu0 0.0
        %1874 = vmatpush1.msra.mxu0 %v1844
        %1875 = vmatprep.subr.mxu0 0.0
        %1876 = vmatpush1.msra.mxu0 %v1843
        %1877 = vmatprep.subr.mxu0 0.0
        %1878 = vmatpush1.msra.mxu0 %v1842
        %1879 = vmatprep.subr.mxu0 0.0
        %1880 = vmatpush1.msra.mxu0 %v1841
        %1881 = vmatprep.subr.mxu0 0.0
        %1882 = vmatpush1.msra.mxu0 %v1840
        %1883 = vmatprep.subr.mxu0 0.0
        %1884 = vmatpush2.msra.mxu0 0.0
        %1885 = vmatprep.subr.mxu0 0.0
        %1886 = vmatpush2.msra.mxu0 0.0
        %1887 = vmatprep.subr.mxu0 0.0
        %1888 = vmatpush2.msra.mxu0 0.0
        %1889 = vmatprep.subr.mxu0 0.0
        %1890 = vmatpush2.msra.mxu0 0.0
        %1891 = vmatprep.subr.mxu0 0.0
        %1892 = vmatpush2.msra.mxu0 0.0
        %1893 = vmatprep.subr.mxu0 0.0
        %1894 = vmatpush2.msra.mxu0 0.0
        %1895 = vmatprep.subr.mxu0 0.0
        %1896 = vmatpush2.msra.mxu0 0.0
        %1897 = vmatprep.subr.mxu0 0.0
        %1898 = vmatpush2.msra.mxu0 0.0
        %1899 = vmatprep.subr.mxu0 0.0
        %1900 = vmatpush2.msra.mxu0 0.0
        %1901 = vmatprep.subr.mxu0 0.0
        %1902 = vmatpush2.msra.mxu0 0.0
        %1903 = vmatprep.subr.mxu0 0.0
        %1904 = vmatpush2.msra.mxu0 0.0
        %1905 = vmatprep.subr.mxu0 0.0
        %1906 = vmatpush2.msra.mxu0 0.0
        %1907 = vmatprep.subr.mxu0 0.0
        %1908 = vmatpush2.msra.mxu0 0.0
        %1909 = vmatprep.subr.mxu0 0.0
        %1910 = vmatpush2.msra.mxu0 0.0
        %1911 = vmatprep.subr.mxu0 0.0
        %1912 = vmatpush2.msra.mxu0 0.0
        %1913 = vmatprep.subr.mxu0 0.0
        %1914 = vmatpush2.msra.mxu0 0.0
        %1915 = vmatprep.mubr.f32.mxu0 0.0
        %1916 = vmatmul.mubr.f32.gmra.mxu0 %v1849
        %v1917 = vpop.f32.mrf.mxu0
        %v1918 = vadd.f32 %v614, %v1917
        %v1919 = vpop.f32.mrf.mxu0
        %1920 = vdwg.mxu0
        %s1921 = scalar_lea.vmem %s2, 1
        %v1922 = vld [vmem:[%s1921] sm:$0x1]
        %s1923 = scalar_lea.vmem %s3, 1
        %v1924 = vld [vmem:[%s1923] sm:$0x1]
        %v1925 = vsel %vm621, %v1918, 0.0
        %1926 = vadd.xlane.f32.xlu0 %v1925
        %v1927 = vpop.xlane.xlu0 %1926
        %v1928 = vmul.f32 %v1927, %v625
        %v1929 = vsub.f32 %v1918, %v1928
        %v1930 = vmul.f32 %v1929, %v1929
        %v1931 = vsel %vm621, %v1930, 0.0
        %1932 = vadd.xlane.f32.xlu0 %v1931
        %v1933 = vpop.xlane.xlu0 %1932
        %v1934 = vmul.f32 %v1933, %v625
        %v1935 = vadd.f32 %v1934, 1e-05
        %v1936 = vrsqrt.pop %v1935
        %v1937 = vmul.f32 %v1929, %v1936
        %v1939 = vlaneseq
        %v1940 = vshrl.u32 %v1939, 7
        %v1941 = vsub.s32 0, %v1940
        %v1942 = vrot.slane %v1922, %v1941
        %v1944 = vmul.f32 %v1937, %v1942
        %v1946 = vlaneseq
        %v1947 = vshrl.u32 %v1946, 7
        %v1948 = vsub.s32 0, %v1947
        %v1949 = vrot.slane %v1924, %v1948
        %v1951 = vadd.f32 %v1944, %v1949
        %s1952 = scalar_lea.vmem %s4, 32
        %v1953 = vld [vmem:[%s1952] sm:$0xff]
        %v1954 = vld [vmem:[%s1952 + $0x8] sm:$0xff]
        %v1955 = vld [vmem:[%s1952 + $0x10] sm:$0xff]
        %v1956 = vld [vmem:[%s1952 + $0x18] sm:$0xff]
        %v1958 = vsel %vm621, %v1951, 0
        %1960 = vmatprep.subr.mxu0 0.0
        %1961 = vmatpush1.msra.mxu0 0.0
        %1962 = vmatprep.subr.mxu0 0.0
        %1963 = vmatpush1.msra.mxu0 0.0
        %1964 = vmatprep.subr.mxu0 0.0
        %1965 = vmatpush1.msra.mxu0 0.0
        %1966 = vmatprep.subr.mxu0 0.0
        %1967 = vmatpush1.msra.mxu0 0.0
        %1968 = vmatprep.subr.mxu0 0.0
        %1969 = vmatpush1.msra.mxu0 0.0
        %1970 = vmatprep.subr.mxu0 0.0
        %1971 = vmatpush1.msra.mxu0 0.0
        %1972 = vmatprep.subr.mxu0 0.0
        %1973 = vmatpush1.msra.mxu0 0.0
        %1974 = vmatprep.subr.mxu0 0.0
        %1975 = vmatpush1.msra.mxu0 0.0
        %1976 = vmatprep.subr.mxu0 0.0
        %1977 = vmatpush1.msra.mxu0 0.0
        %1978 = vmatprep.subr.mxu0 0.0
        %1979 = vmatpush1.msra.mxu0 0.0
        %1980 = vmatprep.subr.mxu0 0.0
        %1981 = vmatpush1.msra.mxu0 0.0
        %1982 = vmatprep.subr.mxu0 0.0
        %1983 = vmatpush1.msra.mxu0 0.0
        %1984 = vmatprep.subr.mxu0 0.0
        %1985 = vmatpush1.msra.mxu0 %v1956
        %1986 = vmatprep.subr.mxu0 0.0
        %1987 = vmatpush1.msra.mxu0 %v1955
        %1988 = vmatprep.subr.mxu0 0.0
        %1989 = vmatpush1.msra.mxu0 %v1954
        %1990 = vmatprep.subr.mxu0 0.0
        %1991 = vmatpush1.msra.mxu0 %v1953
        %1992 = vmatprep.subr.mxu0 0.0
        %1993 = vmatpush2.msra.mxu0 0.0
        %1994 = vmatprep.subr.mxu0 0.0
        %1995 = vmatpush2.msra.mxu0 0.0
        %1996 = vmatprep.subr.mxu0 0.0
        %1997 = vmatpush2.msra.mxu0 0.0
        %1998 = vmatprep.subr.mxu0 0.0
        %1999 = vmatpush2.msra.mxu0 0.0
        %2000 = vmatprep.subr.mxu0 0.0
        %2001 = vmatpush2.msra.mxu0 0.0
        %2002 = vmatprep.subr.mxu0 0.0
        %2003 = vmatpush2.msra.mxu0 0.0
        %2004 = vmatprep.subr.mxu0 0.0
        %2005 = vmatpush2.msra.mxu0 0.0
        %2006 = vmatprep.subr.mxu0 0.0
        %2007 = vmatpush2.msra.mxu0 0.0
        %2008 = vmatprep.subr.mxu0 0.0
        %2009 = vmatpush2.msra.mxu0 0.0
        %2010 = vmatprep.subr.mxu0 0.0
        %2011 = vmatpush2.msra.mxu0 0.0
        %2012 = vmatprep.subr.mxu0 0.0
        %2013 = vmatpush2.msra.mxu0 0.0
        %2014 = vmatprep.subr.mxu0 0.0
        %2015 = vmatpush2.msra.mxu0 0.0
        %2016 = vmatprep.subr.mxu0 0.0
        %2017 = vmatpush2.msra.mxu0 0.0
        %2018 = vmatprep.subr.mxu0 0.0
        %2019 = vmatpush2.msra.mxu0 0.0
        %2020 = vmatprep.subr.mxu0 0.0
        %2021 = vmatpush2.msra.mxu0 0.0
        %2022 = vmatprep.subr.mxu0 0.0
        %2023 = vmatpush2.msra.mxu0 0.0
        %2024 = vmatprep.mubr.f32.mxu0 0.0
        %2025 = vmatmul.mubr.f32.gmra.mxu0 %v1958
        %v2026 = vpop.f32.mrf.mxu0
        %v2027 = vadd.f32 0.0, %v2026
        %v2028 = vpop.f32.mrf.mxu0
        %2029 = vdwg.mxu0
        %s2030 = scalar_lea.vmem %s5, 4
        %v2031 = vld [vmem:[%s2030] sm:$0xf]
        %s2032 = scalar_lea.vmem %s6, 1
        %v2033 = vld [vmem:[%s2032] sm:$0x1]
        %2034 = vmatprep.subr.mxu0 0.0
        %2035 = vmatpush1.msra.mxu0 0.0
        %2036 = vmatprep.subr.mxu0 0.0
        %2037 = vmatpush1.msra.mxu0 0.0
        %2038 = vmatprep.subr.mxu0 0.0
        %2039 = vmatpush1.msra.mxu0 0.0
        %2040 = vmatprep.subr.mxu0 0.0
        %2041 = vmatpush1.msra.mxu0 0.0
        %2042 = vmatprep.subr.mxu0 0.0
        %2043 = vmatpush1.msra.mxu0 0.0
        %2044 = vmatprep.subr.mxu0 0.0
        %2045 = vmatpush1.msra.mxu0 0.0
        %2046 = vmatprep.subr.mxu0 0.0
        %2047 = vmatpush1.msra.mxu0 0.0
        %2048 = vmatprep.subr.mxu0 0.0
        %2049 = vmatpush1.msra.mxu0 0.0
        %2050 = vmatprep.subr.mxu0 0.0
        %2051 = vmatpush1.msra.mxu0 0.0
        %2052 = vmatprep.subr.mxu0 0.0
        %2053 = vmatpush1.msra.mxu0 0.0
        %2054 = vmatprep.subr.mxu0 0.0
        %2055 = vmatpush1.msra.mxu0 0.0
        %2056 = vmatprep.subr.mxu0 0.0
        %2057 = vmatpush1.msra.mxu0 0.0
        %2058 = vmatprep.subr.mxu0 0.0
        %2059 = vmatpush1.msra.mxu0 0.0
        %2060 = vmatprep.subr.mxu0 0.0
        %2061 = vmatpush1.msra.mxu0 0.0
        %2062 = vmatprep.subr.mxu0 0.0
        %2063 = vmatpush1.msra.mxu0 0.0
        %2064 = vmatprep.subr.mxu0 0.0
        %2065 = vmatpush1.msra.mxu0 %v2027
        %2066 = vmatprep.subr.mxu0 0.0
        %2067 = vmatpush2.msra.mxu0 0.0
        %2068 = vmatprep.subr.mxu0 0.0
        %2069 = vmatpush2.msra.mxu0 0.0
        %2070 = vmatprep.subr.mxu0 0.0
        %2071 = vmatpush2.msra.mxu0 0.0
        %2072 = vmatprep.subr.mxu0 0.0
        %2073 = vmatpush2.msra.mxu0 0.0
        %2074 = vmatprep.subr.mxu0 0.0
        %2075 = vmatpush2.msra.mxu0 0.0
        %2076 = vmatprep.subr.mxu0 0.0
        %2077 = vmatpush2.msra.mxu0 0.0
        %2078 = vmatprep.subr.mxu0 0.0
        %2079 = vmatpush2.msra.mxu0 0.0
        %2080 = vmatprep.subr.mxu0 0.0
        %2081 = vmatpush2.msra.mxu0 0.0
        %2082 = vmatprep.subr.mxu0 0.0
        %2083 = vmatpush2.msra.mxu0 0.0
        %2084 = vmatprep.subr.mxu0 0.0
        %2085 = vmatpush2.msra.mxu0 0.0
        %2086 = vmatprep.subr.mxu0 0.0
        %2087 = vmatpush2.msra.mxu0 0.0
        %2088 = vmatprep.subr.mxu0 0.0
        %2089 = vmatpush2.msra.mxu0 0.0
        %2090 = vmatprep.subr.mxu0 0.0
        %2091 = vmatpush2.msra.mxu0 0.0
        %2092 = vmatprep.subr.mxu0 0.0
        %2093 = vmatpush2.msra.mxu0 0.0
        %2094 = vmatprep.subr.mxu0 0.0
        %2095 = vmatpush2.msra.mxu0 0.0
        %2096 = vmatprep.subr.mxu0 0.0
        %2097 = vmatpush2.msra.mxu0 0.0
        %2098 = vmatprep.mubr.f32.mxu0 0.0
        %2099 = vmatmul.mubr.f32.gmra.mxu0 %v732
        %v2100 = vpop.f32.mrf.mxu0
        %v2101 = vadd.f32 0.0, %v2100
        %v2102 = vpop.f32.mrf.mxu0
        %2103 = vdwg.mxu0
        %v2104 = vlaneseq
        %v2105 = vshrl.u32 %v2104, 7
        %v2106 = vsub.s32 0, %v2105
        %v2107 = vrot.slane %v2031, %v2106
        %v2108 = vmul.f32 %v2107, %v2101
        %v2110 = vlaneseq
        %v2111 = vshrl.u32 %v2110, 7
        %v2112 = vsub.s32 0, %v2111
        %v2113 = vrot.slane %v2033, %v2112
        %v2115 = vadd.f32 %v2113, %v2108
        %2116 = vmatprep.subr.mxu0 0.0
        %2117 = vmatpush1.msra.mxu0 0.0
        %2118 = vmatprep.subr.mxu0 0.0
        %2119 = vmatpush1.msra.mxu0 0.0
        %2120 = vmatprep.subr.mxu0 0.0
        %2121 = vmatpush1.msra.mxu0 0.0
        %2122 = vmatprep.subr.mxu0 0.0
        %2123 = vmatpush1.msra.mxu0 0.0
        %2124 = vmatprep.subr.mxu0 0.0
        %2125 = vmatpush1.msra.mxu0 0.0
        %2126 = vmatprep.subr.mxu0 0.0
        %2127 = vmatpush1.msra.mxu0 0.0
        %2128 = vmatprep.subr.mxu0 0.0
        %2129 = vmatpush1.msra.mxu0 0.0
        %2130 = vmatprep.subr.mxu0 0.0
        %2131 = vmatpush1.msra.mxu0 0.0
        %2132 = vmatprep.subr.mxu0 0.0
        %2133 = vmatpush1.msra.mxu0 0.0
        %2134 = vmatprep.subr.mxu0 0.0
        %2135 = vmatpush1.msra.mxu0 0.0
        %2136 = vmatprep.subr.mxu0 0.0
        %2137 = vmatpush1.msra.mxu0 0.0
        %2138 = vmatprep.subr.mxu0 0.0
        %2139 = vmatpush1.msra.mxu0 0.0
        %2140 = vmatprep.subr.mxu0 0.0
        %2141 = vmatpush1.msra.mxu0 0.0
        %2142 = vmatprep.subr.mxu0 0.0
        %2143 = vmatpush1.msra.mxu0 0.0
        %2144 = vmatprep.subr.mxu0 0.0
        %2145 = vmatpush1.msra.mxu0 0.0
        %2146 = vmatprep.subr.mxu0 0.0
        %2147 = vmatpush1.msra.mxu0 %v2027
        %2148 = vmatprep.subr.mxu0 0.0
        %2149 = vmatpush2.msra.mxu0 0.0
        %2150 = vmatprep.subr.mxu0 0.0
        %2151 = vmatpush2.msra.mxu0 0.0
        %2152 = vmatprep.subr.mxu0 0.0
        %2153 = vmatpush2.msra.mxu0 0.0
        %2154 = vmatprep.subr.mxu0 0.0
        %2155 = vmatpush2.msra.mxu0 0.0
        %2156 = vmatprep.subr.mxu0 0.0
        %2157 = vmatpush2.msra.mxu0 0.0
        %2158 = vmatprep.subr.mxu0 0.0
        %2159 = vmatpush2.msra.mxu0 0.0
        %2160 = vmatprep.subr.mxu0 0.0
        %2161 = vmatpush2.msra.mxu0 0.0
        %2162 = vmatprep.subr.mxu0 0.0
        %2163 = vmatpush2.msra.mxu0 0.0
        %2164 = vmatprep.subr.mxu0 0.0
        %2165 = vmatpush2.msra.mxu0 0.0
        %2166 = vmatprep.subr.mxu0 0.0
        %2167 = vmatpush2.msra.mxu0 0.0
        %2168 = vmatprep.subr.mxu0 0.0
        %2169 = vmatpush2.msra.mxu0 0.0
        %2170 = vmatprep.subr.mxu0 0.0
        %2171 = vmatpush2.msra.mxu0 0.0
        %2172 = vmatprep.subr.mxu0 0.0
        %2173 = vmatpush2.msra.mxu0 0.0
        %2174 = vmatprep.subr.mxu0 0.0
        %2175 = vmatpush2.msra.mxu0 0.0
        %2176 = vmatprep.subr.mxu0 0.0
        %2177 = vmatpush2.msra.mxu0 0.0
        %2178 = vmatprep.subr.mxu0 0.0
        %2179 = vmatpush2.msra.mxu0 0.0
        %2180 = vmatprep.mubr.f32.mxu0 0.0
        %2181 = vmatmul.mubr.f32.gmra.mxu0 %v819
        %v2182 = vpop.f32.mrf.mxu0
        %v2183 = vadd.f32 0.0, %v2182
        %v2184 = vpop.f32.mrf.mxu0
        %2185 = vdwg.mxu0
        %v2186 = vlaneseq
        %v2187 = vshrl.u32 %v2186, 7
        %v2188 = vsub.s32 1, %v2187
        %v2189 = vrot.slane %v2031, %v2188
        %v2190 = vmul.f32 %v2189, %v2183
        %v2191 = vadd.f32 %v2115, %v2190
        %2192 = vmatprep.subr.mxu0 0.0
        %2193 = vmatpush1.msra.mxu0 0.0
        %2194 = vmatprep.subr.mxu0 0.0
        %2195 = vmatpush1.msra.mxu0 0.0
        %2196 = vmatprep.subr.mxu0 0.0
        %2197 = vmatpush1.msra.mxu0 0.0
        %2198 = vmatprep.subr.mxu0 0.0
        %2199 = vmatpush1.msra.mxu0 0.0
        %2200 = vmatprep.subr.mxu0 0.0
        %2201 = vmatpush1.msra.mxu0 0.0
        %2202 = vmatprep.subr.mxu0 0.0
        %2203 = vmatpush1.msra.mxu0 0.0
        %2204 = vmatprep.subr.mxu0 0.0
        %2205 = vmatpush1.msra.mxu0 0.0
        %2206 = vmatprep.subr.mxu0 0.0
        %2207 = vmatpush1.msra.mxu0 0.0
        %2208 = vmatprep.subr.mxu0 0.0
        %2209 = vmatpush1.msra.mxu0 0.0
        %2210 = vmatprep.subr.mxu0 0.0
        %2211 = vmatpush1.msra.mxu0 0.0
        %2212 = vmatprep.subr.mxu0 0.0
        %2213 = vmatpush1.msra.mxu0 0.0
        %2214 = vmatprep.subr.mxu0 0.0
        %2215 = vmatpush1.msra.mxu0 0.0
        %2216 = vmatprep.subr.mxu0 0.0
        %2217 = vmatpush1.msra.mxu0 0.0
        %2218 = vmatprep.subr.mxu0 0.0
        %2219 = vmatpush1.msra.mxu0 0.0
        %2220 = vmatprep.subr.mxu0 0.0
        %2221 = vmatpush1.msra.mxu0 0.0
        %2222 = vmatprep.subr.mxu0 0.0
        %2223 = vmatpush1.msra.mxu0 %v2027
        %2224 = vmatprep.subr.mxu0 0.0
        %2225 = vmatpush2.msra.mxu0 0.0
        %2226 = vmatprep.subr.mxu0 0.0
        %2227 = vmatpush2.msra.mxu0 0.0
        %2228 = vmatprep.subr.mxu0 0.0
        %2229 = vmatpush2.msra.mxu0 0.0
        %2230 = vmatprep.subr.mxu0 0.0
        %2231 = vmatpush2.msra.mxu0 0.0
        %2232 = vmatprep.subr.mxu0 0.0
        %2233 = vmatpush2.msra.mxu0 0.0
        %2234 = vmatprep.subr.mxu0 0.0
        %2235 = vmatpush2.msra.mxu0 0.0
        %2236 = vmatprep.subr.mxu0 0.0
        %2237 = vmatpush2.msra.mxu0 0.0
        %2238 = vmatprep.subr.mxu0 0.0
        %2239 = vmatpush2.msra.mxu0 0.0
        %2240 = vmatprep.subr.mxu0 0.0
        %2241 = vmatpush2.msra.mxu0 0.0
        %2242 = vmatprep.subr.mxu0 0.0
        %2243 = vmatpush2.msra.mxu0 0.0
        %2244 = vmatprep.subr.mxu0 0.0
        %2245 = vmatpush2.msra.mxu0 0.0
        %2246 = vmatprep.subr.mxu0 0.0
        %2247 = vmatpush2.msra.mxu0 0.0
        %2248 = vmatprep.subr.mxu0 0.0
        %2249 = vmatpush2.msra.mxu0 0.0
        %2250 = vmatprep.subr.mxu0 0.0
        %2251 = vmatpush2.msra.mxu0 0.0
        %2252 = vmatprep.subr.mxu0 0.0
        %2253 = vmatpush2.msra.mxu0 0.0
        %2254 = vmatprep.subr.mxu0 0.0
        %2255 = vmatpush2.msra.mxu0 0.0
        %2256 = vmatprep.mubr.f32.mxu0 0.0
        %2257 = vmatmul.mubr.f32.gmra.mxu0 %v900
        %v2258 = vpop.f32.mrf.mxu0
        %v2259 = vadd.f32 0.0, %v2258
        %v2260 = vpop.f32.mrf.mxu0
        %2261 = vdwg.mxu0
        %v2262 = vlaneseq
        %v2263 = vshrl.u32 %v2262, 7
        %v2264 = vsub.s32 2, %v2263
        %v2265 = vrot.slane %v2031, %v2264
        %v2266 = vmul.f32 %v2265, %v2259
        %v2267 = vadd.f32 %v2191, %v2266
        %2268 = vmatprep.subr.mxu0 0.0
        %2269 = vmatpush1.msra.mxu0 0.0
        %2270 = vmatprep.subr.mxu0 0.0
        %2271 = vmatpush1.msra.mxu0 0.0
        %2272 = vmatprep.subr.mxu0 0.0
        %2273 = vmatpush1.msra.mxu0 0.0
        %2274 = vmatprep.subr.mxu0 0.0
        %2275 = vmatpush1.msra.mxu0 0.0
        %2276 = vmatprep.subr.mxu0 0.0
        %2277 = vmatpush1.msra.mxu0 0.0
        %2278 = vmatprep.subr.mxu0 0.0
        %2279 = vmatpush1.msra.mxu0 0.0
        %2280 = vmatprep.subr.mxu0 0.0
        %2281 = vmatpush1.msra.mxu0 0.0
        %2282 = vmatprep.subr.mxu0 0.0
        %2283 = vmatpush1.msra.mxu0 0.0
        %2284 = vmatprep.subr.mxu0 0.0
        %2285 = vmatpush1.msra.mxu0 0.0
        %2286 = vmatprep.subr.mxu0 0.0
        %2287 = vmatpush1.msra.mxu0 0.0
        %2288 = vmatprep.subr.mxu0 0.0
        %2289 = vmatpush1.msra.mxu0 0.0
        %2290 = vmatprep.subr.mxu0 0.0
        %2291 = vmatpush1.msra.mxu0 0.0
        %2292 = vmatprep.subr.mxu0 0.0
        %2293 = vmatpush1.msra.mxu0 0.0
        %2294 = vmatprep.subr.mxu0 0.0
        %2295 = vmatpush1.msra.mxu0 0.0
        %2296 = vmatprep.subr.mxu0 0.0
        %2297 = vmatpush1.msra.mxu0 0.0
        %2298 = vmatprep.subr.mxu0 0.0
        %2299 = vmatpush1.msra.mxu0 %v2027
        %2300 = vmatprep.subr.mxu0 0.0
        %2301 = vmatpush2.msra.mxu0 0.0
        %2302 = vmatprep.subr.mxu0 0.0
        %2303 = vmatpush2.msra.mxu0 0.0
        %2304 = vmatprep.subr.mxu0 0.0
        %2305 = vmatpush2.msra.mxu0 0.0
        %2306 = vmatprep.subr.mxu0 0.0
        %2307 = vmatpush2.msra.mxu0 0.0
        %2308 = vmatprep.subr.mxu0 0.0
        %2309 = vmatpush2.msra.mxu0 0.0
        %2310 = vmatprep.subr.mxu0 0.0
        %2311 = vmatpush2.msra.mxu0 0.0
        %2312 = vmatprep.subr.mxu0 0.0
        %2313 = vmatpush2.msra.mxu0 0.0
        %2314 = vmatprep.subr.mxu0 0.0
        %2315 = vmatpush2.msra.mxu0 0.0
        %2316 = vmatprep.subr.mxu0 0.0
        %2317 = vmatpush2.msra.mxu0 0.0
        %2318 = vmatprep.subr.mxu0 0.0
        %2319 = vmatpush2.msra.mxu0 0.0
        %2320 = vmatprep.subr.mxu0 0.0
        %2321 = vmatpush2.msra.mxu0 0.0
        %2322 = vmatprep.subr.mxu0 0.0
        %2323 = vmatpush2.msra.mxu0 0.0
        %2324 = vmatprep.subr.mxu0 0.0
        %2325 = vmatpush2.msra.mxu0 0.0
        %2326 = vmatprep.subr.mxu0 0.0
        %2327 = vmatpush2.msra.mxu0 0.0
        %2328 = vmatprep.subr.mxu0 0.0
        %2329 = vmatpush2.msra.mxu0 0.0
        %2330 = vmatprep.subr.mxu0 0.0
        %2331 = vmatpush2.msra.mxu0 0.0
        %2332 = vmatprep.mubr.f32.mxu0 0.0
        %2333 = vmatmul.mubr.f32.gmra.mxu0 %v981
        %v2334 = vpop.f32.mrf.mxu0
        %v2335 = vadd.f32 0.0, %v2334
        %v2336 = vpop.f32.mrf.mxu0
        %2337 = vdwg.mxu0
        %v2338 = vlaneseq
        %v2339 = vshrl.u32 %v2338, 7
        %v2340 = vsub.s32 3, %v2339
        %v2341 = vrot.slane %v2031, %v2340
        %v2342 = vmul.f32 %v2341, %v2335
        %v2343 = vadd.f32 %v2267, %v2342
        %v2344 = vxor.u32 %v2343, 2147483648
        %v2345 = vmul.f32 %v2344, 1.442695
        %v2346 = vpow.pop %v2345
        %v2347 = vadd.f32 %v2346, 1.0
        %v2348 = vrcp.pop %v2347
        %v2349 = vmul.f32 1.0, %v2348
        %v2350 = vmul.f32 %v2343, %v2349
        %s2351 = scalar_lea.vmem %s7, 32
        %v2352 = vld [vmem:[%s2351] sm:$0xff]
        %v2353 = vld [vmem:[%s2351 + $0x8] sm:$0xff]
        %v2354 = vld [vmem:[%s2351 + $0x10] sm:$0xff]
        %v2355 = vld [vmem:[%s2351 + $0x18] sm:$0xff]
        %v2357 = vsel %vm1070, %v2352, 0
        %v2360 = vsel %vm1070, %v2353, 0
        %v2363 = vsel %vm1070, %v2354, 0
        %v2366 = vsel %vm1070, %v2355, 0
        %v2369 = vsel %vm1070, %v2350, 0
        %2371 = vmatprep.subr.mxu0 0.0
        %2372 = vmatpush1.xpose.msra.mxu0 0.0
        %2373 = vmatprep.subr.mxu0 0.0
        %2374 = vmatpush1.xpose.msra.mxu0 0.0
        %2375 = vmatprep.subr.mxu0 0.0
        %2376 = vmatpush1.xpose.msra.mxu0 0.0
        %2377 = vmatprep.subr.mxu0 0.0
        %2378 = vmatpush1.xpose.msra.mxu0 0.0
        %2379 = vmatprep.subr.mxu0 0.0
        %2380 = vmatpush1.xpose.msra.mxu0 0.0
        %2381 = vmatprep.subr.mxu0 0.0
        %2382 = vmatpush1.xpose.msra.mxu0 0.0
        %2383 = vmatprep.subr.mxu0 0.0
        %2384 = vmatpush1.xpose.msra.mxu0 0.0
        %2385 = vmatprep.subr.mxu0 0.0
        %2386 = vmatpush1.xpose.msra.mxu0 0.0
        %2387 = vmatprep.subr.mxu0 0.0
        %2388 = vmatpush1.xpose.msra.mxu0 0.0
        %2389 = vmatprep.subr.mxu0 0.0
        %2390 = vmatpush1.xpose.msra.mxu0 0.0
        %2391 = vmatprep.subr.mxu0 0.0
        %2392 = vmatpush1.xpose.msra.mxu0 0.0
        %2393 = vmatprep.subr.mxu0 0.0
        %2394 = vmatpush1.xpose.msra.mxu0 0.0
        %2395 = vmatprep.subr.mxu0 0.0
        %2396 = vmatpush1.xpose.msra.mxu0 0.0
        %2397 = vmatprep.subr.mxu0 0.0
        %2398 = vmatpush1.xpose.msra.mxu0 0.0
        %2399 = vmatprep.subr.mxu0 0.0
        %2400 = vmatpush1.xpose.msra.mxu0 0.0
        %2401 = vmatprep.subr.mxu0 0.0
        %2402 = vmatpush1.xpose.msra.mxu0 %v2369
        %2403 = vmatprep.subr.mxu0 0.0
        %2404 = vmatpush2.xpose.msra.mxu0 0.0
        %2405 = vmatprep.subr.mxu0 0.0
        %2406 = vmatpush2.xpose.msra.mxu0 0.0
        %2407 = vmatprep.subr.mxu0 0.0
        %2408 = vmatpush2.xpose.msra.mxu0 0.0
        %2409 = vmatprep.subr.mxu0 0.0
        %2410 = vmatpush2.xpose.msra.mxu0 0.0
        %2411 = vmatprep.subr.mxu0 0.0
        %2412 = vmatpush2.xpose.msra.mxu0 0.0
        %2413 = vmatprep.subr.mxu0 0.0
        %2414 = vmatpush2.xpose.msra.mxu0 0.0
        %2415 = vmatprep.subr.mxu0 0.0
        %2416 = vmatpush2.xpose.msra.mxu0 0.0
        %2417 = vmatprep.subr.mxu0 0.0
        %2418 = vmatpush2.xpose.msra.mxu0 0.0
        %2419 = vmatprep.subr.mxu0 0.0
        %2420 = vmatpush2.xpose.msra.mxu0 0.0
        %2421 = vmatprep.subr.mxu0 0.0
        %2422 = vmatpush2.xpose.msra.mxu0 0.0
        %2423 = vmatprep.subr.mxu0 0.0
        %2424 = vmatpush2.xpose.msra.mxu0 0.0
        %2425 = vmatprep.subr.mxu0 0.0
        %2426 = vmatpush2.xpose.msra.mxu0 0.0
        %2427 = vmatprep.subr.mxu0 0.0
        %2428 = vmatpush2.xpose.msra.mxu0 0.0
        %2429 = vmatprep.subr.mxu0 0.0
        %2430 = vmatpush2.xpose.msra.mxu0 0.0
        %2431 = vmatprep.subr.mxu0 0.0
        %2432 = vmatpush2.xpose.msra.mxu0 0.0
        %2433 = vmatprep.subr.mxu0 0.0
        %2434 = vmatpush2.xpose.msra.mxu0 0.0
        %2435 = vmatprep.mubr.f32.mxu0 0.0
        %2436 = vmatmul.mubr.f32.gmra.mxu0 %v2357
        %v2437 = vpop.f32.mrf.mxu0
        %v2438 = vadd.f32 0.0, %v2437
        %v2439 = vpop.f32.mrf.mxu0
        %2440 = vmatprep.mubr.f32.mxu0 0.0
        %2441 = vmatmul.mubr.f32.gmra.mxu0 %v2360
        %v2442 = vpop.f32.mrf.mxu0
        %v2443 = vadd.f32 0.0, %v2442
        %v2444 = vpop.f32.mrf.mxu0
        %2445 = vmatprep.mubr.f32.mxu0 0.0
        %2446 = vmatmul.mubr.f32.gmra.mxu0 %v2363
        %v2447 = vpop.f32.mrf.mxu0
        %v2448 = vadd.f32 0.0, %v2447
        %v2449 = vpop.f32.mrf.mxu0
        %2450 = vmatprep.mubr.f32.mxu0 0.0
        %2451 = vmatmul.mubr.f32.gmra.mxu0 %v2366
        %v2452 = vpop.f32.mrf.mxu0
        %v2453 = vadd.f32 0.0, %v2452
        %v2454 = vpop.f32.mrf.mxu0
        %2455 = vdwg.mxu0
        %s2456 = scalar_lea.vmem %s8, 64
        %v2457 = vld [vmem:[%s2456] sm:$0xff]
        %v2458 = vld [vmem:[%s2456 + $0x8] sm:$0xff]
        %v2459 = vld [vmem:[%s2456 + $0x10] sm:$0xff]
        %v2460 = vld [vmem:[%s2456 + $0x18] sm:$0xff]
        %v2461 = vld [vmem:[%s2456 + $0x20] sm:$0xff]
        %v2462 = vld [vmem:[%s2456 + $0x28] sm:$0xff]
        %v2463 = vld [vmem:[%s2456 + $0x30] sm:$0xff]
        %v2464 = vld [vmem:[%s2456 + $0x38] sm:$0xff]
        %s2465 = scalar_lea.vmem %s9, 1
        %v2466 = vld [vmem:[%s2465] sm:$0x1]
        %v2468 = vlaneseq
        %v2469 = vshrl.u32 %v2468, 7
        %v2470 = vsub.s32 0, %v2469
        %v2471 = vrot.slane %v2466, %v2470
        %2473 = vmatprep.subr.mxu0 0.0
        %2474 = vmatpush1.msra.mxu0 0.0
        %2475 = vmatprep.subr.mxu0 0.0
        %2476 = vmatpush1.msra.mxu0 0.0
        %2477 = vmatprep.subr.mxu0 0.0
        %2478 = vmatpush1.msra.mxu0 0.0
        %2479 = vmatprep.subr.mxu0 0.0
        %2480 = vmatpush1.msra.mxu0 0.0
        %2481 = vmatprep.subr.mxu0 0.0
        %2482 = vmatpush1.msra.mxu0 0.0
        %2483 = vmatprep.subr.mxu0 0.0
        %2484 = vmatpush1.msra.mxu0 0.0
        %2485 = vmatprep.subr.mxu0 0.0
        %2486 = vmatpush1.msra.mxu0 0.0
        %2487 = vmatprep.subr.mxu0 0.0
        %2488 = vmatpush1.msra.mxu0 0.0
        %2489 = vmatprep.subr.mxu0 0.0
        %2490 = vmatpush1.msra.mxu0 %v2464
        %2491 = vmatprep.subr.mxu0 0.0
        %2492 = vmatpush1.msra.mxu0 %v2463
        %2493 = vmatprep.subr.mxu0 0.0
        %2494 = vmatpush1.msra.mxu0 %v2462
        %2495 = vmatprep.subr.mxu0 0.0
        %2496 = vmatpush1.msra.mxu0 %v2461
        %2497 = vmatprep.subr.mxu0 0.0
        %2498 = vmatpush1.msra.mxu0 %v2460
        %2499 = vmatprep.subr.mxu0 0.0
        %2500 = vmatpush1.msra.mxu0 %v2459
        %2501 = vmatprep.subr.mxu0 0.0
        %2502 = vmatpush1.msra.mxu0 %v2458
        %2503 = vmatprep.subr.mxu0 0.0
        %2504 = vmatpush1.msra.mxu0 %v2457
        %2505 = vmatprep.subr.mxu0 0.0
        %2506 = vmatpush2.msra.mxu0 0.0
        %2507 = vmatprep.subr.mxu0 0.0
        %2508 = vmatpush2.msra.mxu0 0.0
        %2509 = vmatprep.subr.mxu0 0.0
        %2510 = vmatpush2.msra.mxu0 0.0
        %2511 = vmatprep.subr.mxu0 0.0
        %2512 = vmatpush2.msra.mxu0 0.0
        %2513 = vmatprep.subr.mxu0 0.0
        %2514 = vmatpush2.msra.mxu0 0.0
        %2515 = vmatprep.subr.mxu0 0.0
        %2516 = vmatpush2.msra.mxu0 0.0
        %2517 = vmatprep.subr.mxu0 0.0
        %2518 = vmatpush2.msra.mxu0 0.0
        %2519 = vmatprep.subr.mxu0 0.0
        %2520 = vmatpush2.msra.mxu0 0.0
        %2521 = vmatprep.subr.mxu0 0.0
        %2522 = vmatpush2.msra.mxu0 0.0
        %2523 = vmatprep.subr.mxu0 0.0
        %2524 = vmatpush2.msra.mxu0 0.0
        %2525 = vmatprep.subr.mxu0 0.0
        %2526 = vmatpush2.msra.mxu0 0.0
        %2527 = vmatprep.subr.mxu0 0.0
        %2528 = vmatpush2.msra.mxu0 0.0
        %2529 = vmatprep.subr.mxu0 0.0
        %2530 = vmatpush2.msra.mxu0 0.0
        %2531 = vmatprep.subr.mxu0 0.0
        %2532 = vmatpush2.msra.mxu0 0.0
        %2533 = vmatprep.subr.mxu0 0.0
        %2534 = vmatpush2.msra.mxu0 0.0
        %2535 = vmatprep.subr.mxu0 0.0
        %2536 = vmatpush2.msra.mxu0 0.0
        %2537 = vmatprep.mubr.f32.mxu0 0.0
        %2538 = vmatmul.mubr.f32.gmra.mxu0 %v2369
        %v2539 = vpop.f32.mrf.mxu0
        %v2540 = vadd.f32 %v2471, %v2539
        %v2541 = vpop.f32.mrf.mxu0
        %2542 = vdwg.mxu0
        %v2543 = vmax.f32 %v2540, 0.0
        %v2544 = vand.u32 2147483647, %v2540
        %v2545 = vsub.f32 0.0, %v2544
        %v2546 = vmul.f32 %v2545, 1.442695
        %v2547 = vpow.pop %v2546
        %v2548 = vadd.f32 %v2547, 1.0
        %v2549 = vlog2.pop %v2548
        %v2550 = vmul.f32 %v2549, 0.6931472
        %v2551 = vadd.f32 %v2543, %v2550
        %s2552 = scalar_lea.vmem %s10, 16
        %v2553 = vld [vmem:[%s2552] sm:$0xff]
        %v2554 = vld [vmem:[%s2552 + $0x8] sm:$0xff]
        %s2555 = scalar_lea.vmem %s11, 1
        %v2556 = vld [vmem:[%s2555] sm:$0x1]
        %v2557 = vlaneseq
        %v2558 = vshrl.u32 %v2557, 7
        %v2559 = vsub.s32 0, %v2558
        %v2560 = vrot.slane %v2551, %v2559
        %v2561 = vmul.f32 %v2560, %v2553
        %v2562 = vmul.f32 %v2560, %v2554
        %v2563 = vmul.f32 %v2561, 1.442695
        %v2564 = vpow.pop %v2563
        %v2565 = vmul.f32 %v2562, 1.442695
        %v2566 = vpow.pop %v2565
        %v2567 = vmul.f32 %v2564, 0.0
        %v2568 = vmul.f32 %v2566, 0.0
        %v2569 = vmul.f32 %v2551, %v2350
        %2571 = vset.pattern.permute.xlu0 0
        %2572 = vperm.xlu0 %2571, %v2438
        %v2573 = vpop.permute.xlu0 %2572
        %2576 = vset.pattern.permute.xlu0 0
        %2577 = vperm.xlu0 %2576, %v2443
        %v2578 = vpop.permute.xlu0 %2577
        %v2580 = vlaneseq
        %v2581 = vshrl.u32 %v2580, 7
        %v2582 = vsub.s32 0, %v2581
        %v2583 = vrot.slane %v2569, %v2582
        %v2584 = vmul.f32 %v2573, %v2583
        %v2585 = vmul.f32 %v2578, %v2583
        %v2586 = vadd.f32 %v2567, %v2584
        %v2587 = vadd.f32 %v2568, %v2585
        %2589 = vset.pattern.permute.xlu0 0
        %2590 = vperm.xlu0 %2589, %v2448
        %v2591 = vpop.permute.xlu0 %2590
        %2594 = vset.pattern.permute.xlu0 0
        %2595 = vperm.xlu0 %2594, %v2453
        %v2596 = vpop.permute.xlu0 %2595
        %v2598 = vmul.f32 %v2591, %v2586
        %v2599 = vmul.f32 %v2596, %v2587
        %v2600 = vsel %vm1070, %v2598, 0.0
        %v2601 = vsel %vm1070, %v2599, 0.0
        %v2602 = vadd.f32 %v2600, %v2601
        %v2603 = vrot.slane %v2602, 4
        %v2604 = vadd.f32 %v2602, %v2603
        %v2605 = vrot.slane %v2604, 2
        %v2606 = vadd.f32 %v2604, %v2605
        %v2607 = vrot.slane %v2606, 1
        %v2608 = vadd.f32 %v2606, %v2607
        %v2609 = vmul.f32 %v2556, %v2350
        %v2610 = vadd.f32 %v2608, %v2609
        %v2611 = vxor.u32 %v2027, 2147483648
        %v2612 = vmul.f32 %v2611, 1.442695
        %v2613 = vpow.pop %v2612
        %v2614 = vadd.f32 %v2613, 1.0
        %v2615 = vrcp.pop %v2614
        %v2616 = vmul.f32 1.0, %v2615
        %v2617 = vmul.f32 %v2027, %v2616
        %2619 = vrot.lane.b32.xlu0 %v2617, 64
        %v2620 = vpop.permute.xlu0 %2619
        %v2622 = vmul.f32 %v2610, %v2620
        %v2623 = vlaneseq
        %v2624 = vshrl.u32 %v2623, 7
        %v2625 = vsub.s32 0, %v2624
        %v2626 = vrot.slane %v2622, %v2625
        %v2627 = vmul.f32 %v1336, %v2626
        %v2628 = vadd.f32 %v2627, 0.0
        %v2629 = vlaneseq
        %v2630 = vshrl.u32 %v2629, 7
        %v2631 = vsub.s32 1, %v2630
        %v2632 = vrot.slane %v2551, %v2631
        %v2633 = vmul.f32 %v2632, %v2553
        %v2634 = vmul.f32 %v2632, %v2554
        %v2635 = vmul.f32 %v2633, 1.442695
        %v2636 = vpow.pop %v2635
        %v2637 = vmul.f32 %v2634, 1.442695
        %v2638 = vpow.pop %v2637
        %v2639 = vmul.f32 %v2636, %v2586
        %v2640 = vmul.f32 %v2638, %v2587
        %2641 = vset.pattern.permute.xlu0 1
        %2642 = vperm.xlu0 %2641, %v2438
        %v2643 = vpop.permute.xlu0 %2642
        %2645 = vset.pattern.permute.xlu0 1
        %2646 = vperm.xlu0 %2645, %v2443
        %v2647 = vpop.permute.xlu0 %2646
        %v2649 = vlaneseq
        %v2650 = vshrl.u32 %v2649, 7
        %v2651 = vsub.s32 1, %v2650
        %v2652 = vrot.slane %v2569, %v2651
        %v2653 = vmul.f32 %v2643, %v2652
        %v2654 = vmul.f32 %v2647, %v2652
        %v2655 = vadd.f32 %v2639, %v2653
        %v2656 = vadd.f32 %v2640, %v2654
        %2657 = vset.pattern.permute.xlu0 1
        %2658 = vperm.xlu0 %2657, %v2448
        %v2659 = vpop.permute.xlu0 %2658
        %2661 = vset.pattern.permute.xlu0 1
        %2662 = vperm.xlu0 %2661, %v2453
        %v2663 = vpop.permute.xlu0 %2662
        %v2665 = vmul.f32 %v2659, %v2655
        %v2666 = vmul.f32 %v2663, %v2656
        %v2667 = vsel %vm1070, %v2665, 0.0
        %v2668 = vsel %vm1070, %v2666, 0.0
        %v2669 = vadd.f32 %v2667, %v2668
        %v2670 = vrot.slane %v2669, 4
        %v2671 = vadd.f32 %v2669, %v2670
        %v2672 = vrot.slane %v2671, 2
        %v2673 = vadd.f32 %v2671, %v2672
        %v2674 = vrot.slane %v2673, 1
        %v2675 = vadd.f32 %v2673, %v2674
        %v2677 = vunpack.c.l.s4 1966171168
        %v2678 = vunpack.c.0.s8 %v2677
        %v2679 = vlaneseq
        %v2680 = vshrl.u32 %v2679, 7
        %v2681 = vsub.s32 %v2678, %v2680
        %v2682 = vrot.slane %v2350, %v2681
        %v2683 = vcombine.high %v2682, %v2682
        %v2685 = vunpack.c.l.s4 1966171168
        %v2686 = vunpack.c.0.s8 %v2685
        %v2687 = vlaneseq
        %v2688 = vshrl.u32 %v2687, 7
        %v2689 = vsub.s32 %v2686, %v2688
        %v2690 = vrot.slane %v2682, %v2689
        %v2692 = vunpack.c.l.s4 1966171168
        %v2693 = vunpack.c.0.s8 %v2692
        %v2694 = vlaneseq
        %v2695 = vshrl.u32 %v2694, 7
        %v2696 = vsub.s32 %v2693, %v2695
        %v2697 = vrot.slane %v2683, %v2696
        %v2699 = vmul.f32 %v2556, %v2697
        %v2700 = vadd.f32 %v2675, %v2699
        %v2701 = vrot.slane %v2617, 1
        %2702 = vrot.lane.b32.xlu0 %v2701, 64
        %v2703 = vpop.permute.xlu0 %2702
        %v2705 = vmul.f32 %v2700, %v2703
        %v2706 = vlaneseq
        %v2707 = vshrl.u32 %v2706, 7
        %v2708 = vsub.s32 0, %v2707
        %v2709 = vrot.slane %v2705, %v2708
        %v2710 = vmul.f32 %v1422, %v2709
        %v2711 = vadd.f32 %v2628, %v2710
        %v2712 = vlaneseq
        %v2713 = vshrl.u32 %v2712, 7
        %v2714 = vsub.s32 2, %v2713
        %v2715 = vrot.slane %v2551, %v2714
        %v2716 = vmul.f32 %v2715, %v2553
        %v2717 = vmul.f32 %v2715, %v2554
        %v2718 = vmul.f32 %v2716, 1.442695
        %v2719 = vpow.pop %v2718
        %v2720 = vmul.f32 %v2717, 1.442695
        %v2721 = vpow.pop %v2720
        %v2722 = vmul.f32 %v2719, %v2655
        %v2723 = vmul.f32 %v2721, %v2656
        %2724 = vset.pattern.permute.xlu0 2
        %2725 = vperm.xlu0 %2724, %v2438
        %v2726 = vpop.permute.xlu0 %2725
        %2728 = vset.pattern.permute.xlu0 2
        %2729 = vperm.xlu0 %2728, %v2443
        %v2730 = vpop.permute.xlu0 %2729
        %v2732 = vlaneseq
        %v2733 = vshrl.u32 %v2732, 7
        %v2734 = vsub.s32 2, %v2733
        %v2735 = vrot.slane %v2569, %v2734
        %v2736 = vmul.f32 %v2726, %v2735
        %v2737 = vmul.f32 %v2730, %v2735
        %v2738 = vadd.f32 %v2722, %v2736
        %v2739 = vadd.f32 %v2723, %v2737
        %2740 = vset.pattern.permute.xlu0 2
        %2741 = vperm.xlu0 %2740, %v2448
        %v2742 = vpop.permute.xlu0 %2741
        %2744 = vset.pattern.permute.xlu0 2
        %2745 = vperm.xlu0 %2744, %v2453
        %v2746 = vpop.permute.xlu0 %2745
        %v2748 = vmul.f32 %v2742, %v2738
        %v2749 = vmul.f32 %v2746, %v2739
        %v2750 = vsel %vm1070, %v2748, 0.0
        %v2751 = vsel %vm1070, %v2749, 0.0
        %v2752 = vadd.f32 %v2750, %v2751
        %v2753 = vrot.slane %v2752, 4
        %v2754 = vadd.f32 %v2752, %v2753
        %v2755 = vrot.slane %v2754, 2
        %v2756 = vadd.f32 %v2754, %v2755
        %v2757 = vrot.slane %v2756, 1
        %v2758 = vadd.f32 %v2756, %v2757
        %v2759 = vcombine.high %v2690, %v2690
        %v2761 = vmul.f32 %v2556, %v2759
        %v2762 = vadd.f32 %v2758, %v2761
        %v2763 = vrot.slane %v2617, 2
        %2764 = vrot.lane.b32.xlu0 %v2763, 64
        %v2765 = vpop.permute.xlu0 %2764
        %v2767 = vmul.f32 %v2762, %v2765
        %v2768 = vlaneseq
        %v2769 = vshrl.u32 %v2768, 7
        %v2770 = vsub.s32 0, %v2769
        %v2771 = vrot.slane %v2767, %v2770
        %v2772 = vmul.f32 %v1487, %v2771
        %v2773 = vadd.f32 %v2711, %v2772
        %v2774 = vlaneseq
        %v2775 = vshrl.u32 %v2774, 7
        %v2776 = vsub.s32 3, %v2775
        %v2777 = vrot.slane %v2551, %v2776
        %v2778 = vmul.f32 %v2777, %v2553
        %v2779 = vmul.f32 %v2777, %v2554
        %v2780 = vmul.f32 %v2778, 1.442695
        %v2781 = vpow.pop %v2780
        %v2782 = vmul.f32 %v2779, 1.442695
        %v2783 = vpow.pop %v2782
        %v2784 = vmul.f32 %v2781, %v2738
        %v2785 = vmul.f32 %v2783, %v2739
        %2786 = vset.pattern.permute.xlu0 3
        %2787 = vperm.xlu0 %2786, %v2438
        %v2788 = vpop.permute.xlu0 %2787
        %2790 = vset.pattern.permute.xlu0 3
        %2791 = vperm.xlu0 %2790, %v2443
        %v2792 = vpop.permute.xlu0 %2791
        %v2794 = vlaneseq
        %v2795 = vshrl.u32 %v2794, 7
        %v2796 = vsub.s32 3, %v2795
        %v2797 = vrot.slane %v2569, %v2796
        %v2798 = vmul.f32 %v2788, %v2797
        %v2799 = vmul.f32 %v2792, %v2797
        %v2800 = vadd.f32 %v2784, %v2798
        %v2801 = vadd.f32 %v2785, %v2799
        %2802 = vset.pattern.permute.xlu0 3
        %2803 = vperm.xlu0 %2802, %v2448
        %v2804 = vpop.permute.xlu0 %2803
        %2806 = vset.pattern.permute.xlu0 3
        %2807 = vperm.xlu0 %2806, %v2453
        %v2808 = vpop.permute.xlu0 %2807
        %v2810 = vmul.f32 %v2804, %v2800
        %v2811 = vmul.f32 %v2808, %v2801
        %v2812 = vsel %vm1070, %v2810, 0.0
        %v2813 = vsel %vm1070, %v2811, 0.0
        %v2814 = vadd.f32 %v2812, %v2813
        %v2815 = vrot.slane %v2814, 4
        %v2816 = vadd.f32 %v2814, %v2815
        %v2817 = vrot.slane %v2816, 2
        %v2818 = vadd.f32 %v2816, %v2817
        %v2819 = vrot.slane %v2818, 1
        %v2820 = vadd.f32 %v2818, %v2819
        %v2821 = vcombine.high %v2697, %v2697
        %v2823 = vmul.f32 %v2556, %v2821
        %v2824 = vadd.f32 %v2820, %v2823
        %v2825 = vrot.slane %v2617, 3
        %2826 = vrot.lane.b32.xlu0 %v2825, 64
        %v2827 = vpop.permute.xlu0 %2826
        %v2829 = vmul.f32 %v2824, %v2827
        %v2830 = vlaneseq
        %v2831 = vshrl.u32 %v2830, 7
        %v2832 = vsub.s32 0, %v2831
        %v2833 = vrot.slane %v2829, %v2832
        %v2834 = vmul.f32 %v1552, %v2833
        %v2835 = vadd.f32 %v2773, %v2834
        %v2836 = vlaneseq
        %v2837 = vshrl.u32 %v2836, 7
        %v2838 = vsub.s32 4, %v2837
        %v2839 = vrot.slane %v2551, %v2838
        %v2840 = vmul.f32 %v2839, %v2553
        %v2841 = vmul.f32 %v2839, %v2554
        %v2842 = vmul.f32 %v2840, 1.442695
        %v2843 = vpow.pop %v2842
        %v2844 = vmul.f32 %v2841, 1.442695
        %v2845 = vpow.pop %v2844
        %v2846 = vmul.f32 %v2843, %v2800
        %v2847 = vmul.f32 %v2845, %v2801
        %2848 = vset.pattern.permute.xlu0 4
        %2849 = vperm.xlu0 %2848, %v2438
        %v2850 = vpop.permute.xlu0 %2849
        %2852 = vset.pattern.permute.xlu0 4
        %2853 = vperm.xlu0 %2852, %v2443
        %v2854 = vpop.permute.xlu0 %2853
        %v2856 = vlaneseq
        %v2857 = vshrl.u32 %v2856, 7
        %v2858 = vsub.s32 4, %v2857
        %v2859 = vrot.slane %v2569, %v2858
        %v2860 = vmul.f32 %v2850, %v2859
        %v2861 = vmul.f32 %v2854, %v2859
        %v2862 = vadd.f32 %v2846, %v2860
        %v2863 = vadd.f32 %v2847, %v2861
        %2864 = vset.pattern.permute.xlu0 4
        %2865 = vperm.xlu0 %2864, %v2448
        %v2866 = vpop.permute.xlu0 %2865
        %2868 = vset.pattern.permute.xlu0 4
        %2869 = vperm.xlu0 %2868, %v2453
        %v2870 = vpop.permute.xlu0 %2869
        %v2872 = vmul.f32 %v2866, %v2862
        %v2873 = vmul.f32 %v2870, %v2863
        %v2874 = vsel %vm1070, %v2872, 0.0
        %v2875 = vsel %vm1070, %v2873, 0.0
        %v2876 = vadd.f32 %v2874, %v2875
        %v2877 = vrot.slane %v2876, 4
        %v2878 = vadd.f32 %v2876, %v2877
        %v2879 = vrot.slane %v2878, 2
        %v2880 = vadd.f32 %v2878, %v2879
        %v2881 = vrot.slane %v2880, 1
        %v2882 = vadd.f32 %v2880, %v2881
        %v2883 = vcombine.high %v2350, %v2350
        %v2885 = vunpack.c.l.s4 1966171168
        %v2886 = vunpack.c.0.s8 %v2885
        %v2887 = vlaneseq
        %v2888 = vshrl.u32 %v2887, 7
        %v2889 = vsub.s32 %v2886, %v2888
        %v2890 = vrot.slane %v2883, %v2889
        %v2892 = vunpack.c.l.s4 1966171168
        %v2893 = vunpack.c.0.s8 %v2892
        %v2894 = vlaneseq
        %v2895 = vshrl.u32 %v2894, 7
        %v2896 = vsub.s32 %v2893, %v2895
        %v2897 = vrot.slane %v2890, %v2896
        %v2899 = vmul.f32 %v2556, %v2897
        %v2900 = vadd.f32 %v2882, %v2899
        %v2901 = vrot.slane %v2617, 4
        %2902 = vrot.lane.b32.xlu0 %v2901, 64
        %v2903 = vpop.permute.xlu0 %2902
        %v2905 = vmul.f32 %v2900, %v2903
        %v2906 = vlaneseq
        %v2907 = vshrl.u32 %v2906, 7
        %v2908 = vsub.s32 0, %v2907
        %v2909 = vrot.slane %v2905, %v2908
        %v2910 = vmul.f32 %v1631, %v2909
        %v2911 = vadd.f32 %v2835, %v2910
        %v2912 = vlaneseq
        %v2913 = vshrl.u32 %v2912, 7
        %v2914 = vsub.s32 5, %v2913
        %v2915 = vrot.slane %v2551, %v2914
        %v2916 = vmul.f32 %v2915, %v2553
        %v2917 = vmul.f32 %v2915, %v2554
        %v2918 = vmul.f32 %v2916, 1.442695
        %v2919 = vpow.pop %v2918
        %v2920 = vmul.f32 %v2917, 1.442695
        %v2921 = vpow.pop %v2920
        %v2922 = vmul.f32 %v2919, %v2862
        %v2923 = vmul.f32 %v2921, %v2863
        %2924 = vset.pattern.permute.xlu0 5
        %2925 = vperm.xlu0 %2924, %v2438
        %v2926 = vpop.permute.xlu0 %2925
        %2928 = vset.pattern.permute.xlu0 5
        %2929 = vperm.xlu0 %2928, %v2443
        %v2930 = vpop.permute.xlu0 %2929
        %v2932 = vlaneseq
        %v2933 = vshrl.u32 %v2932, 7
        %v2934 = vsub.s32 5, %v2933
        %v2935 = vrot.slane %v2569, %v2934
        %v2936 = vmul.f32 %v2926, %v2935
        %v2937 = vmul.f32 %v2930, %v2935
        %v2938 = vadd.f32 %v2922, %v2936
        %v2939 = vadd.f32 %v2923, %v2937
        %2940 = vset.pattern.permute.xlu0 5
        %2941 = vperm.xlu0 %2940, %v2448
        %v2942 = vpop.permute.xlu0 %2941
        %2944 = vset.pattern.permute.xlu0 5
        %2945 = vperm.xlu0 %2944, %v2453
        %v2946 = vpop.permute.xlu0 %2945
        %v2948 = vmul.f32 %v2942, %v2938
        %v2949 = vmul.f32 %v2946, %v2939
        %v2950 = vsel %vm1070, %v2948, 0.0
        %v2951 = vsel %vm1070, %v2949, 0.0
        %v2952 = vadd.f32 %v2950, %v2951
        %v2953 = vrot.slane %v2952, 4
        %v2954 = vadd.f32 %v2952, %v2953
        %v2955 = vrot.slane %v2954, 2
        %v2956 = vadd.f32 %v2954, %v2955
        %v2957 = vrot.slane %v2956, 1
        %v2958 = vadd.f32 %v2956, %v2957
        %v2959 = vcombine.high %v2890, %v2890
        %v2961 = vunpack.c.l.s4 1966171168
        %v2962 = vunpack.c.0.s8 %v2961
        %v2963 = vlaneseq
        %v2964 = vshrl.u32 %v2963, 7
        %v2965 = vsub.s32 %v2962, %v2964
        %v2966 = vrot.slane %v2959, %v2965
        %v2968 = vmul.f32 %v2556, %v2966
        %v2969 = vadd.f32 %v2958, %v2968
        %v2970 = vrot.slane %v2617, 5
        %2971 = vrot.lane.b32.xlu0 %v2970, 64
        %v2972 = vpop.permute.xlu0 %2971
        %v2974 = vmul.f32 %v2969, %v2972
        %v2975 = vlaneseq
        %v2976 = vshrl.u32 %v2975, 7
        %v2977 = vsub.s32 0, %v2976
        %v2978 = vrot.slane %v2974, %v2977
        %v2979 = vmul.f32 %v1703, %v2978
        %v2980 = vadd.f32 %v2911, %v2979
        %v2981 = vlaneseq
        %v2982 = vshrl.u32 %v2981, 7
        %v2983 = vsub.s32 6, %v2982
        %v2984 = vrot.slane %v2551, %v2983
        %v2985 = vmul.f32 %v2984, %v2553
        %v2986 = vmul.f32 %v2984, %v2554
        %v2987 = vmul.f32 %v2985, 1.442695
        %v2988 = vpow.pop %v2987
        %v2989 = vmul.f32 %v2986, 1.442695
        %v2990 = vpow.pop %v2989
        %v2991 = vmul.f32 %v2988, %v2938
        %v2992 = vmul.f32 %v2990, %v2939
        %2993 = vset.pattern.permute.xlu0 6
        %2994 = vperm.xlu0 %2993, %v2438
        %v2995 = vpop.permute.xlu0 %2994
        %2997 = vset.pattern.permute.xlu0 6
        %2998 = vperm.xlu0 %2997, %v2443
        %v2999 = vpop.permute.xlu0 %2998
        %v3001 = vlaneseq
        %v3002 = vshrl.u32 %v3001, 7
        %v3003 = vsub.s32 6, %v3002
        %v3004 = vrot.slane %v2569, %v3003
        %v3005 = vmul.f32 %v2995, %v3004
        %v3006 = vmul.f32 %v2999, %v3004
        %v3007 = vadd.f32 %v2991, %v3005
        %v3008 = vadd.f32 %v2992, %v3006
        %3009 = vset.pattern.permute.xlu0 6
        %3010 = vperm.xlu0 %3009, %v2448
        %v3011 = vpop.permute.xlu0 %3010
        %3013 = vset.pattern.permute.xlu0 6
        %3014 = vperm.xlu0 %3013, %v2453
        %v3015 = vpop.permute.xlu0 %3014
        %v3017 = vmul.f32 %v3011, %v3007
        %v3018 = vmul.f32 %v3015, %v3008
        %v3019 = vsel %vm1070, %v3017, 0.0
        %v3020 = vsel %vm1070, %v3018, 0.0
        %v3021 = vadd.f32 %v3019, %v3020
        %v3022 = vrot.slane %v3021, 4
        %v3023 = vadd.f32 %v3021, %v3022
        %v3024 = vrot.slane %v3023, 2
        %v3025 = vadd.f32 %v3023, %v3024
        %v3026 = vrot.slane %v3025, 1
        %v3027 = vadd.f32 %v3025, %v3026
        %v3028 = vcombine.high %v2897, %v2897
        %v3030 = vmul.f32 %v2556, %v3028
        %v3031 = vadd.f32 %v3027, %v3030
        %v3032 = vrot.slane %v2617, 6
        %3033 = vrot.lane.b32.xlu0 %v3032, 64
        %v3034 = vpop.permute.xlu0 %3033
        %v3036 = vmul.f32 %v3031, %v3034
        %v3037 = vlaneseq
        %v3038 = vshrl.u32 %v3037, 7
        %v3039 = vsub.s32 0, %v3038
        %v3040 = vrot.slane %v3036, %v3039
        %v3041 = vmul.f32 %v1768, %v3040
        %v3042 = vadd.f32 %v2980, %v3041
        %v3043 = vlaneseq
        %v3044 = vshrl.u32 %v3043, 7
        %v3045 = vsub.s32 7, %v3044
        %v3046 = vrot.slane %v2551, %v3045
        %v3047 = vmul.f32 %v3046, %v2553
        %v3048 = vmul.f32 %v3046, %v2554
        %v3049 = vmul.f32 %v3047, 1.442695
        %v3050 = vpow.pop %v3049
        %v3051 = vmul.f32 %v3048, 1.442695
        %v3052 = vpow.pop %v3051
        %v3053 = vmul.f32 %v3050, %v3007
        %v3054 = vmul.f32 %v3052, %v3008
        %3055 = vset.pattern.permute.xlu0 7
        %3056 = vperm.xlu0 %3055, %v2438
        %v3057 = vpop.permute.xlu0 %3056
        %3059 = vset.pattern.permute.xlu0 7
        %3060 = vperm.xlu0 %3059, %v2443
        %v3061 = vpop.permute.xlu0 %3060
        %v3063 = vlaneseq
        %v3064 = vshrl.u32 %v3063, 7
        %v3065 = vsub.s32 7, %v3064
        %v3066 = vrot.slane %v2569, %v3065
        %v3067 = vmul.f32 %v3057, %v3066
        %v3068 = vmul.f32 %v3061, %v3066
        %v3069 = vadd.f32 %v3053, %v3067
        %v3070 = vadd.f32 %v3054, %v3068
        %3071 = vset.pattern.permute.xlu0 7
        %3072 = vperm.xlu0 %3071, %v2448
        %v3073 = vpop.permute.xlu0 %3072
        %3075 = vset.pattern.permute.xlu0 7
        %3076 = vperm.xlu0 %3075, %v2453
        %v3077 = vpop.permute.xlu0 %3076
        %v3079 = vmul.f32 %v3073, %v3069
        %v3080 = vmul.f32 %v3077, %v3070
        %v3081 = vsel %vm1070, %v3079, 0.0
        %v3082 = vsel %vm1070, %v3080, 0.0
        %v3083 = vadd.f32 %v3081, %v3082
        %v3084 = vrot.slane %v3083, 4
        %v3085 = vadd.f32 %v3083, %v3084
        %v3086 = vrot.slane %v3085, 2
        %v3087 = vadd.f32 %v3085, %v3086
        %v3088 = vrot.slane %v3087, 1
        %v3089 = vadd.f32 %v3087, %v3088
        %v3090 = vcombine.high %v2966, %v2966
        %v3092 = vmul.f32 %v2556, %v3090
        %v3093 = vadd.f32 %v3089, %v3092
        %v3094 = vrot.slane %v2617, 7
        %3095 = vrot.lane.b32.xlu0 %v3094, 64
        %v3096 = vpop.permute.xlu0 %3095
        %v3098 = vmul.f32 %v3093, %v3096
        %v3099 = vlaneseq
        %v3100 = vshrl.u32 %v3099, 7
        %v3101 = vsub.s32 0, %v3100
        %v3102 = vrot.slane %v3098, %v3101
        %v3103 = vmul.f32 %v1833, %v3102
        %v3104 = vadd.f32 %v3042, %v3103
        %s3105 = scalar_lea.vmem %s12, 64
        %v3106 = vld [vmem:[%s3105] sm:$0xff]
        %v3107 = vld [vmem:[%s3105 + $0x8] sm:$0xff]
        %v3108 = vld [vmem:[%s3105 + $0x10] sm:$0xff]
        %v3109 = vld [vmem:[%s3105 + $0x18] sm:$0xff]
        %v3110 = vld [vmem:[%s3105 + $0x20] sm:$0xff]
        %v3111 = vld [vmem:[%s3105 + $0x28] sm:$0xff]
        %v3112 = vld [vmem:[%s3105 + $0x30] sm:$0xff]
        %v3113 = vld [vmem:[%s3105 + $0x38] sm:$0xff]
        %v3115 = vsel %vm1070, %v3104, 0
        %3117 = vmatprep.subr.mxu0 0.0
        %3118 = vmatpush1.msra.mxu0 0.0
        %3119 = vmatprep.subr.mxu0 0.0
        %3120 = vmatpush1.msra.mxu0 0.0
        %3121 = vmatprep.subr.mxu0 0.0
        %3122 = vmatpush1.msra.mxu0 0.0
        %3123 = vmatprep.subr.mxu0 0.0
        %3124 = vmatpush1.msra.mxu0 0.0
        %3125 = vmatprep.subr.mxu0 0.0
        %3126 = vmatpush1.msra.mxu0 0.0
        %3127 = vmatprep.subr.mxu0 0.0
        %3128 = vmatpush1.msra.mxu0 0.0
        %3129 = vmatprep.subr.mxu0 0.0
        %3130 = vmatpush1.msra.mxu0 0.0
        %3131 = vmatprep.subr.mxu0 0.0
        %3132 = vmatpush1.msra.mxu0 0.0
        %3133 = vmatprep.subr.mxu0 0.0
        %3134 = vmatpush1.msra.mxu0 %v3113
        %3135 = vmatprep.subr.mxu0 0.0
        %3136 = vmatpush1.msra.mxu0 %v3112
        %3137 = vmatprep.subr.mxu0 0.0
        %3138 = vmatpush1.msra.mxu0 %v3111
        %3139 = vmatprep.subr.mxu0 0.0
        %3140 = vmatpush1.msra.mxu0 %v3110
        %3141 = vmatprep.subr.mxu0 0.0
        %3142 = vmatpush1.msra.mxu0 %v3109
        %3143 = vmatprep.subr.mxu0 0.0
        %3144 = vmatpush1.msra.mxu0 %v3108
        %3145 = vmatprep.subr.mxu0 0.0
        %3146 = vmatpush1.msra.mxu0 %v3107
        %3147 = vmatprep.subr.mxu0 0.0
        %3148 = vmatpush1.msra.mxu0 %v3106
        %3149 = vmatprep.subr.mxu0 0.0
        %3150 = vmatpush2.msra.mxu0 0.0
        %3151 = vmatprep.subr.mxu0 0.0
        %3152 = vmatpush2.msra.mxu0 0.0
        %3153 = vmatprep.subr.mxu0 0.0
        %3154 = vmatpush2.msra.mxu0 0.0
        %3155 = vmatprep.subr.mxu0 0.0
        %3156 = vmatpush2.msra.mxu0 0.0
        %3157 = vmatprep.subr.mxu0 0.0
        %3158 = vmatpush2.msra.mxu0 0.0
        %3159 = vmatprep.subr.mxu0 0.0
        %3160 = vmatpush2.msra.mxu0 0.0
        %3161 = vmatprep.subr.mxu0 0.0
        %3162 = vmatpush2.msra.mxu0 0.0
        %3163 = vmatprep.subr.mxu0 0.0
        %3164 = vmatpush2.msra.mxu0 0.0
        %3165 = vmatprep.subr.mxu0 0.0
        %3166 = vmatpush2.msra.mxu0 0.0
        %3167 = vmatprep.subr.mxu0 0.0
        %3168 = vmatpush2.msra.mxu0 0.0
        %3169 = vmatprep.subr.mxu0 0.0
        %3170 = vmatpush2.msra.mxu0 0.0
        %3171 = vmatprep.subr.mxu0 0.0
        %3172 = vmatpush2.msra.mxu0 0.0
        %3173 = vmatprep.subr.mxu0 0.0
        %3174 = vmatpush2.msra.mxu0 0.0
        %3175 = vmatprep.subr.mxu0 0.0
        %3176 = vmatpush2.msra.mxu0 0.0
        %3177 = vmatprep.subr.mxu0 0.0
        %3178 = vmatpush2.msra.mxu0 0.0
        %3179 = vmatprep.subr.mxu0 0.0
        %3180 = vmatpush2.msra.mxu0 0.0
        %3181 = vmatprep.mubr.f32.mxu0 0.0
        %3182 = vmatmul.mubr.f32.gmra.mxu0 %v3115
        %v3183 = vpop.f32.mrf.mxu0
        %v3184 = vadd.f32 %v1918, %v3183
        %v3185 = vpop.f32.mrf.mxu0
        %3186 = vdwg.mxu0
        %v3187 = vld [vmem:[%s14] sm:$0x1]
        %v3188 = vld [vmem:[%s15] sm:$0x1]
        %v3189 = vsel %vm621, %v3184, 0.0
        %3190 = vadd.xlane.f32.xlu0 %v3189
        %v3191 = vpop.xlane.xlu0 %3190
        %v3192 = vmul.f32 %v3191, %v625
        %v3193 = vsub.f32 %v3184, %v3192
        %v3194 = vmul.f32 %v3193, %v3193
        %v3195 = vsel %vm621, %v3194, 0.0
        %3196 = vadd.xlane.f32.xlu0 %v3195
        %v3197 = vpop.xlane.xlu0 %3196
        %v3198 = vmul.f32 %v3197, %v625
        %v3199 = vadd.f32 %v3198, 1e-05
        %v3200 = vrsqrt.pop %v3199
        %v3201 = vmul.f32 %v3193, %v3200
        %v3203 = vlaneseq
        %v3204 = vshrl.u32 %v3203, 7
        %v3205 = vsub.s32 0, %v3204
        %v3206 = vrot.slane %v3187, %v3205
        %v3208 = vmul.f32 %v3201, %v3206
        %v3210 = vlaneseq
        %v3211 = vshrl.u32 %v3210, 7
        %v3212 = vsub.s32 0, %v3211
        %v3213 = vrot.slane %v3188, %v3212
        %v3215 = vadd.f32 %v3208, %v3213
        %3216 = vst.msk [vmem:[%s512] sm:$0xff] %vm621, %v3215
        %s3217 = sand.u32 %s379, 1
        %s3218 = scalar_lea.sflag [#allocation3], %s3217
        %s3219 = sand.u32 %s379, 1
        %s3220 = smul.addr %s3219, 8
        %s3221 = scalar_lea.vmem [#allocation2], %s3220
        // Predicated region
        $region85: #{mixer_forward.1} parent=83 // pred_check
          %p3222 = pneg %p389
        $region86: #{mixer_forward.1} parent=83 // pred_check_branch
          %3224 = sbr.rel (%p3222) target = $region88
        $region87: #{mixer_forward.1} parent=83 // pred_region
          %s3226 = ssub.s32 128, 128
          %3227 = vsyncadd %s3218, %s3226
          %s3228 = smul.addr %s30, 128
          %s3229 = scalar_lea.hbm %s16, %s3228
          %s3231 = sshll.u32 %s3221, 4
          %s3232 = int_to_ptr.vmem [resolvable:$true] %s3231
          %3234 = dma.vmem_to_hbm [thread:$0]  %s3232, 128, %s3229, %s3218
        $region88: #{mixer_forward.1} parent=83 // pred_fallthru
          _
      $region84: #{mixer_forward.1} parent=5 // pred_fallthru
        _
      %p3235 = scmp.le.s32.totalorder 2, %s25
      // Predicated region
      $region89: #{mixer_forward.1} parent=5 // pred_check
        %p3236 = pneg %p3235
      $region90: #{mixer_forward.1} parent=5 // pred_check_branch
        %3238 = sbr.rel (%p3236) target = $region92
      $region91: #{mixer_forward.1} parent=5 // pred_region
        %s3239 = ssub.s32 %s25, 2
        // Predicated region
        $region93: #{mixer_forward.1} parent=91 // pred_check
          %p3240 = pneg %p395
        $region94: #{mixer_forward.1} parent=91 // pred_check_branch
          %3242 = sbr.rel (%p3240) target = $region96
        $region95: #{mixer_forward.1} parent=91 // pred_region
          %s3243 = sand.u32 %s380, 1
          %s3244 = scalar_lea.sflag [#allocation3], %s3243
          %s3245 = sand.u32 %s380, 1
          %s3246 = smul.addr %s3245, 8
          %s3247 = scalar_lea.vmem [#allocation2], %s3246
          %3248 = dma.done %s3244, 128
        $region96: #{mixer_forward.1} parent=91 // pred_fallthru
          _
      $region92: #{mixer_forward.1} parent=5 // pred_fallthru
        _
    $region6: #{mixer_forward.1} parent=1 // loop_footer
      %s29 = sadd.s32 1, %s25
    $region7: #{mixer_forward.1} parent=1 // loop_footer_branch
      %24 = sbr.rel target = $region3
    $region8: #{mixer_forward.1} parent=1 // loop_exit
      _
    %3249 = vsyncpa [#allocation3], 1
    %s3250 = scalar_lea.sflag [#allocation3], 1
    %3251 = vsyncpa %s3250, 1

</llo_original>
